<compile_context>
chip_gen: v7x
topology: tpu7x:2x2x1
jax: 0.10.0
libtpu: 0.0.40
codegen_flags: <defaults>
</compile_context>

<pallas_src>
import functools
import math

import jax
import jax.numpy as jnp
from jax.experimental import pallas as pl
from jax.experimental.pallas import tpu as pltpu


# ----------------------------------------------------------------------------
# Pallas kernel: accumulate one (band-selected) source chunk onto one output
# tile via a single fused weighted-scatter matmul.
# ----------------------------------------------------------------------------
def _splat_kernel(start_ref, lo_ref, hi_ref, w_ref, tgt_ref, im_ref, out_ref, *,
                  mt, n_j, n_k, offsets, mxu_dtype):
    b = pl.program_id(0)
    j = pl.program_id(1)          # output tile index
    k = pl.program_id(2)          # step along the band-restricted reduction

    # Output block index is independent of k -> the block stays resident in
    # VMEM across the reduction axis: accumulate directly into it.
    @pl.when(k == 0)
    def _init():
        out_ref[...] = jnp.zeros_like(out_ref)

    tile_lo = j * mt
    # Absolute source-chunk index for this step (data-dependent index_map uses
    # the same SMEM table, so the blocks below belong to this chunk).
    k_abs = start_ref[b * n_j + j] + k
    # Safety guard: skip all compute if this chunk cannot reach this tile.
    hit = ((lo_ref[b * n_k + k_abs] < tile_lo + mt) &
           (hi_ref[b * n_k + k_abs] >= tile_lo))

    @pl.when(hit)
    def _accumulate():
        im = im_ref[0].astype(mxu_dtype)                 # (C, KC)   lane-dense
        w = w_ref[0].astype(mxu_dtype)                   # (KC, n_off) sublane-major
        tgt = tgt_ref[0]                                 # (KC, 1)   int32

        # Output linear indices handled by this tile, on lanes.
        m_row = jax.lax.broadcasted_iota(jnp.int32, (1, mt), 1) + tile_lo

        # Fused weighted scatter matrix S[KC, MT].  For a fixed source pixel
        # at most one corner matches a given target, so the sum is an exact
        # scatter of the corner weights (no accumulation collisions).
        s_mat = None
        for c, off in enumerate(offsets):
            cmp = tgt == (m_row - off)                   # (KC, MT) bool
            term = jnp.where(cmp, w[:, c:c + 1], 0.0)    # (KC, MT) mxu_dtype
            s_mat = term if s_mat is None else s_mat + term

        # Single MXU matmul per hit step; f32 accumulation into the resident
        # output block.
        out_ref[...] += jnp.dot(im, s_mat,
                                preferred_element_type=jnp.float32)[None]


def _forward_warp_splat(start, lo, hi, w, tgt, im, *,
                        mt, kc, k_max, offsets, mxu_dtype):
    B, np_pad, n_off = w.shape
    C = im.shape[1]
    n_j = np_pad // mt
    n_k = np_pad // kc
    kernel = functools.partial(_splat_kernel, mt=mt, n_j=n_j, n_k=n_k,
                               offsets=offsets, mxu_dtype=mxu_dtype)
    return pl.pallas_call(
        kernel,
        out_shape=jax.ShapeDtypeStruct((B, C, np_pad), jnp.float32),
        grid_spec=pltpu.PrefetchScalarGridSpec(
            num_scalar_prefetch=3,                 # start, lo, hi -> SMEM
            grid=(B, n_j, k_max),
            in_specs=[
                # corner weights, sublane-major  -> (KC, n_off) per step
                pl.BlockSpec(
                    (1, kc, n_off),
                    lambda b, j, k, s, lo_r, hi_r: (b, s[b * n_j + j] + k, 0)),
                # NW target index, sublane-major -> (KC, 1) per step
                pl.BlockSpec(
                    (1, kc, 1),
                    lambda b, j, k, s, lo_r, hi_r: (b, s[b * n_j + j] + k, 0)),
                # image, lane-dense              -> (C, KC) per step
                pl.BlockSpec(
                    (1, C, kc),
                    lambda b, j, k, s, lo_r, hi_r: (b, 0, s[b * n_j + j] + k)),
            ],
            out_specs=pl.BlockSpec((1, C, mt),
                                   lambda b, j, k, s, lo_r, hi_r: (b, 0, j)),
        ),
        compiler_params=pltpu.CompilerParams(
            dimension_semantics=("parallel", "parallel", "arbitrary"),
            vmem_limit_bytes=32 * 1024 * 1024),
    )(start, lo, hi, w, tgt, im)


def _default_matmul_dtype():
    """bf16 MXU operands on v6e/v7x (bf16 VALU, native bf16 MXU), f32 elsewhere."""
    try:
        kind = jax.devices()[0].device_kind.lower()
    except Exception:
        return jnp.float32
    if "v6" in kind or "v7" in kind:
        return jnp.bfloat16
    return jnp.float32


# ----------------------------------------------------------------------------
# Module-equivalent wrapper (padding / precompute / crop glue in plain JAX).
# ----------------------------------------------------------------------------
class ForwardWarpPadded:
    """JAX/Pallas equivalent of the PyTorch `forward_warp_padded` module."""

    def __init__(self, pad=20, interpolation_mode="Bilinear",
                 matmul_dtype=None, out_tile=512, k_tile=512):
        assert interpolation_mode in ("Bilinear", "Nearest")
        self.pad = int(pad)
        self.mode = interpolation_mode
        self.matmul_dtype = (_default_matmul_dtype() if matmul_dtype is None
                             else matmul_dtype)
        self.out_tile = int(out_tile)
        self.k_tile = int(k_tile)

    def __call__(self, im0, flow):
        # im0:  [B, C, H, W] ; flow: [B, H, W, 2]
        B, C, H, W = im0.shape
        p = self.pad
        mt, kc = self.out_tile, self.k_tile
        if p >= H or p >= W:
            raise ValueError("reflect padding requires pad < H and pad < W")

        # Same padding semantics as the reference module.
        im0_pad = jnp.pad(im0.astype(jnp.float32),
                          ((0, 0), (0, 0), (p, p), (p, p)), mode="reflect")
        flow_pad = (jnp.pad(flow.astype(jnp.float32),
                            ((0, 0), (p, p), (p, p), (0, 0)))
                    + jnp.float32(p))
        Hp, Wp = H + 2 * p, W + 2 * p
        Np = Hp * Wp
        align = math.lcm(mt, kc)
        np_pad = -(-Np // align) * align
        tail = np_pad - Np

        # ---- per-source precompute (hoisted out of the kernel) -------------
        fx = flow_pad[..., 0].reshape(B, Np)
        fy = flow_pad[..., 1].reshape(B, Np)
        src = jnp.arange(Np, dtype=jnp.int32)
        x = (src % Wp).astype(jnp.float32)[None] + fx
        y = (src // Wp).astype(jnp.float32)[None] + fy

        if self.mode == "Bilinear":
            x_f = jnp.floor(x)
            y_f = jnp.floor(y)
            valid = ((x_f >= 0.0) & (x_f + 1.0 < Wp)
                     & (y_f >= 0.0) & (y_f + 1.0 < Hp))
            ax = x - x_f
            ay = y - y_f
            # (B, Np, 4): sublane-major corner weights (NW, NE, SW, SE)
            w = jnp.stack([(1.0 - ax) * (1.0 - ay),
                           ax * (1.0 - ay),
                           (1.0 - ax) * ay,
                           ax * ay], axis=-1)
            tgt = y_f.astype(jnp.int32) * Wp + x_f.astype(jnp.int32)
            offsets = (0, 1, Wp, Wp + 1)
        else:  # "Nearest"
            # TODO(synk): CUDA ::round is round-half-away-from-zero; jnp.round
            # is round-half-to-even — differs only on exact .5 ties.
            x_n = jnp.round(x)
            y_n = jnp.round(y)
            valid = (x_n >= 0.0) & (x_n < Wp) & (y_n >= 0.0) & (y_n < Hp)
            w = jnp.ones((B, Np, 1), jnp.float32)
            tgt = y_n.astype(jnp.int32) * Wp + x_n.astype(jnp.int32)
            offsets = (0,)

        w = jnp.where(valid[..., None], w, 0.0)
        tgt = jnp.where(valid, tgt, 0)

        # Pad the source axis to a multiple of lcm(mt, kc).
        w = jnp.pad(w, ((0, 0), (0, tail), (0, 0)))
        tgt = jnp.pad(tgt, ((0, 0), (0, tail)))
        valid = jnp.pad(valid, ((0, 0), (0, tail)))

        n_k = np_pad // kc
        n_j = np_pad // mt

        # Per-chunk [min, max] reachable output index (band tables).
        big = jnp.int32(2 ** 30)
        lo = jnp.min(jnp.where(valid, tgt, big).reshape(B, n_k, kc),
                     axis=-1).astype(jnp.int32)
        hi = jnp.max(jnp.where(valid, tgt + max(offsets), -big)
                     .reshape(B, n_k, kc), axis=-1).astype(jnp.int32)

        # Band restriction: per-(b, output-tile) first / last reachable chunk.
        tile_lo = jnp.arange(n_j, dtype=jnp.int32)[None, :, None] * mt
        inter = ((lo[:, None, :] < tile_lo + mt) &
                 (hi[:, None, :] >= tile_lo))                    # (B, n_j, n_k)
        k_idx = jnp.arange(n_k, dtype=jnp.int32)
        first = jnp.min(jnp.where(inter, k_idx, n_k), axis=-1)   # (B, n_j)
        last = jnp.max(jnp.where(inter, k_idx, -1), axis=-1)
        count = jnp.maximum(last - first + 1, 0)
        try:
            # Static grid extent: concretize the maximum band depth (eager path).
            k_max = int(jnp.max(count))
        except Exception:
            # Traced (e.g. under jit): fall back to the dense reduction band.
            k_max = n_k
        k_max = max(1, min(k_max, n_k))
        # Clamp the start so start + k_max - 1 never exceeds n_k - 1; any extra
        # chunks swept by the clamp are rejected by the in-kernel hit guard.
        start = jnp.clip(jnp.minimum(first, n_k - k_max), 0, n_k - 1)

        # Flatten the SMEM tables to 1-D (avoids 8x128 SMEM row padding).
        start_flat = start.reshape(B * n_j).astype(jnp.int32)
        lo_flat = lo.reshape(B * n_k)
        hi_flat = hi.reshape(B * n_k)

        # Image in lane-dense [B, C, Np_pad] layout (NCHW flattens directly).
        im_flat = jnp.pad(im0_pad.reshape(B, C, Np),
                          ((0, 0), (0, 0), (0, tail)))

        out_flat = _forward_warp_splat(
            start_flat, lo_flat, hi_flat, w, tgt[..., None], im_flat,
            mt=mt, kc=kc, k_max=k_max, offsets=offsets,
            mxu_dtype=self.matmul_dtype)

        warped_pad = out_flat[:, :, :Np].reshape(B, C, Hp, Wp)
        if p > 0:
            warped_pad = warped_pad[:, :, p:-p, p:-p]
        return warped_pad.astype(im0.dtype)


# ----------------------------------------------------------------------------
# Pure-JAX reference (scatter-add), used only to validate the kernel.
# ----------------------------------------------------------------------------
def _forward_warp_ref(im0, flow, mode="Bilinear"):
    B, C, H, W = im0.shape
    hh, ww = jnp.meshgrid(jnp.arange(H, dtype=jnp.float32),
                          jnp.arange(W, dtype=jnp.float32), indexing="ij")
    x = ww[None] + flow[..., 0]
    y = hh[None] + flow[..., 1]
    if mode == "Bilinear":
        x_f = jnp.floor(x)
        y_f = jnp.floor(y)
        x_c = x_f + 1.0
        y_c = y_f + 1.0
        valid = (x_f >= 0) & (x_c < W) & (y_f >= 0) & (y_c < H)
        corners = [
            (y_f, x_f, (x_c - x) * (y_c - y)),
            (y_f, x_c, (x - x_f) * (y_c - y)),
            (y_c, x_f, (x_c - x) * (y - y_f)),
            (y_c, x_c, (x - x_f) * (y - y_f)),
        ]
    else:
        x_n = jnp.round(x)
        y_n = jnp.round(y)
        valid = (x_n >= 0) & (x_n < W) & (y_n >= 0) & (y_n < H)
        corners = [(y_n, x_n, jnp.ones_like(x))]

    im_hwc = jnp.transpose(im0, (0, 2, 3, 1)).reshape(B, H * W, C)
    out = jnp.zeros((B, H * W, C), jnp.float32)
    for yy, xx, wgt in corners:
        wgt = jnp.where(valid, wgt, 0.0).reshape(B, H * W, 1)
        lin = (jnp.clip(yy, 0, H - 1) * W +
               jnp.clip(xx, 0, W - 1)).astype(jnp.int32).reshape(B, H * W)
        contrib = wgt * im_hwc
        out = jax.vmap(lambda o, l, c: o.at[l].add(c))(out, lin, contrib)
    return jnp.transpose(out.reshape(B, H, W, C), (0, 3, 1, 2))


def forward_warp_padded_ref(im0, flow, pad, mode="Bilinear"):
    p = pad
    im0_pad = jnp.pad(im0, ((0, 0), (0, 0), (p, p), (p, p)), mode="reflect")
    flow_pad = jnp.pad(flow, ((0, 0), (p, p), (p, p), (0, 0))) + jnp.float32(p)
    warped_pad = _forward_warp_ref(im0_pad, flow_pad, mode)
    return warped_pad[:, :, p:-p, p:-p]


# ----------------------------------------------------------------------------
if __name__ == "__main__":
    key = jax.random.PRNGKey(0)
    k_im, k_fl = jax.random.split(key)

    B, C, H, W = 2, 4, 16, 16
    PAD = 4  # reflect padding requires pad < H, so use a small pad here
    im0 = jax.random.normal(k_im, (B, C, H, W), dtype=jnp.float32)
    flow = jax.random.uniform(k_fl, (B, H, W, 2), dtype=jnp.float32,
                              minval=-3.0, maxval=3.0)

    ref = forward_warp_padded_ref(im0, flow, pad=PAD, mode="Bilinear")

    # 1) f32 MXU path (faithful to reference semantics), Bilinear.
    module = ForwardWarpPadded(pad=PAD, interpolation_mode="Bilinear",
                               matmul_dtype=jnp.float32)
    out = jax.block_until_ready(module(im0, flow))
    assert out.shape == (B, C, H, W), out.shape
    err = float(jnp.max(jnp.abs(out - ref)))
    if not err < 2e-2:
        raise AssertionError(f"Bilinear f32 mismatch: max abs err = {err}")

    # 2) Nearest mode (f32).
    module_n = ForwardWarpPadded(pad=PAD, interpolation_mode="Nearest",
                                 matmul_dtype=jnp.float32)
    out_n = jax.block_until_ready(module_n(im0, flow))
    ref_n = forward_warp_padded_ref(im0, flow, pad=PAD, mode="Nearest")
    err_n = float(jnp.max(jnp.abs(out_n - ref_n)))
    if not err_n < 2e-2:
        raise AssertionError(f"Nearest mismatch: max abs err = {err_n}")

    # 3) Default dtype (bf16 MXU on v6e/v7x, f32 elsewhere); accumulation f32.
    module_auto = ForwardWarpPadded(pad=PAD, interpolation_mode="Bilinear")
    out_auto = jax.block_until_ready(module_auto(im0, flow))
    err_auto = float(jnp.max(jnp.abs(out_auto - ref)))
    if not err_auto < 1e-1:
        raise AssertionError(f"Bilinear auto-dtype mismatch: max abs err = {err_auto}")

    print("KERNEL_OK")
</pallas_src>

<mosaic_0001>
module attributes {stable_mosaic.version = 11 : i64} {
  func.func @_splat_kernel(%arg0: i32, %arg1: i32, %arg2: i32, %arg3: memref<4xi32, #tpu.memory_space<smem>>, %arg4: memref<4xi32, #tpu.memory_space<smem>>, %arg5: memref<4xi32, #tpu.memory_space<smem>>, %arg6: memref<1x512x4xf32, #tpu.memory_space<vmem>>, %arg7: memref<1x512x1xi32, #tpu.memory_space<vmem>>, %arg8: memref<1x4x512xf32, #tpu.memory_space<vmem>>, %arg9: memref<1x4x512xf32, #tpu.memory_space<vmem>>) attributes {dimension_semantics = [#tpu.dimension_semantics<parallel>, #tpu.dimension_semantics<parallel>, #tpu.dimension_semantics<arbitrary>], iteration_bounds = array<i64: 2, 2, 1>, scalar_prefetch = 3 : i64, scratch_operands = 0 : i64, tpu.core_type = #tpu.core_type<tc>, window_params = [{transform_indices = @transform_0, window_bounds = array<i64: 1, 512, 4>}, {transform_indices = @transform_1, window_bounds = array<i64: 1, 512, 1>}, {transform_indices = @transform_2, window_bounds = array<i64: 1, 4, 512>}, {transform_indices = @transform_3, window_bounds = array<i64: 1, 4, 512>}]} {
    %c0_i32 = arith.constant 0 : i32
    %0 = arith.cmpi eq, %arg2, %c0_i32 : i32
    %1 = arith.extui %0 : i1 to i32
    %c0_i32_0 = arith.constant 0 : i32
    %2 = arith.cmpi ne, %1, %c0_i32_0 : i32
    scf.if %2 {
      %cst = arith.constant 0.000000e+00 : f32
      %23 = vector.broadcast %cst : f32 to vector<1x4x512xf32>
      %c0 = arith.constant 0 : index
      %c0_5 = arith.constant 0 : index
      %c0_6 = arith.constant 0 : index
      %24 = vector.load %arg9[%c0, %c0_5, %c0_6] : memref<1x4x512xf32, #tpu.memory_space<vmem>>, vector<1x4x512xf32>
      tpu.vector_store %arg9[%c0, %c0_5, %c0_6], %23 {strides = array<i32>} : memref<1x4x512xf32, #tpu.memory_space<vmem>>, vector<1x4x512xf32>,
    } else {
    }
    %c512_i32 = arith.constant 512 : i32
    %3 = arith.muli %arg1, %c512_i32 : i32
    %c2_i32 = arith.constant 2 : i32
    %4 = arith.muli %arg0, %c2_i32 : i32
    %5 = arith.addi %4, %arg1 : i32
    %6 = arith.index_cast %5 : i32 to index
    %7 = memref.load %arg3[%6] : memref<4xi32, #tpu.memory_space<smem>>
    %8 = arith.addi %7, %arg2 : i32
    %c2_i32_1 = arith.constant 2 : i32
    %9 = arith.muli %arg0, %c2_i32_1 : i32
    %10 = arith.addi %9, %8 : i32
    %11 = arith.index_cast %10 : i32 to index
    %12 = memref.load %arg4[%11] : memref<4xi32, #tpu.memory_space<smem>>
    %c512_i32_2 = arith.constant 512 : i32
    %13 = arith.addi %3, %c512_i32_2 : i32
    %14 = arith.cmpi slt, %12, %13 : i32
    %c2_i32_3 = arith.constant 2 : i32
    %15 = arith.muli %arg0, %c2_i32_3 : i32
    %16 = arith.addi %15, %8 : i32
    %17 = arith.index_cast %16 : i32 to index
    %18 = memref.load %arg5[%17] : memref<4xi32, #tpu.memory_space<smem>>
    %19 = arith.cmpi sge, %18, %3 : i32
    %20 = arith.andi %14, %19 : i1
    %21 = arith.extui %20 : i1 to i32
    %c0_i32_4 = arith.constant 0 : i32
    %22 = arith.cmpi ne, %21, %c0_i32_4 : i32
    scf.if %22 {
      %c0 = arith.constant 0 : index
      %c0_5 = arith.constant 0 : index
      %c0_6 = arith.constant 0 : index
      %23 = vector.load %arg8[%c0, %c0_5, %c0_6] : memref<1x4x512xf32, #tpu.memory_space<vmem>>, vector<1x4x512xf32>
      %24 = vector.shape_cast %23 : vector<1x4x512xf32> to vector<4x512xf32>
      %c0_7 = arith.constant 0 : index
      %c0_8 = arith.constant 0 : index
      %c0_9 = arith.constant 0 : index
      %25 = vector.load %arg6[%c0_7, %c0_8, %c0_9] : memref<1x512x4xf32, #tpu.memory_space<vmem>>, vector<1x512x4xf32>
      %26 = vector.shape_cast %25 : vector<1x512x4xf32> to vector<512x4xf32>
      %c0_10 = arith.constant 0 : index
      %c0_11 = arith.constant 0 : index
      %c0_12 = arith.constant 0 : index
      %27 = vector.load %arg7[%c0_10, %c0_11, %c0_12] : memref<1x512x1xi32, #tpu.memory_space<vmem>>, vector<1x512x1xi32>
      %28 = vector.shape_cast %27 : vector<1x512x1xi32> to vector<512x1xi32>
      %29 = tpu.iota {dimensions = array<i32: 1>} : vector<1x512xi32>
      %30 = vector.broadcast %3 : i32 to vector<1x512xi32>
      %31 = arith.addi %29, %30 : vector<1x512xi32>
      %c0_i32_13 = arith.constant 0 : i32
      %32 = vector.broadcast %c0_i32_13 : i32 to vector<1x512xi32>
      %33 = arith.subi %31, %32 : vector<1x512xi32>
      %34 = vector.broadcast %28 : vector<512x1xi32> to vector<512x512xi32>
      %35 = vector.broadcast %33 : vector<1x512xi32> to vector<512x512xi32>
      %36 = arith.cmpi eq, %34, %35 : vector<512x512xi32>
      %37 = vector.extract_strided_slice %26 {offsets = [0, 0], sizes = [512, 1], strides = [1, 1]} : vector<512x4xf32> to vector<512x1xf32>
      %cst = arith.constant 0.000000e+00 : f32
      %38 = vector.shape_cast %37 : vector<512x1xf32> to vector<512x1xf32>
      %39 = vector.broadcast %38 : vector<512x1xf32> to vector<512x512xf32>
      %40 = vector.broadcast %cst : f32 to vector<512x512xf32>
      %41 = arith.select %36, %39, %40 : vector<512x512xi1>, vector<512x512xf32>
      %c1_i32 = arith.constant 1 : i32
      %42 = vector.broadcast %c1_i32 : i32 to vector<1x512xi32>
      %43 = arith.subi %31, %42 : vector<1x512xi32>
      %44 = vector.broadcast %28 : vector<512x1xi32> to vector<512x512xi32>
      %45 = vector.broadcast %43 : vector<1x512xi32> to vector<512x512xi32>
      %46 = arith.cmpi eq, %44, %45 : vector<512x512xi32>
      %47 = vector.extract_strided_slice %26 {offsets = [0, 1], sizes = [512, 1], strides = [1, 1]} : vector<512x4xf32> to vector<512x1xf32>
      %cst_14 = arith.constant 0.000000e+00 : f32
      %48 = vector.shape_cast %47 : vector<512x1xf32> to vector<512x1xf32>
      %49 = vector.broadcast %48 : vector<512x1xf32> to vector<512x512xf32>
      %50 = vector.broadcast %cst_14 : f32 to vector<512x512xf32>
      %51 = arith.select %46, %49, %50 : vector<512x512xi1>, vector<512x512xf32>
      %52 = arith.addf %41, %51 : vector<512x512xf32>
      %c24_i32 = arith.constant 24 : i32
      %53 = vector.broadcast %c24_i32 : i32 to vector<1x512xi32>
      %54 = arith.subi %31, %53 : vector<1x512xi32>
      %55 = vector.broadcast %28 : vector<512x1xi32> to vector<512x512xi32>
      %56 = vector.broadcast %54 : vector<1x512xi32> to vector<512x512xi32>
      %57 = arith.cmpi eq, %55, %56 : vector<512x512xi32>
      %58 = vector.extract_strided_slice %26 {offsets = [0, 2], sizes = [512, 1], strides = [1, 1]} : vector<512x4xf32> to vector<512x1xf32>
      %cst_15 = arith.constant 0.000000e+00 : f32
      %59 = vector.shape_cast %58 : vector<512x1xf32> to vector<512x1xf32>
      %60 = vector.broadcast %59 : vector<512x1xf32> to vector<512x512xf32>
      %61 = vector.broadcast %cst_15 : f32 to vector<512x512xf32>
      %62 = arith.select %57, %60, %61 : vector<512x512xi1>, vector<512x512xf32>
      %63 = arith.addf %52, %62 : vector<512x512xf32>
      %c25_i32 = arith.constant 25 : i32
      %64 = vector.broadcast %c25_i32 : i32 to vector<1x512xi32>
      %65 = arith.subi %31, %64 : vector<1x512xi32>
      %66 = vector.broadcast %28 : vector<512x1xi32> to vector<512x512xi32>
      %67 = vector.broadcast %65 : vector<1x512xi32> to vector<512x512xi32>
      %68 = arith.cmpi eq, %66, %67 : vector<512x512xi32>
      %69 = vector.extract_strided_slice %26 {offsets = [0, 3], sizes = [512, 1], strides = [1, 1]} : vector<512x4xf32> to vector<512x1xf32>
      %cst_16 = arith.constant 0.000000e+00 : f32
      %70 = vector.shape_cast %69 : vector<512x1xf32> to vector<512x1xf32>
      %71 = vector.broadcast %70 : vector<512x1xf32> to vector<512x512xf32>
      %72 = vector.broadcast %cst_16 : f32 to vector<512x512xf32>
      %73 = arith.select %68, %71, %72 : vector<512x512xi1>, vector<512x512xf32>
      %74 = arith.addf %63, %73 : vector<512x512xf32>
      %c0_17 = arith.constant 0 : index
      %c0_18 = arith.constant 0 : index
      %c0_19 = arith.constant 0 : index
      %75 = vector.load %arg9[%c0_17, %c0_18, %c0_19] : memref<1x4x512xf32, #tpu.memory_space<vmem>>, vector<1x4x512xf32>
      %cst_20 = arith.constant dense<0.000000e+00> : vector<4x512xf32>
      %76 = tpu.matmul %24, %74, %cst_20 {dimension_numbers = #tpu.dot_dimension_numbers<[1], [0], [0], [1], [0, 0, 1, 1], [], []>} : vector<4x512xf32>, vector<512x512xf32>, vector<4x512xf32> -> vector<4x512xf32>
      %77 = vector.shape_cast %76 : vector<4x512xf32> to vector<1x4x512xf32>
      %78 = arith.addf %75, %77 : vector<1x4x512xf32>
      %c0_21 = arith.constant 0 : index
      %c0_22 = arith.constant 0 : index
      %c0_23 = arith.constant 0 : index
      %79 = vector.load %arg9[%c0_21, %c0_22, %c0_23] : memref<1x4x512xf32, #tpu.memory_space<vmem>>, vector<1x4x512xf32>
      tpu.vector_store %arg9[%c0_21, %c0_22, %c0_23], %78 {strides = array<i32>} : memref<1x4x512xf32, #tpu.memory_space<vmem>>, vector<1x4x512xf32>,
    } else {
    }
    return
  }
  func.func @transform_0(%arg0: i32, %arg1: i32, %arg2: i32, %arg3: memref<4xi32, #tpu.memory_space<smem>>, %arg4: memref<4xi32, #tpu.memory_space<smem>>, %arg5: memref<4xi32, #tpu.memory_space<smem>>) -> (i32, i32, i32) {
    %c2_i32 = arith.constant 2 : i32
    %0 = arith.muli %arg0, %c2_i32 : i32
    %1 = arith.addi %0, %arg1 : i32
    %2 = arith.index_cast %1 : i32 to index
    %3 = memref.load %arg3[%2] : memref<4xi32, #tpu.memory_space<smem>>
    %4 = arith.addi %3, %arg2 : i32
    %c0_i32 = arith.constant 0 : i32
    %c0_i32_0 = arith.constant 0 : i32
    return %arg0, %4, %c0_i32 : i32, i32, i32
  }
  func.func @transform_1(%arg0: i32, %arg1: i32, %arg2: i32, %arg3: memref<4xi32, #tpu.memory_space<smem>>, %arg4: memref<4xi32, #tpu.memory_space<smem>>, %arg5: memref<4xi32, #tpu.memory_space<smem>>) -> (i32, i32, i32) {
    %c2_i32 = arith.constant 2 : i32
    %0 = arith.muli %arg0, %c2_i32 : i32
    %1 = arith.addi %0, %arg1 : i32
    %2 = arith.index_cast %1 : i32 to index
    %3 = memref.load %arg3[%2] : memref<4xi32, #tpu.memory_space<smem>>
    %4 = arith.addi %3, %arg2 : i32
    %c0_i32 = arith.constant 0 : i32
    %c0_i32_0 = arith.constant 0 : i32
    return %arg0, %4, %c0_i32 : i32, i32, i32
  }
  func.func @transform_2(%arg0: i32, %arg1: i32, %arg2: i32, %arg3: memref<4xi32, #tpu.memory_space<smem>>, %arg4: memref<4xi32, #tpu.memory_space<smem>>, %arg5: memref<4xi32, #tpu.memory_space<smem>>) -> (i32, i32, i32) {
    %c2_i32 = arith.constant 2 : i32
    %0 = arith.muli %arg0, %c2_i32 : i32
    %1 = arith.addi %0, %arg1 : i32
    %2 = arith.index_cast %1 : i32 to index
    %3 = memref.load %arg3[%2] : memref<4xi32, #tpu.memory_space<smem>>
    %4 = arith.addi %3, %arg2 : i32
    %c0_i32 = arith.constant 0 : i32
    %c0_i32_0 = arith.constant 0 : i32
    return %arg0, %c0_i32, %4 : i32, i32, i32
  }
  func.func @transform_3(%arg0: i32, %arg1: i32, %arg2: i32, %arg3: memref<4xi32, #tpu.memory_space<smem>>, %arg4: memref<4xi32, #tpu.memory_space<smem>>, %arg5: memref<4xi32, #tpu.memory_space<smem>>) -> (i32, i32, i32) {
    %c0_i32 = arith.constant 0 : i32
    %c0_i32_0 = arith.constant 0 : i32
    return %arg0, %c0_i32, %arg1 : i32, i32, i32
  }
}

</mosaic_0001>

<llo_original>
// kernel: tpu_custom_call.1
$region0: #{tpu_custom_call.1}
  #allocation0 [shape = 'u32[]', space=smem, size = 0x4, offset = 0x4, fixed_abs, tag = 'smem constant byte address 0x4 - core index']
  #allocation1 [shape = 'u32[144,128]{1,0:T(1,128)}', space=vmem, size = 0x12000, scoped, tag = 'internal scratch']
  #allocation2 [shape = 's32[1]{0}', space=sflag, size = 0x4, scoped, tag = 'scoped memory for tpu_custom_call.1']
  #allocation3 [shape = 'u8[512]{0}', space=smem, size = 0x200, scoped, tag = 'prefetched SMEM operand 0']
  #allocation4 [shape = 'u8[512]{0}', space=smem, size = 0x200, scoped, tag = 'prefetched SMEM operand 1']
  #allocation5 [shape = 'u8[512]{0}', space=smem, size = 0x200, scoped, tag = 'prefetched SMEM operand 2']
  %s0 = inlined_call_operand.vmem [shape: s32[4], index: 0, kind: input, shape index: {}]
  %s1 = inlined_call_operand.vmem [shape: s32[4], index: 1, kind: input, shape index: {}]
  %s2 = inlined_call_operand.vmem [shape: s32[4], index: 2, kind: input, shape index: {}]
  %s3 = inlined_call_operand.vmem [shape: f32[2,1024,4], index: 3, kind: input, shape index: {}]
  %s4 = inlined_call_operand.vmem [shape: s32[2,1024,1], index: 4, kind: input, shape index: {}]
  %s5 = inlined_call_operand.vmem [shape: f32[2,4,1024], index: 5, kind: input, shape index: {}]
  %s6 = inlined_call_operand.hbm [shape: f32[2,4,1024], index: 6, kind: output, shape index: {}]
  %s7 = sld [smem:[#allocation0]]
  $region53: #{tpu_custom_call.1} parent=0
    _
  %s9 = ssub.s32 1, %s7
  %s10 = scalar_select 0, %s9, %s7
  %s11 = sshll.u32 %s0, 4
  %s12 = int_to_ptr.vmem [resolvable:$true] %s11
  %14 = dma.vmem_to_smem %s12, 16, [#allocation3], [#allocation2]
  %s15 = sshll.u32 %s1, 4
  %s16 = int_to_ptr.vmem [resolvable:$true] %s15
  %18 = dma.vmem_to_smem %s16, 16, [#allocation4], [#allocation2]
  %s19 = sshll.u32 %s2, 4
  %s20 = int_to_ptr.vmem [resolvable:$true] %s19
  %22 = dma.vmem_to_smem %s20, 16, [#allocation5], [#allocation2]
  %23 = dma.done [#allocation2], 48
  %24 = sfence
  $region1: #{tpu_custom_call.1} parent=0
    #allocation6 [shape = 'u8[16384]{0}', space=vmem, size = 0x4000, scoped, tag = 'output window, operand 0']
    #allocation7 [shape = 's32[2]{0}', space=sflag, size = 0x8, scoped, tag = 'scoped memory for tpu_custom_call.1']
    %25 = vsyncpa [#allocation7], 0
    %s26 = scalar_lea.sflag [#allocation7], 1
    %27 = vsyncpa %s26, 0
    loop: start=0, step=1, limit=6
    $region2: #{tpu_custom_call.1} parent=1 // loop_pre_header
      _
    $region3: #{tpu_custom_call.1} parent=1 // loop_header
      %s29 = sphi 0, %s33
      %p30 = scmp.ge.s32.totalorder %s29, 6
      %s36 = sphi 0, %s55
      %s37 = sphi 0, %s51
      %s38 = sphi 0, %s47
      %s39 = sphi 0, %s36
      %s40 = sphi 0, %s37
      %s41 = sphi 0, %s38
      %s42 = sphi 0, %s39
      %s43 = sphi 0, %s40
      %s44 = sphi 0, %s41
      %s68 = sphi 0, %s70
      %s71 = sphi 0, %s68
      %s72 = sphi 0, %s71
      %s88 = sphi 0, %s72
      %s104 = sphi 0, %s106
      %s107 = sphi 0, %s104
      %s108 = sphi 0, %s107
      %s124 = sphi 0, %s108
      %s140 = sphi 0, %s142
      %s143 = sphi 0, %s140
      %s144 = sphi 0, %s143
      %s160 = sphi 0, %s144
      %s168 = sphi 0, %s170
      %s171 = sphi 0, %s168
      %s172 = sphi 0, %s171
      %s188 = sphi 0, %s172
    $region4: #{tpu_custom_call.1} parent=1 // loop_header_branch
      %32 = sbr.rel (%p30) target = $region8
    $region5: #{tpu_custom_call.1} parent=1 // loop_body
      %s34 = ssub.s32 %s29, 1
      %s35 = ssub.s32 %s29, 2
      %s45 = sadd.s32 1, %s38
      %p46 = scmp.ge.s32.totalorder %s45, 1
      %s47 = scalar_select %p46, 0, %s45
      %s48 = sadd.s32 1, %s37
      %s49 = scalar_select %p46, %s48, %s37
      %p50 = scmp.ge.s32.totalorder %s49, 2
      %s51 = scalar_select %p50, 0, %s49
      %s52 = sadd.s32 1, %s36
      %s53 = scalar_select %p50, %s52, %s36
      %p54 = scmp.ge.s32.totalorder %s53, 2
      %s55 = scalar_select %p54, 0, %s53
      %s56 = smul.u32 %s36, 2
      %s57 = sadd.s32 %s56, %s37
      %s58 = sld [smem:[#allocation3 + %s57]]
      %s59 = sadd.s32 %s58, %s38
      %s60 = smul.u32 %s55, 2
      %s61 = sadd.s32 %s60, %s51
      %s62 = sld [smem:[#allocation3 + %s61]]
      %s63 = sadd.s32 %s62, %s47
      %s64 = ssub.s32 %s36, %s55
      %s65 = ssub.s32 %s59, %s63
      %s66 = sor.u32 %s64, %s65
      %p67 = scmp.eq.s32.totalorder %s66, 0
      %s69 = sadd.s32 %s68, 1
      %s70 = scalar_select %p67, %s68, %s69
      %p73 = pneg %p67
      %p74 = scmp.eq.s32.totalorder %s29, 3
      %p75 = por %p73, %p74
      %p76 = scmp.ne.s32.totalorder %s68, %s71
      %p77 = scmp.eq.s32.totalorder %s29, 0
      %p78 = por %p76, %p77
      %p79 = scmp.ne.s32.totalorder %s68, %s71
      %p80 = scmp.eq.s32.totalorder %s34, 3
      %p81 = por %p79, %p80
      %p82 = scmp.ne.s32.totalorder %s71, %s72
      %p83 = scmp.eq.s32.totalorder %s34, 0
      %p84 = por %p82, %p83
      %p85 = scmp.ne.s32.totalorder %s71, %s72
      %p86 = scmp.eq.s32.totalorder %s35, 3
      %p87 = por %p85, %p86
      %p89 = scmp.ne.s32.totalorder %s72, %s88
      %p90 = scmp.eq.s32.totalorder %s35, 0
      %p91 = por %p89, %p90
      %s92 = smul.u32 %s36, 2
      %s93 = sadd.s32 %s92, %s37
      %s94 = sld [smem:[#allocation3 + %s93]]
      %s95 = sadd.s32 %s94, %s38
      %s96 = smul.u32 %s55, 2
      %s97 = sadd.s32 %s96, %s51
      %s98 = sld [smem:[#allocation3 + %s97]]
      %s99 = sadd.s32 %s98, %s47
      %s100 = ssub.s32 %s36, %s55
      %s101 = ssub.s32 %s95, %s99
      %s102 = sor.u32 %s100, %s101
      %p103 = scmp.eq.s32.totalorder %s102, 0
      %s105 = sadd.s32 %s104, 1
      %s106 = scalar_select %p103, %s104, %s105
      %p109 = pneg %p103
      %p110 = scmp.eq.s32.totalorder %s29, 3
      %p111 = por %p109, %p110
      %p112 = scmp.ne.s32.totalorder %s104, %s107
      %p113 = scmp.eq.s32.totalorder %s29, 0
      %p114 = por %p112, %p113
      %p115 = scmp.ne.s32.totalorder %s104, %s107
      %p116 = scmp.eq.s32.totalorder %s34, 3
      %p117 = por %p115, %p116
      %p118 = scmp.ne.s32.totalorder %s107, %s108
      %p119 = scmp.eq.s32.totalorder %s34, 0
      %p120 = por %p118, %p119
      %p121 = scmp.ne.s32.totalorder %s107, %s108
      %p122 = scmp.eq.s32.totalorder %s35, 3
      %p123 = por %p121, %p122
      %p125 = scmp.ne.s32.totalorder %s108, %s124
      %p126 = scmp.eq.s32.totalorder %s35, 0
      %p127 = por %p125, %p126
      %s128 = smul.u32 %s36, 2
      %s129 = sadd.s32 %s128, %s37
      %s130 = sld [smem:[#allocation3 + %s129]]
      %s131 = sadd.s32 %s130, %s38
      %s132 = smul.u32 %s55, 2
      %s133 = sadd.s32 %s132, %s51
      %s134 = sld [smem:[#allocation3 + %s133]]
      %s135 = sadd.s32 %s134, %s47
      %s136 = ssub.s32 %s36, %s55
      %s137 = ssub.s32 %s131, %s135
      %s138 = sor.u32 %s136, %s137
      %p139 = scmp.eq.s32.totalorder %s138, 0
      %s141 = sadd.s32 %s140, 1
      %s142 = scalar_select %p139, %s140, %s141
      %p145 = pneg %p139
      %p146 = scmp.eq.s32.totalorder %s29, 3
      %p147 = por %p145, %p146
      %p148 = scmp.ne.s32.totalorder %s140, %s143
      %p149 = scmp.eq.s32.totalorder %s29, 0
      %p150 = por %p148, %p149
      %p151 = scmp.ne.s32.totalorder %s140, %s143
      %p152 = scmp.eq.s32.totalorder %s34, 3
      %p153 = por %p151, %p152
      %p154 = scmp.ne.s32.totalorder %s143, %s144
      %p155 = scmp.eq.s32.totalorder %s34, 0
      %p156 = por %p154, %p155
      %p157 = scmp.ne.s32.totalorder %s143, %s144
      %p158 = scmp.eq.s32.totalorder %s35, 3
      %p159 = por %p157, %p158
      %p161 = scmp.ne.s32.totalorder %s144, %s160
      %p162 = scmp.eq.s32.totalorder %s35, 0
      %p163 = por %p161, %p162
      %s164 = ssub.s32 %s36, %s55
      %s165 = ssub.s32 %s37, %s51
      %s166 = sor.u32 %s164, %s165
      %p167 = scmp.eq.s32.totalorder %s166, 0
      %s169 = sadd.s32 %s168, 1
      %s170 = scalar_select %p167, %s168, %s169
      %p173 = pneg %p167
      %p174 = scmp.eq.s32.totalorder %s29, 3
      %p175 = por %p173, %p174
      %p176 = scmp.ne.s32.totalorder %s168, %s171
      %p177 = scmp.eq.s32.totalorder %s29, 0
      %p178 = por %p176, %p177
      %p179 = scmp.ne.s32.totalorder %s168, %s171
      %p180 = scmp.eq.s32.totalorder %s34, 3
      %p181 = por %p179, %p180
      %p182 = scmp.ne.s32.totalorder %s171, %s172
      %p183 = scmp.eq.s32.totalorder %s34, 0
      %p184 = por %p182, %p183
      %p185 = scmp.ne.s32.totalorder %s171, %s172
      %p186 = scmp.eq.s32.totalorder %s35, 3
      %p187 = por %p185, %p186
      %p189 = scmp.ne.s32.totalorder %s172, %s188
      %p190 = scmp.eq.s32.totalorder %s35, 0
      %p191 = por %p189, %p190
      %p192 = scmp.le.s32.totalorder 1, %s29
      %p193 = scmp.lt.s32.totalorder %s29, 5
      %p194 = pnand %p192, %p193
      %p195 = pneg %p194
      // Predicated region
      $region9: #{tpu_custom_call.1} parent=5 // pred_check
        _
      $region10: #{tpu_custom_call.1} parent=5 // pred_check_branch
        %197 = sbr.rel (%p194) target = $region12
      $region11: #{tpu_custom_call.1} parent=5 // pred_region
        %s198 = ssub.s32 %s29, 1
      $region12: #{tpu_custom_call.1} parent=5 // pred_fallthru
        _
      %p199 = scmp.lt.s32.totalorder %s29, 4
      // Predicated region
      $region13: #{tpu_custom_call.1} parent=5 // pred_check
        %p200 = pneg %p199
      $region14: #{tpu_custom_call.1} parent=5 // pred_check_branch
        %202 = sbr.rel (%p200) target = $region16
      $region15: #{tpu_custom_call.1} parent=5 // pred_region
        // Predicated region
        $region17: #{tpu_custom_call.1} parent=15 // pred_check
          %p203 = pneg %p78
        $region18: #{tpu_custom_call.1} parent=15 // pred_check_branch
          %205 = sbr.rel (%p203) target = $region20
        $region19: #{tpu_custom_call.1} parent=15 // pred_region
          %s206 = smul.u32 %s36, 2
          %s207 = sadd.s32 %s206, %s37
          %s208 = sld [smem:[#allocation3 + %s207]]
          %s209 = sadd.s32 %s208, %s38
          %s210 = smul.u32 64, %s209
          %p211 = scmp.lt.s32.totalorder %s36, 1
          %s212 = scalar_select %p211, %s36, 1
          %p213 = scmp.lt.s32.totalorder %s210, 127
          %s214 = scalar_select %p213, %s210, 127
          %s215 = smul.addr %s212, 128
          %s216 = sadd.s32 %s214, %s215
          %s217 = smul.addr %s216, 8
          %s218 = scalar_lea.vmem %s3, %s217
          %s219 = smul.u32 %s36, 2
          %s220 = sadd.s32 %s219, %s37
          %s221 = sld [smem:[#allocation3 + %s220]]
          %s222 = sadd.s32 %s221, %s38
          %s223 = smul.u32 64, %s222
        $region20: #{tpu_custom_call.1} parent=15 // pred_fallthru
          _
        // Predicated region
        $region21: #{tpu_custom_call.1} parent=15 // pred_check
          %p224 = pneg %p114
        $region22: #{tpu_custom_call.1} parent=15 // pred_check_branch
          %226 = sbr.rel (%p224) target = $region24
        $region23: #{tpu_custom_call.1} parent=15 // pred_region
          %s227 = smul.u32 %s36, 2
          %s228 = sadd.s32 %s227, %s37
          %s229 = sld [smem:[#allocation3 + %s228]]
          %s230 = sadd.s32 %s229, %s38
          %s231 = smul.u32 64, %s230
          %p232 = scmp.lt.s32.totalorder %s36, 1
          %s233 = scalar_select %p232, %s36, 1
          %p234 = scmp.lt.s32.totalorder %s231, 127
          %s235 = scalar_select %p234, %s231, 127
          %s236 = smul.addr %s233, 128
          %s237 = sadd.s32 %s235, %s236
          %s238 = smul.addr %s237, 8
          %s239 = scalar_lea.vmem %s4, %s238
          %s240 = smul.u32 %s36, 2
          %s241 = sadd.s32 %s240, %s37
          %s242 = sld [smem:[#allocation3 + %s241]]
          %s243 = sadd.s32 %s242, %s38
          %s244 = smul.u32 64, %s243
        $region24: #{tpu_custom_call.1} parent=15 // pred_fallthru
          _
        // Predicated region
        $region25: #{tpu_custom_call.1} parent=15 // pred_check
          %p245 = pneg %p150
        $region26: #{tpu_custom_call.1} parent=15 // pred_check_branch
          %247 = sbr.rel (%p245) target = $region28
        $region27: #{tpu_custom_call.1} parent=15 // pred_region
          %s248 = smul.u32 %s36, 2
          %s249 = sadd.s32 %s248, %s37
          %s250 = sld [smem:[#allocation3 + %s249]]
          %s251 = sadd.s32 %s250, %s38
          %s252 = smul.u32 4, %s251
          %p253 = scmp.lt.s32.totalorder %s36, 1
          %s254 = scalar_select %p253, %s36, 1
          %p255 = scmp.lt.s32.totalorder %s252, 7
          %s256 = scalar_select %p255, %s252, 7
          %s257 = smul.addr %s254, 8
          %s258 = sadd.s32 %s256, %s257
          %s259 = smul.addr %s258, 4
          %s260 = scalar_lea.vmem %s5, %s259
          %s261 = smul.u32 %s36, 2
          %s262 = sadd.s32 %s261, %s37
          %s263 = sld [smem:[#allocation3 + %s262]]
          %s264 = sadd.s32 %s263, %s38
          %s265 = smul.u32 4, %s264
        $region28: #{tpu_custom_call.1} parent=15 // pred_fallthru
          _
      $region16: #{tpu_custom_call.1} parent=5 // pred_fallthru
        _
      %p266 = scmp.le.s32.totalorder 1, %s29
      %p267 = scmp.lt.s32.totalorder %s29, 5
      %p268 = pnand %p266, %p267
      %p269 = pneg %p268
      // Predicated region
      $region29: #{tpu_custom_call.1} parent=5 // pred_check
        _
      $region30: #{tpu_custom_call.1} parent=5 // pred_check_branch
        %271 = sbr.rel (%p268) target = $region32
      $region31: #{tpu_custom_call.1} parent=5 // pred_region
        %s272 = ssub.s32 %s29, 1
        %s273 = smul.u32 %s39, 2
        %s274 = sadd.s32 %s273, %s40
        %s275 = sld [smem:[#allocation3 + %s274]]
        %s276 = sadd.s32 %s275, %s41
        %s277 = smul.u32 64, %s276
        %p278 = scmp.lt.s32.totalorder %s39, 1
        %s279 = scalar_select %p278, %s39, 1
        %p280 = scmp.lt.s32.totalorder %s277, 127
        %s281 = scalar_select %p280, %s277, 127
        %s282 = smul.addr %s279, 128
        %s283 = sadd.s32 %s281, %s282
        %s284 = smul.addr %s283, 8
        %s285 = scalar_lea.vmem %s3, %s284
        %p286 = pneg %p84
        %p287 = pneg %p81
        %s288 = smul.u32 %s39, 2
        %s289 = sadd.s32 %s288, %s40
        %s290 = sld [smem:[#allocation3 + %s289]]
        %s291 = sadd.s32 %s290, %s41
        %s292 = smul.u32 64, %s291
        %p293 = scmp.lt.s32.totalorder %s39, 1
        %s294 = scalar_select %p293, %s39, 1
        %p295 = scmp.lt.s32.totalorder %s292, 127
        %s296 = scalar_select %p295, %s292, 127
        %s297 = smul.addr %s294, 128
        %s298 = sadd.s32 %s296, %s297
        %s299 = smul.addr %s298, 8
        %s300 = scalar_lea.vmem %s4, %s299
        %p301 = pneg %p120
        %p302 = pneg %p117
        %s303 = smul.u32 %s39, 2
        %s304 = sadd.s32 %s303, %s40
        %s305 = sld [smem:[#allocation3 + %s304]]
        %s306 = sadd.s32 %s305, %s41
        %s307 = smul.u32 4, %s306
        %p308 = scmp.lt.s32.totalorder %s39, 1
        %s309 = scalar_select %p308, %s39, 1
        %p310 = scmp.lt.s32.totalorder %s307, 7
        %s311 = scalar_select %p310, %s307, 7
        %s312 = smul.addr %s309, 8
        %s313 = sadd.s32 %s311, %s312
        %s314 = smul.addr %s313, 4
        %s315 = scalar_lea.vmem %s5, %s314
        %p316 = pneg %p156
        %p317 = pneg %p153
        %p318 = pneg %p184
        %p319 = pneg %p181
        %s320 = sand.u32 %s171, 1
        %s321 = scalar_lea.sflag [#allocation7], %s320
        %s322 = sand.u32 %s171, 1
        %s323 = smul.addr %s322, 16
        %s324 = scalar_lea.vmem [#allocation6], %s323
        %s325 = smul.u32 %s39, 2
        %s326 = sadd.s32 %s325, %s40
        %s327 = sld [smem:[#allocation3 + %s326]]
        %s328 = sadd.s32 %s327, %s41
        %s329 = smul.u32 64, %s328
        %p330 = scmp.lt.s32.totalorder %s39, 1
        %s331 = scalar_select %p330, %s39, 1
        %p332 = scmp.lt.s32.totalorder %s329, 127
        %s333 = scalar_select %p332, %s329, 127
        %s334 = smul.addr %s331, 128
        %s335 = sadd.s32 %s333, %s334
        %s336 = smul.addr %s335, 8
        %s337 = scalar_lea.vmem %s3, %s336
        %s338 = smul.u32 %s39, 2
        %s339 = sadd.s32 %s338, %s40
        %s340 = sld [smem:[#allocation3 + %s339]]
        %s341 = sadd.s32 %s340, %s41
        %s342 = smul.u32 64, %s341
        %s343 = smul.u32 %s39, 2
        %s344 = sadd.s32 %s343, %s40
        %s345 = sld [smem:[#allocation3 + %s344]]
        %s346 = sadd.s32 %s345, %s41
        %s347 = smul.u32 64, %s346
        %p348 = scmp.lt.s32.totalorder %s39, 1
        %s349 = scalar_select %p348, %s39, 1
        %p350 = scmp.lt.s32.totalorder %s347, 127
        %s351 = scalar_select %p350, %s347, 127
        %s352 = smul.addr %s349, 128
        %s353 = sadd.s32 %s351, %s352
        %s354 = smul.addr %s353, 8
        %s355 = scalar_lea.vmem %s4, %s354
        %s356 = smul.u32 %s39, 2
        %s357 = sadd.s32 %s356, %s40
        %s358 = sld [smem:[#allocation3 + %s357]]
        %s359 = sadd.s32 %s358, %s41
        %s360 = smul.u32 64, %s359
        %s361 = smul.u32 %s39, 2
        %s362 = sadd.s32 %s361, %s40
        %s363 = sld [smem:[#allocation3 + %s362]]
        %s364 = sadd.s32 %s363, %s41
        %s365 = smul.u32 4, %s364
        %p366 = scmp.lt.s32.totalorder %s39, 1
        %s367 = scalar_select %p366, %s39, 1
        %p368 = scmp.lt.s32.totalorder %s365, 7
        %s369 = scalar_select %p368, %s365, 7
        %s370 = smul.addr %s367, 8
        %s371 = sadd.s32 %s369, %s370
        %s372 = smul.addr %s371, 4
        %s373 = scalar_lea.vmem %s5, %s372
        %s374 = smul.u32 %s39, 2
        %s375 = sadd.s32 %s374, %s40
        %s376 = sld [smem:[#allocation3 + %s375]]
        %s377 = sadd.s32 %s376, %s41
        %s378 = smul.u32 4, %s377
        %s379 = smul.u32 4, %s40
        %p380 = scmp.eq.s32.totalorder %s41, 0
        // Predicated region
        $region33: #{tpu_custom_call.1} parent=31 // pred_check
          %p381 = pneg %p380
        $region34: #{tpu_custom_call.1} parent=31 // pred_check_branch
          %383 = sbr.rel (%p381) target = $region36
        $region35: #{tpu_custom_call.1} parent=31 // pred_region
          %384 = vst [vmem:[%s324] sm:$0xff] 0.0
          %385 = vst [vmem:[%s324 + $0x8] sm:$0xff] 0.0
        $region36: #{tpu_custom_call.1} parent=31 // pred_fallthru
          _
        %s386 = smul.u32 %s40, 512
        %s387 = smul.u32 %s39, 2
        %s388 = sadd.s32 %s387, %s40
        %s389 = sld [smem:[#allocation3 + %s388]]
        %s390 = sadd.s32 %s389, %s41
        %s391 = sadd.s32 %s387, %s390
        %s392 = sld [smem:[#allocation4 + %s391]]
        %s393 = sadd.s32 %s386, 512
        %p394 = scmp.lt.s32.totalorder %s392, %s393
        %s395 = sld [smem:[#allocation5 + %s391]]
        %p396 = scmp.ge.s32.totalorder %s395, %s386
        %p397 = pnand %p394, %p396
        %p398 = pneg %p397
        // Predicated region
        $region37: #{tpu_custom_call.1} parent=31 // pred_check
          _
        $region38: #{tpu_custom_call.1} parent=31 // pred_check_branch
          %400 = sbr.rel (%p397) target = $region40
        $region39: #{tpu_custom_call.1} parent=31 // pred_region
          %v401 = vld [vmem:[%s373] sm:$0xff]
          %v402 = vld [vmem:[%s373 + $0x8] sm:$0xff]
          %v403 = vld [vmem:[%s337] sm:$0xff]
          %v404 = vld [vmem:[%s337 + $0x8] sm:$0xff]
          %v405 = vld [vmem:[%s337 + $0x10] sm:$0xff]
          %v406 = vld [vmem:[%s337 + $0x18] sm:$0xff]
          %v407 = vld [vmem:[%s337 + $0x20] sm:$0xff]
          %v408 = vld [vmem:[%s337 + $0x28] sm:$0xff]
          %v409 = vld [vmem:[%s337 + $0x30] sm:$0xff]
          %v410 = vld [vmem:[%s337 + $0x38] sm:$0xff]
          %v411 = vld [vmem:[%s337 + $0x40] sm:$0xff]
          %v412 = vld [vmem:[%s337 + $0x48] sm:$0xff]
          %v413 = vld [vmem:[%s337 + $0x50] sm:$0xff]
          %v414 = vld [vmem:[%s337 + $0x58] sm:$0xff]
          %v415 = vld [vmem:[%s337 + $0x60] sm:$0xff]
          %v416 = vld [vmem:[%s337 + $0x68] sm:$0xff]
          %v417 = vld [vmem:[%s337 + $0x70] sm:$0xff]
          %v418 = vld [vmem:[%s337 + $0x78] sm:$0xff]
          %v419 = vld [vmem:[%s337 + $0x80] sm:$0xff]
          %v420 = vld [vmem:[%s337 + $0x88] sm:$0xff]
          %v421 = vld [vmem:[%s337 + $0x90] sm:$0xff]
          %v422 = vld [vmem:[%s337 + $0x98] sm:$0xff]
          %v423 = vld [vmem:[%s337 + $0xa0] sm:$0xff]
          %v424 = vld [vmem:[%s337 + $0xa8] sm:$0xff]
          %v425 = vld [vmem:[%s337 + $0xb0] sm:$0xff]
          %v426 = vld [vmem:[%s337 + $0xb8] sm:$0xff]
          %v427 = vld [vmem:[%s337 + $0xc0] sm:$0xff]
          %v428 = vld [vmem:[%s337 + $0xc8] sm:$0xff]
          %v429 = vld [vmem:[%s337 + $0xd0] sm:$0xff]
          %v430 = vld [vmem:[%s337 + $0xd8] sm:$0xff]
          %v431 = vld [vmem:[%s337 + $0xe0] sm:$0xff]
          %v432 = vld [vmem:[%s337 + $0xe8] sm:$0xff]
          %v433 = vld [vmem:[%s337 + $0xf0] sm:$0xff]
          %v434 = vld [vmem:[%s337 + $0xf8] sm:$0xff]
          %v435 = vld [vmem:[%s337 + $0x100] sm:$0xff]
          %v436 = vld [vmem:[%s337 + $0x108] sm:$0xff]
          %v437 = vld [vmem:[%s337 + $0x110] sm:$0xff]
          %v438 = vld [vmem:[%s337 + $0x118] sm:$0xff]
          %v439 = vld [vmem:[%s337 + $0x120] sm:$0xff]
          %v440 = vld [vmem:[%s337 + $0x128] sm:$0xff]
          %v441 = vld [vmem:[%s337 + $0x130] sm:$0xff]
          %v442 = vld [vmem:[%s337 + $0x138] sm:$0xff]
          %v443 = vld [vmem:[%s337 + $0x140] sm:$0xff]
          %v444 = vld [vmem:[%s337 + $0x148] sm:$0xff]
          %v445 = vld [vmem:[%s337 + $0x150] sm:$0xff]
          %v446 = vld [vmem:[%s337 + $0x158] sm:$0xff]
          %v447 = vld [vmem:[%s337 + $0x160] sm:$0xff]
          %v448 = vld [vmem:[%s337 + $0x168] sm:$0xff]
          %v449 = vld [vmem:[%s337 + $0x170] sm:$0xff]
          %v450 = vld [vmem:[%s337 + $0x178] sm:$0xff]
          %v451 = vld [vmem:[%s337 + $0x180] sm:$0xff]
          %v452 = vld [vmem:[%s337 + $0x188] sm:$0xff]
          %v453 = vld [vmem:[%s337 + $0x190] sm:$0xff]
          %v454 = vld [vmem:[%s337 + $0x198] sm:$0xff]
          %v455 = vld [vmem:[%s337 + $0x1a0] sm:$0xff]
          %v456 = vld [vmem:[%s337 + $0x1a8] sm:$0xff]
          %v457 = vld [vmem:[%s337 + $0x1b0] sm:$0xff]
          %v458 = vld [vmem:[%s337 + $0x1b8] sm:$0xff]
          %v459 = vld [vmem:[%s337 + $0x1c0] sm:$0xff]
          %v460 = vld [vmem:[%s337 + $0x1c8] sm:$0xff]
          %v461 = vld [vmem:[%s337 + $0x1d0] sm:$0xff]
          %v462 = vld [vmem:[%s337 + $0x1d8] sm:$0xff]
          %v463 = vld [vmem:[%s337 + $0x1e0] sm:$0xff]
          %v464 = vld [vmem:[%s337 + $0x1e8] sm:$0xff]
          %v465 = vld [vmem:[%s337 + $0x1f0] sm:$0xff]
          %v466 = vld [vmem:[%s337 + $0x1f8] sm:$0xff]
          %v467 = vld [vmem:[%s355] sm:$0xff]
          %v468 = vld [vmem:[%s355 + $0x8] sm:$0xff]
          %v469 = vld [vmem:[%s355 + $0x10] sm:$0xff]
          %v470 = vld [vmem:[%s355 + $0x18] sm:$0xff]
          %v471 = vld [vmem:[%s355 + $0x20] sm:$0xff]
          %v472 = vld [vmem:[%s355 + $0x28] sm:$0xff]
          %v473 = vld [vmem:[%s355 + $0x30] sm:$0xff]
          %v474 = vld [vmem:[%s355 + $0x38] sm:$0xff]
          %v475 = vld [vmem:[%s355 + $0x40] sm:$0xff]
          %v476 = vld [vmem:[%s355 + $0x48] sm:$0xff]
          %v477 = vld [vmem:[%s355 + $0x50] sm:$0xff]
          %v478 = vld [vmem:[%s355 + $0x58] sm:$0xff]
          %v479 = vld [vmem:[%s355 + $0x60] sm:$0xff]
          %v480 = vld [vmem:[%s355 + $0x68] sm:$0xff]
          %v481 = vld [vmem:[%s355 + $0x70] sm:$0xff]
          %v482 = vld [vmem:[%s355 + $0x78] sm:$0xff]
          %v483 = vld [vmem:[%s355 + $0x80] sm:$0xff]
          %v484 = vld [vmem:[%s355 + $0x88] sm:$0xff]
          %v485 = vld [vmem:[%s355 + $0x90] sm:$0xff]
          %v486 = vld [vmem:[%s355 + $0x98] sm:$0xff]
          %v487 = vld [vmem:[%s355 + $0xa0] sm:$0xff]
          %v488 = vld [vmem:[%s355 + $0xa8] sm:$0xff]
          %v489 = vld [vmem:[%s355 + $0xb0] sm:$0xff]
          %v490 = vld [vmem:[%s355 + $0xb8] sm:$0xff]
          %v491 = vld [vmem:[%s355 + $0xc0] sm:$0xff]
          %v492 = vld [vmem:[%s355 + $0xc8] sm:$0xff]
          %v493 = vld [vmem:[%s355 + $0xd0] sm:$0xff]
          %v494 = vld [vmem:[%s355 + $0xd8] sm:$0xff]
          %v495 = vld [vmem:[%s355 + $0xe0] sm:$0xff]
          %v496 = vld [vmem:[%s355 + $0xe8] sm:$0xff]
          %v497 = vld [vmem:[%s355 + $0xf0] sm:$0xff]
          %v498 = vld [vmem:[%s355 + $0xf8] sm:$0xff]
          %v499 = vld [vmem:[%s355 + $0x100] sm:$0xff]
          %v500 = vld [vmem:[%s355 + $0x108] sm:$0xff]
          %v501 = vld [vmem:[%s355 + $0x110] sm:$0xff]
          %v502 = vld [vmem:[%s355 + $0x118] sm:$0xff]
          %v503 = vld [vmem:[%s355 + $0x120] sm:$0xff]
          %v504 = vld [vmem:[%s355 + $0x128] sm:$0xff]
          %v505 = vld [vmem:[%s355 + $0x130] sm:$0xff]
          %v506 = vld [vmem:[%s355 + $0x138] sm:$0xff]
          %v507 = vld [vmem:[%s355 + $0x140] sm:$0xff]
          %v508 = vld [vmem:[%s355 + $0x148] sm:$0xff]
          %v509 = vld [vmem:[%s355 + $0x150] sm:$0xff]
          %v510 = vld [vmem:[%s355 + $0x158] sm:$0xff]
          %v511 = vld [vmem:[%s355 + $0x160] sm:$0xff]
          %v512 = vld [vmem:[%s355 + $0x168] sm:$0xff]
          %v513 = vld [vmem:[%s355 + $0x170] sm:$0xff]
          %v514 = vld [vmem:[%s355 + $0x178] sm:$0xff]
          %v515 = vld [vmem:[%s355 + $0x180] sm:$0xff]
          %v516 = vld [vmem:[%s355 + $0x188] sm:$0xff]
          %v517 = vld [vmem:[%s355 + $0x190] sm:$0xff]
          %v518 = vld [vmem:[%s355 + $0x198] sm:$0xff]
          %v519 = vld [vmem:[%s355 + $0x1a0] sm:$0xff]
          %v520 = vld [vmem:[%s355 + $0x1a8] sm:$0xff]
          %v521 = vld [vmem:[%s355 + $0x1b0] sm:$0xff]
          %v522 = vld [vmem:[%s355 + $0x1b8] sm:$0xff]
          %v523 = vld [vmem:[%s355 + $0x1c0] sm:$0xff]
          %v524 = vld [vmem:[%s355 + $0x1c8] sm:$0xff]
          %v525 = vld [vmem:[%s355 + $0x1d0] sm:$0xff]
          %v526 = vld [vmem:[%s355 + $0x1d8] sm:$0xff]
          %v527 = vld [vmem:[%s355 + $0x1e0] sm:$0xff]
          %v528 = vld [vmem:[%s355 + $0x1e8] sm:$0xff]
          %v529 = vld [vmem:[%s355 + $0x1f0] sm:$0xff]
          %v530 = vld [vmem:[%s355 + $0x1f8] sm:$0xff]
          %v531 = vlaneseq
          %v532 = vand.u32 %v531, 127
          %v533 = vadd.s32 %v532, 128
          %v534 = vadd.s32 %v532, 256
          %v535 = vadd.s32 %v532, 384
          %v536 = vstv %s386
          %v537 = vadd.s32 %v532, %v536
          %v538 = vadd.s32 %v533, %v536
          %v539 = vadd.s32 %v534, %v536
          %v540 = vadd.s32 %v535, %v536
          %541 = vset.pattern.permute.xlu0 0
          %542 = vperm.xlu0 %541, %v467
          %v543 = vpop.permute.xlu0 %542
          %544 = vset.pattern.permute.xlu0 0
          %545 = vperm.xlu0 %544, %v468
          %v546 = vpop.permute.xlu0 %545
          %547 = vset.pattern.permute.xlu0 0
          %548 = vperm.xlu0 %547, %v469
          %v549 = vpop.permute.xlu0 %548
          %550 = vset.pattern.permute.xlu0 0
          %551 = vperm.xlu0 %550, %v470
          %v552 = vpop.permute.xlu0 %551
          %553 = vset.pattern.permute.xlu0 0
          %554 = vperm.xlu0 %553, %v471
          %v555 = vpop.permute.xlu0 %554
          %556 = vset.pattern.permute.xlu0 0
          %557 = vperm.xlu0 %556, %v472
          %v558 = vpop.permute.xlu0 %557
          %559 = vset.pattern.permute.xlu0 0
          %560 = vperm.xlu0 %559, %v473
          %v561 = vpop.permute.xlu0 %560
          %562 = vset.pattern.permute.xlu0 0
          %563 = vperm.xlu0 %562, %v474
          %v564 = vpop.permute.xlu0 %563
          %565 = vset.pattern.permute.xlu0 0
          %566 = vperm.xlu0 %565, %v475
          %v567 = vpop.permute.xlu0 %566
          %568 = vset.pattern.permute.xlu0 0
          %569 = vperm.xlu0 %568, %v476
          %v570 = vpop.permute.xlu0 %569
          %571 = vset.pattern.permute.xlu0 0
          %572 = vperm.xlu0 %571, %v477
          %v573 = vpop.permute.xlu0 %572
          %574 = vset.pattern.permute.xlu0 0
          %575 = vperm.xlu0 %574, %v478
          %v576 = vpop.permute.xlu0 %575
          %577 = vset.pattern.permute.xlu0 0
          %578 = vperm.xlu0 %577, %v479
          %v579 = vpop.permute.xlu0 %578
          %580 = vset.pattern.permute.xlu0 0
          %581 = vperm.xlu0 %580, %v480
          %v582 = vpop.permute.xlu0 %581
          %583 = vset.pattern.permute.xlu0 0
          %584 = vperm.xlu0 %583, %v481
          %v585 = vpop.permute.xlu0 %584
          %586 = vset.pattern.permute.xlu0 0
          %587 = vperm.xlu0 %586, %v482
          %v588 = vpop.permute.xlu0 %587
          %589 = vset.pattern.permute.xlu0 0
          %590 = vperm.xlu0 %589, %v483
          %v591 = vpop.permute.xlu0 %590
          %592 = vset.pattern.permute.xlu0 0
          %593 = vperm.xlu0 %592, %v484
          %v594 = vpop.permute.xlu0 %593
          %595 = vset.pattern.permute.xlu0 0
          %596 = vperm.xlu0 %595, %v485
          %v597 = vpop.permute.xlu0 %596
          %598 = vset.pattern.permute.xlu0 0
          %599 = vperm.xlu0 %598, %v486
          %v600 = vpop.permute.xlu0 %599
          %601 = vset.pattern.permute.xlu0 0
          %602 = vperm.xlu0 %601, %v487
          %v603 = vpop.permute.xlu0 %602
          %604 = vset.pattern.permute.xlu0 0
          %605 = vperm.xlu0 %604, %v488
          %v606 = vpop.permute.xlu0 %605
          %607 = vset.pattern.permute.xlu0 0
          %608 = vperm.xlu0 %607, %v489
          %v609 = vpop.permute.xlu0 %608
          %610 = vset.pattern.permute.xlu0 0
          %611 = vperm.xlu0 %610, %v490
          %v612 = vpop.permute.xlu0 %611
          %613 = vset.pattern.permute.xlu0 0
          %614 = vperm.xlu0 %613, %v491
          %v615 = vpop.permute.xlu0 %614
          %616 = vset.pattern.permute.xlu0 0
          %617 = vperm.xlu0 %616, %v492
          %v618 = vpop.permute.xlu0 %617
          %619 = vset.pattern.permute.xlu0 0
          %620 = vperm.xlu0 %619, %v493
          %v621 = vpop.permute.xlu0 %620
          %622 = vset.pattern.permute.xlu0 0
          %623 = vperm.xlu0 %622, %v494
          %v624 = vpop.permute.xlu0 %623
          %625 = vset.pattern.permute.xlu0 0
          %626 = vperm.xlu0 %625, %v495
          %v627 = vpop.permute.xlu0 %626
          %628 = vset.pattern.permute.xlu0 0
          %629 = vperm.xlu0 %628, %v496
          %v630 = vpop.permute.xlu0 %629
          %631 = vset.pattern.permute.xlu0 0
          %632 = vperm.xlu0 %631, %v497
          %v633 = vpop.permute.xlu0 %632
          %634 = vset.pattern.permute.xlu0 0
          %635 = vperm.xlu0 %634, %v498
          %v636 = vpop.permute.xlu0 %635
          %637 = vset.pattern.permute.xlu0 0
          %638 = vperm.xlu0 %637, %v499
          %v639 = vpop.permute.xlu0 %638
          %640 = vset.pattern.permute.xlu0 0
          %641 = vperm.xlu0 %640, %v500
          %v642 = vpop.permute.xlu0 %641
          %643 = vset.pattern.permute.xlu0 0
          %644 = vperm.xlu0 %643, %v501
          %v645 = vpop.permute.xlu0 %644
          %646 = vset.pattern.permute.xlu0 0
          %647 = vperm.xlu0 %646, %v502
          %v648 = vpop.permute.xlu0 %647
          %649 = vset.pattern.permute.xlu0 0
          %650 = vperm.xlu0 %649, %v503
          %v651 = vpop.permute.xlu0 %650
          %652 = vset.pattern.permute.xlu0 0
          %653 = vperm.xlu0 %652, %v504
          %v654 = vpop.permute.xlu0 %653
          %655 = vset.pattern.permute.xlu0 0
          %656 = vperm.xlu0 %655, %v505
          %v657 = vpop.permute.xlu0 %656
          %658 = vset.pattern.permute.xlu0 0
          %659 = vperm.xlu0 %658, %v506
          %v660 = vpop.permute.xlu0 %659
          %661 = vset.pattern.permute.xlu0 0
          %662 = vperm.xlu0 %661, %v507
          %v663 = vpop.permute.xlu0 %662
          %664 = vset.pattern.permute.xlu0 0
          %665 = vperm.xlu0 %664, %v508
          %v666 = vpop.permute.xlu0 %665
          %667 = vset.pattern.permute.xlu0 0
          %668 = vperm.xlu0 %667, %v509
          %v669 = vpop.permute.xlu0 %668
          %670 = vset.pattern.permute.xlu0 0
          %671 = vperm.xlu0 %670, %v510
          %v672 = vpop.permute.xlu0 %671
          %673 = vset.pattern.permute.xlu0 0
          %674 = vperm.xlu0 %673, %v511
          %v675 = vpop.permute.xlu0 %674
          %676 = vset.pattern.permute.xlu0 0
          %677 = vperm.xlu0 %676, %v512
          %v678 = vpop.permute.xlu0 %677
          %679 = vset.pattern.permute.xlu0 0
          %680 = vperm.xlu0 %679, %v513
          %v681 = vpop.permute.xlu0 %680
          %682 = vset.pattern.permute.xlu0 0
          %683 = vperm.xlu0 %682, %v514
          %v684 = vpop.permute.xlu0 %683
          %685 = vset.pattern.permute.xlu0 0
          %686 = vperm.xlu0 %685, %v515
          %v687 = vpop.permute.xlu0 %686
          %688 = vset.pattern.permute.xlu0 0
          %689 = vperm.xlu0 %688, %v516
          %v690 = vpop.permute.xlu0 %689
          %691 = vset.pattern.permute.xlu0 0
          %692 = vperm.xlu0 %691, %v517
          %v693 = vpop.permute.xlu0 %692
          %694 = vset.pattern.permute.xlu0 0
          %695 = vperm.xlu0 %694, %v518
          %v696 = vpop.permute.xlu0 %695
          %697 = vset.pattern.permute.xlu0 0
          %698 = vperm.xlu0 %697, %v519
          %v699 = vpop.permute.xlu0 %698
          %700 = vset.pattern.permute.xlu0 0
          %701 = vperm.xlu0 %700, %v520
          %v702 = vpop.permute.xlu0 %701
          %703 = vset.pattern.permute.xlu0 0
          %704 = vperm.xlu0 %703, %v521
          %v705 = vpop.permute.xlu0 %704
          %706 = vset.pattern.permute.xlu0 0
          %707 = vperm.xlu0 %706, %v522
          %v708 = vpop.permute.xlu0 %707
          %709 = vset.pattern.permute.xlu0 0
          %710 = vperm.xlu0 %709, %v523
          %v711 = vpop.permute.xlu0 %710
          %712 = vset.pattern.permute.xlu0 0
          %713 = vperm.xlu0 %712, %v524
          %v714 = vpop.permute.xlu0 %713
          %715 = vset.pattern.permute.xlu0 0
          %716 = vperm.xlu0 %715, %v525
          %v717 = vpop.permute.xlu0 %716
          %718 = vset.pattern.permute.xlu0 0
          %719 = vperm.xlu0 %718, %v526
          %v720 = vpop.permute.xlu0 %719
          %721 = vset.pattern.permute.xlu0 0
          %722 = vperm.xlu0 %721, %v527
          %v723 = vpop.permute.xlu0 %722
          %724 = vset.pattern.permute.xlu0 0
          %725 = vperm.xlu0 %724, %v528
          %v726 = vpop.permute.xlu0 %725
          %727 = vset.pattern.permute.xlu0 0
          %728 = vperm.xlu0 %727, %v529
          %v729 = vpop.permute.xlu0 %728
          %730 = vset.pattern.permute.xlu0 0
          %731 = vperm.xlu0 %730, %v530
          %v732 = vpop.permute.xlu0 %731
          %vm733 = vcmp.eq.s32.totalorder %v543, %v537
          %vm734 = vcmp.eq.s32.totalorder %v543, %v538
          %vm735 = vcmp.eq.s32.totalorder %v543, %v539
          %vm736 = vcmp.eq.s32.totalorder %v543, %v540
          %vm737 = vcmp.eq.s32.totalorder %v546, %v537
          %vm738 = vcmp.eq.s32.totalorder %v546, %v538
          %vm739 = vcmp.eq.s32.totalorder %v546, %v539
          %vm740 = vcmp.eq.s32.totalorder %v546, %v540
          %vm741 = vcmp.eq.s32.totalorder %v549, %v537
          %vm742 = vcmp.eq.s32.totalorder %v549, %v538
          %vm743 = vcmp.eq.s32.totalorder %v549, %v539
          %vm744 = vcmp.eq.s32.totalorder %v549, %v540
          %vm745 = vcmp.eq.s32.totalorder %v552, %v537
          %vm746 = vcmp.eq.s32.totalorder %v552, %v538
          %vm747 = vcmp.eq.s32.totalorder %v552, %v539
          %vm748 = vcmp.eq.s32.totalorder %v552, %v540
          %vm749 = vcmp.eq.s32.totalorder %v555, %v537
          %vm750 = vcmp.eq.s32.totalorder %v555, %v538
          %vm751 = vcmp.eq.s32.totalorder %v555, %v539
          %vm752 = vcmp.eq.s32.totalorder %v555, %v540
          %vm753 = vcmp.eq.s32.totalorder %v558, %v537
          %vm754 = vcmp.eq.s32.totalorder %v558, %v538
          %vm755 = vcmp.eq.s32.totalorder %v558, %v539
          %vm756 = vcmp.eq.s32.totalorder %v558, %v540
          %vm757 = vcmp.eq.s32.totalorder %v561, %v537
          %vm758 = vcmp.eq.s32.totalorder %v561, %v538
          %vm759 = vcmp.eq.s32.totalorder %v561, %v539
          %vm760 = vcmp.eq.s32.totalorder %v561, %v540
          %vm761 = vcmp.eq.s32.totalorder %v564, %v537
          %vm762 = vcmp.eq.s32.totalorder %v564, %v538
          %vm763 = vcmp.eq.s32.totalorder %v564, %v539
          %vm764 = vcmp.eq.s32.totalorder %v564, %v540
          %vm765 = vcmp.eq.s32.totalorder %v567, %v537
          %vm766 = vcmp.eq.s32.totalorder %v567, %v538
          %vm767 = vcmp.eq.s32.totalorder %v567, %v539
          %vm768 = vcmp.eq.s32.totalorder %v567, %v540
          %vm769 = vcmp.eq.s32.totalorder %v570, %v537
          %vm770 = vcmp.eq.s32.totalorder %v570, %v538
          %vm771 = vcmp.eq.s32.totalorder %v570, %v539
          %vm772 = vcmp.eq.s32.totalorder %v570, %v540
          %vm773 = vcmp.eq.s32.totalorder %v573, %v537
          %vm774 = vcmp.eq.s32.totalorder %v573, %v538
          %vm775 = vcmp.eq.s32.totalorder %v573, %v539
          %vm776 = vcmp.eq.s32.totalorder %v573, %v540
          %vm777 = vcmp.eq.s32.totalorder %v576, %v537
          %vm778 = vcmp.eq.s32.totalorder %v576, %v538
          %vm779 = vcmp.eq.s32.totalorder %v576, %v539
          %vm780 = vcmp.eq.s32.totalorder %v576, %v540
          %vm781 = vcmp.eq.s32.totalorder %v579, %v537
          %vm782 = vcmp.eq.s32.totalorder %v579, %v538
          %vm783 = vcmp.eq.s32.totalorder %v579, %v539
          %vm784 = vcmp.eq.s32.totalorder %v579, %v540
          %vm785 = vcmp.eq.s32.totalorder %v582, %v537
          %vm786 = vcmp.eq.s32.totalorder %v582, %v538
          %vm787 = vcmp.eq.s32.totalorder %v582, %v539
          %vm788 = vcmp.eq.s32.totalorder %v582, %v540
          %vm789 = vcmp.eq.s32.totalorder %v585, %v537
          %vm790 = vcmp.eq.s32.totalorder %v585, %v538
          %vm791 = vcmp.eq.s32.totalorder %v585, %v539
          %vm792 = vcmp.eq.s32.totalorder %v585, %v540
          %vm793 = vcmp.eq.s32.totalorder %v588, %v537
          %vm794 = vcmp.eq.s32.totalorder %v588, %v538
          %vm795 = vcmp.eq.s32.totalorder %v588, %v539
          %vm796 = vcmp.eq.s32.totalorder %v588, %v540
          %vm797 = vcmp.eq.s32.totalorder %v591, %v537
          %vm798 = vcmp.eq.s32.totalorder %v591, %v538
          %vm799 = vcmp.eq.s32.totalorder %v591, %v539
          %vm800 = vcmp.eq.s32.totalorder %v591, %v540
          %vm801 = vcmp.eq.s32.totalorder %v594, %v537
          %vm802 = vcmp.eq.s32.totalorder %v594, %v538
          %vm803 = vcmp.eq.s32.totalorder %v594, %v539
          %vm804 = vcmp.eq.s32.totalorder %v594, %v540
          %vm805 = vcmp.eq.s32.totalorder %v597, %v537
          %vm806 = vcmp.eq.s32.totalorder %v597, %v538
          %vm807 = vcmp.eq.s32.totalorder %v597, %v539
          %vm808 = vcmp.eq.s32.totalorder %v597, %v540
          %vm809 = vcmp.eq.s32.totalorder %v600, %v537
          %vm810 = vcmp.eq.s32.totalorder %v600, %v538
          %vm811 = vcmp.eq.s32.totalorder %v600, %v539
          %vm812 = vcmp.eq.s32.totalorder %v600, %v540
          %vm813 = vcmp.eq.s32.totalorder %v603, %v537
          %vm814 = vcmp.eq.s32.totalorder %v603, %v538
          %vm815 = vcmp.eq.s32.totalorder %v603, %v539
          %vm816 = vcmp.eq.s32.totalorder %v603, %v540
          %vm817 = vcmp.eq.s32.totalorder %v606, %v537
          %vm818 = vcmp.eq.s32.totalorder %v606, %v538
          %vm819 = vcmp.eq.s32.totalorder %v606, %v539
          %vm820 = vcmp.eq.s32.totalorder %v606, %v540
          %vm821 = vcmp.eq.s32.totalorder %v609, %v537
          %vm822 = vcmp.eq.s32.totalorder %v609, %v538
          %vm823 = vcmp.eq.s32.totalorder %v609, %v539
          %vm824 = vcmp.eq.s32.totalorder %v609, %v540
          %vm825 = vcmp.eq.s32.totalorder %v612, %v537
          %vm826 = vcmp.eq.s32.totalorder %v612, %v538
          %vm827 = vcmp.eq.s32.totalorder %v612, %v539
          %vm828 = vcmp.eq.s32.totalorder %v612, %v540
          %vm829 = vcmp.eq.s32.totalorder %v615, %v537
          %vm830 = vcmp.eq.s32.totalorder %v615, %v538
          %vm831 = vcmp.eq.s32.totalorder %v615, %v539
          %vm832 = vcmp.eq.s32.totalorder %v615, %v540
          %vm833 = vcmp.eq.s32.totalorder %v618, %v537
          %vm834 = vcmp.eq.s32.totalorder %v618, %v538
          %vm835 = vcmp.eq.s32.totalorder %v618, %v539
          %vm836 = vcmp.eq.s32.totalorder %v618, %v540
          %vm837 = vcmp.eq.s32.totalorder %v621, %v537
          %vm838 = vcmp.eq.s32.totalorder %v621, %v538
          %vm839 = vcmp.eq.s32.totalorder %v621, %v539
          %vm840 = vcmp.eq.s32.totalorder %v621, %v540
          %vm841 = vcmp.eq.s32.totalorder %v624, %v537
          %vm842 = vcmp.eq.s32.totalorder %v624, %v538
          %vm843 = vcmp.eq.s32.totalorder %v624, %v539
          %vm844 = vcmp.eq.s32.totalorder %v624, %v540
          %vm845 = vcmp.eq.s32.totalorder %v627, %v537
          %vm846 = vcmp.eq.s32.totalorder %v627, %v538
          %vm847 = vcmp.eq.s32.totalorder %v627, %v539
          %vm848 = vcmp.eq.s32.totalorder %v627, %v540
          %vm849 = vcmp.eq.s32.totalorder %v630, %v537
          %vm850 = vcmp.eq.s32.totalorder %v630, %v538
          %vm851 = vcmp.eq.s32.totalorder %v630, %v539
          %vm852 = vcmp.eq.s32.totalorder %v630, %v540
          %vm853 = vcmp.eq.s32.totalorder %v633, %v537
          %vm854 = vcmp.eq.s32.totalorder %v633, %v538
          %vm855 = vcmp.eq.s32.totalorder %v633, %v539
          %vm856 = vcmp.eq.s32.totalorder %v633, %v540
          %vm857 = vcmp.eq.s32.totalorder %v636, %v537
          %vm858 = vcmp.eq.s32.totalorder %v636, %v538
          %vm859 = vcmp.eq.s32.totalorder %v636, %v539
          %vm860 = vcmp.eq.s32.totalorder %v636, %v540
          %vm861 = vcmp.eq.s32.totalorder %v639, %v537
          %vm862 = vcmp.eq.s32.totalorder %v639, %v538
          %vm863 = vcmp.eq.s32.totalorder %v639, %v539
          %vm864 = vcmp.eq.s32.totalorder %v639, %v540
          %vm865 = vcmp.eq.s32.totalorder %v642, %v537
          %vm866 = vcmp.eq.s32.totalorder %v642, %v538
          %vm867 = vcmp.eq.s32.totalorder %v642, %v539
          %vm868 = vcmp.eq.s32.totalorder %v642, %v540
          %vm869 = vcmp.eq.s32.totalorder %v645, %v537
          %vm870 = vcmp.eq.s32.totalorder %v645, %v538
          %vm871 = vcmp.eq.s32.totalorder %v645, %v539
          %vm872 = vcmp.eq.s32.totalorder %v645, %v540
          %vm873 = vcmp.eq.s32.totalorder %v648, %v537
          %vm874 = vcmp.eq.s32.totalorder %v648, %v538
          %vm875 = vcmp.eq.s32.totalorder %v648, %v539
          %vm876 = vcmp.eq.s32.totalorder %v648, %v540
          %vm877 = vcmp.eq.s32.totalorder %v651, %v537
          %vm878 = vcmp.eq.s32.totalorder %v651, %v538
          %vm879 = vcmp.eq.s32.totalorder %v651, %v539
          %vm880 = vcmp.eq.s32.totalorder %v651, %v540
          %vm881 = vcmp.eq.s32.totalorder %v654, %v537
          %vm882 = vcmp.eq.s32.totalorder %v654, %v538
          %vm883 = vcmp.eq.s32.totalorder %v654, %v539
          %vm884 = vcmp.eq.s32.totalorder %v654, %v540
          %vm885 = vcmp.eq.s32.totalorder %v657, %v537
          %vm886 = vcmp.eq.s32.totalorder %v657, %v538
          %vm887 = vcmp.eq.s32.totalorder %v657, %v539
          %vm888 = vcmp.eq.s32.totalorder %v657, %v540
          %vm889 = vcmp.eq.s32.totalorder %v660, %v537
          %vm890 = vcmp.eq.s32.totalorder %v660, %v538
          %vm891 = vcmp.eq.s32.totalorder %v660, %v539
          %vm892 = vcmp.eq.s32.totalorder %v660, %v540
          %vm893 = vcmp.eq.s32.totalorder %v663, %v537
          %vm894 = vcmp.eq.s32.totalorder %v663, %v538
          %vm895 = vcmp.eq.s32.totalorder %v663, %v539
          %vm896 = vcmp.eq.s32.totalorder %v663, %v540
          %vm897 = vcmp.eq.s32.totalorder %v666, %v537
          %vm898 = vcmp.eq.s32.totalorder %v666, %v538
          %vm899 = vcmp.eq.s32.totalorder %v666, %v539
          %vm900 = vcmp.eq.s32.totalorder %v666, %v540
          %vm901 = vcmp.eq.s32.totalorder %v669, %v537
          %vm902 = vcmp.eq.s32.totalorder %v669, %v538
          %vm903 = vcmp.eq.s32.totalorder %v669, %v539
          %vm904 = vcmp.eq.s32.totalorder %v669, %v540
          %vm905 = vcmp.eq.s32.totalorder %v672, %v537
          %vm906 = vcmp.eq.s32.totalorder %v672, %v538
          %vm907 = vcmp.eq.s32.totalorder %v672, %v539
          %vm908 = vcmp.eq.s32.totalorder %v672, %v540
          %vm909 = vcmp.eq.s32.totalorder %v675, %v537
          %vm910 = vcmp.eq.s32.totalorder %v675, %v538
          %vm911 = vcmp.eq.s32.totalorder %v675, %v539
          %vm912 = vcmp.eq.s32.totalorder %v675, %v540
          %vm913 = vcmp.eq.s32.totalorder %v678, %v537
          %vm914 = vcmp.eq.s32.totalorder %v678, %v538
          %vm915 = vcmp.eq.s32.totalorder %v678, %v539
          %vm916 = vcmp.eq.s32.totalorder %v678, %v540
          %vm917 = vcmp.eq.s32.totalorder %v681, %v537
          %vm918 = vcmp.eq.s32.totalorder %v681, %v538
          %vm919 = vcmp.eq.s32.totalorder %v681, %v539
          %vm920 = vcmp.eq.s32.totalorder %v681, %v540
          %vm921 = vcmp.eq.s32.totalorder %v684, %v537
          %vm922 = vcmp.eq.s32.totalorder %v684, %v538
          %vm923 = vcmp.eq.s32.totalorder %v684, %v539
          %vm924 = vcmp.eq.s32.totalorder %v684, %v540
          %vm925 = vcmp.eq.s32.totalorder %v687, %v537
          %vm926 = vcmp.eq.s32.totalorder %v687, %v538
          %vm927 = vcmp.eq.s32.totalorder %v687, %v539
          %vm928 = vcmp.eq.s32.totalorder %v687, %v540
          %vm929 = vcmp.eq.s32.totalorder %v690, %v537
          %vm930 = vcmp.eq.s32.totalorder %v690, %v538
          %vm931 = vcmp.eq.s32.totalorder %v690, %v539
          %vm932 = vcmp.eq.s32.totalorder %v690, %v540
          %vm933 = vcmp.eq.s32.totalorder %v693, %v537
          %vm934 = vcmp.eq.s32.totalorder %v693, %v538
          %vm935 = vcmp.eq.s32.totalorder %v693, %v539
          %vm936 = vcmp.eq.s32.totalorder %v693, %v540
          %vm937 = vcmp.eq.s32.totalorder %v696, %v537
          %vm938 = vcmp.eq.s32.totalorder %v696, %v538
          %vm939 = vcmp.eq.s32.totalorder %v696, %v539
          %vm940 = vcmp.eq.s32.totalorder %v696, %v540
          %vm941 = vcmp.eq.s32.totalorder %v699, %v537
          %vm942 = vcmp.eq.s32.totalorder %v699, %v538
          %vm943 = vcmp.eq.s32.totalorder %v699, %v539
          %vm944 = vcmp.eq.s32.totalorder %v699, %v540
          %vm945 = vcmp.eq.s32.totalorder %v702, %v537
          %vm946 = vcmp.eq.s32.totalorder %v702, %v538
          %vm947 = vcmp.eq.s32.totalorder %v702, %v539
          %vm948 = vcmp.eq.s32.totalorder %v702, %v540
          %vm949 = vcmp.eq.s32.totalorder %v705, %v537
          %vm950 = vcmp.eq.s32.totalorder %v705, %v538
          %vm951 = vcmp.eq.s32.totalorder %v705, %v539
          %vm952 = vcmp.eq.s32.totalorder %v705, %v540
          %vm953 = vcmp.eq.s32.totalorder %v708, %v537
          %vm954 = vcmp.eq.s32.totalorder %v708, %v538
          %vm955 = vcmp.eq.s32.totalorder %v708, %v539
          %vm956 = vcmp.eq.s32.totalorder %v708, %v540
          %vm957 = vcmp.eq.s32.totalorder %v711, %v537
          %vm958 = vcmp.eq.s32.totalorder %v711, %v538
          %vm959 = vcmp.eq.s32.totalorder %v711, %v539
          %vm960 = vcmp.eq.s32.totalorder %v711, %v540
          %vm961 = vcmp.eq.s32.totalorder %v714, %v537
          %vm962 = vcmp.eq.s32.totalorder %v714, %v538
          %vm963 = vcmp.eq.s32.totalorder %v714, %v539
          %vm964 = vcmp.eq.s32.totalorder %v714, %v540
          %vm965 = vcmp.eq.s32.totalorder %v717, %v537
          %vm966 = vcmp.eq.s32.totalorder %v717, %v538
          %vm967 = vcmp.eq.s32.totalorder %v717, %v539
          %vm968 = vcmp.eq.s32.totalorder %v717, %v540
          %vm969 = vcmp.eq.s32.totalorder %v720, %v537
          %vm970 = vcmp.eq.s32.totalorder %v720, %v538
          %vm971 = vcmp.eq.s32.totalorder %v720, %v539
          %vm972 = vcmp.eq.s32.totalorder %v720, %v540
          %vm973 = vcmp.eq.s32.totalorder %v723, %v537
          %vm974 = vcmp.eq.s32.totalorder %v723, %v538
          %vm975 = vcmp.eq.s32.totalorder %v723, %v539
          %vm976 = vcmp.eq.s32.totalorder %v723, %v540
          %vm977 = vcmp.eq.s32.totalorder %v726, %v537
          %vm978 = vcmp.eq.s32.totalorder %v726, %v538
          %vm979 = vcmp.eq.s32.totalorder %v726, %v539
          %vm980 = vcmp.eq.s32.totalorder %v726, %v540
          %vm981 = vcmp.eq.s32.totalorder %v729, %v537
          %vm982 = vcmp.eq.s32.totalorder %v729, %v538
          %vm983 = vcmp.eq.s32.totalorder %v729, %v539
          %vm984 = vcmp.eq.s32.totalorder %v729, %v540
          %vm985 = vcmp.eq.s32.totalorder %v732, %v537
          %vm986 = vcmp.eq.s32.totalorder %v732, %v538
          %vm987 = vcmp.eq.s32.totalorder %v732, %v539
          %vm988 = vcmp.eq.s32.totalorder %v732, %v540
          %990 = vset.pattern.permute.xlu0 0
          %991 = vperm.xlu0 %990, %v403
          %v992 = vpop.permute.xlu0 %991
          %995 = vset.pattern.permute.xlu0 0
          %996 = vperm.xlu0 %995, %v404
          %v997 = vpop.permute.xlu0 %996
          %1000 = vset.pattern.permute.xlu0 0
          %1001 = vperm.xlu0 %1000, %v405
          %v1002 = vpop.permute.xlu0 %1001
          %1005 = vset.pattern.permute.xlu0 0
          %1006 = vperm.xlu0 %1005, %v406
          %v1007 = vpop.permute.xlu0 %1006
          %1010 = vset.pattern.permute.xlu0 0
          %1011 = vperm.xlu0 %1010, %v407
          %v1012 = vpop.permute.xlu0 %1011
          %1015 = vset.pattern.permute.xlu0 0
          %1016 = vperm.xlu0 %1015, %v408
          %v1017 = vpop.permute.xlu0 %1016
          %1020 = vset.pattern.permute.xlu0 0
          %1021 = vperm.xlu0 %1020, %v409
          %v1022 = vpop.permute.xlu0 %1021
          %1025 = vset.pattern.permute.xlu0 0
          %1026 = vperm.xlu0 %1025, %v410
          %v1027 = vpop.permute.xlu0 %1026
          %1030 = vset.pattern.permute.xlu0 0
          %1031 = vperm.xlu0 %1030, %v411
          %v1032 = vpop.permute.xlu0 %1031
          %1035 = vset.pattern.permute.xlu0 0
          %1036 = vperm.xlu0 %1035, %v412
          %v1037 = vpop.permute.xlu0 %1036
          %1040 = vset.pattern.permute.xlu0 0
          %1041 = vperm.xlu0 %1040, %v413
          %v1042 = vpop.permute.xlu0 %1041
          %1045 = vset.pattern.permute.xlu0 0
          %1046 = vperm.xlu0 %1045, %v414
          %v1047 = vpop.permute.xlu0 %1046
          %1050 = vset.pattern.permute.xlu0 0
          %1051 = vperm.xlu0 %1050, %v415
          %v1052 = vpop.permute.xlu0 %1051
          %1055 = vset.pattern.permute.xlu0 0
          %1056 = vperm.xlu0 %1055, %v416
          %v1057 = vpop.permute.xlu0 %1056
          %1060 = vset.pattern.permute.xlu0 0
          %1061 = vperm.xlu0 %1060, %v417
          %v1062 = vpop.permute.xlu0 %1061
          %1065 = vset.pattern.permute.xlu0 0
          %1066 = vperm.xlu0 %1065, %v418
          %v1067 = vpop.permute.xlu0 %1066
          %1070 = vset.pattern.permute.xlu0 0
          %1071 = vperm.xlu0 %1070, %v419
          %v1072 = vpop.permute.xlu0 %1071
          %1075 = vset.pattern.permute.xlu0 0
          %1076 = vperm.xlu0 %1075, %v420
          %v1077 = vpop.permute.xlu0 %1076
          %1080 = vset.pattern.permute.xlu0 0
          %1081 = vperm.xlu0 %1080, %v421
          %v1082 = vpop.permute.xlu0 %1081
          %1085 = vset.pattern.permute.xlu0 0
          %1086 = vperm.xlu0 %1085, %v422
          %v1087 = vpop.permute.xlu0 %1086
          %1090 = vset.pattern.permute.xlu0 0
          %1091 = vperm.xlu0 %1090, %v423
          %v1092 = vpop.permute.xlu0 %1091
          %1095 = vset.pattern.permute.xlu0 0
          %1096 = vperm.xlu0 %1095, %v424
          %v1097 = vpop.permute.xlu0 %1096
          %1100 = vset.pattern.permute.xlu0 0
          %1101 = vperm.xlu0 %1100, %v425
          %v1102 = vpop.permute.xlu0 %1101
          %1105 = vset.pattern.permute.xlu0 0
          %1106 = vperm.xlu0 %1105, %v426
          %v1107 = vpop.permute.xlu0 %1106
          %1110 = vset.pattern.permute.xlu0 0
          %1111 = vperm.xlu0 %1110, %v427
          %v1112 = vpop.permute.xlu0 %1111
          %1115 = vset.pattern.permute.xlu0 0
          %1116 = vperm.xlu0 %1115, %v428
          %v1117 = vpop.permute.xlu0 %1116
          %1120 = vset.pattern.permute.xlu0 0
          %1121 = vperm.xlu0 %1120, %v429
          %v1122 = vpop.permute.xlu0 %1121
          %1125 = vset.pattern.permute.xlu0 0
          %1126 = vperm.xlu0 %1125, %v430
          %v1127 = vpop.permute.xlu0 %1126
          %1130 = vset.pattern.permute.xlu0 0
          %1131 = vperm.xlu0 %1130, %v431
          %v1132 = vpop.permute.xlu0 %1131
          %1135 = vset.pattern.permute.xlu0 0
          %1136 = vperm.xlu0 %1135, %v432
          %v1137 = vpop.permute.xlu0 %1136
          %1140 = vset.pattern.permute.xlu0 0
          %1141 = vperm.xlu0 %1140, %v433
          %v1142 = vpop.permute.xlu0 %1141
          %1145 = vset.pattern.permute.xlu0 0
          %1146 = vperm.xlu0 %1145, %v434
          %v1147 = vpop.permute.xlu0 %1146
          %1150 = vset.pattern.permute.xlu0 0
          %1151 = vperm.xlu0 %1150, %v435
          %v1152 = vpop.permute.xlu0 %1151
          %1155 = vset.pattern.permute.xlu0 0
          %1156 = vperm.xlu0 %1155, %v436
          %v1157 = vpop.permute.xlu0 %1156
          %1160 = vset.pattern.permute.xlu0 0
          %1161 = vperm.xlu0 %1160, %v437
          %v1162 = vpop.permute.xlu0 %1161
          %1165 = vset.pattern.permute.xlu0 0
          %1166 = vperm.xlu0 %1165, %v438
          %v1167 = vpop.permute.xlu0 %1166
          %1170 = vset.pattern.permute.xlu0 0
          %1171 = vperm.xlu0 %1170, %v439
          %v1172 = vpop.permute.xlu0 %1171
          %1175 = vset.pattern.permute.xlu0 0
          %1176 = vperm.xlu0 %1175, %v440
          %v1177 = vpop.permute.xlu0 %1176
          %1180 = vset.pattern.permute.xlu0 0
          %1181 = vperm.xlu0 %1180, %v441
          %v1182 = vpop.permute.xlu0 %1181
          %1185 = vset.pattern.permute.xlu0 0
          %1186 = vperm.xlu0 %1185, %v442
          %v1187 = vpop.permute.xlu0 %1186
          %1190 = vset.pattern.permute.xlu0 0
          %1191 = vperm.xlu0 %1190, %v443
          %v1192 = vpop.permute.xlu0 %1191
          %1195 = vset.pattern.permute.xlu0 0
          %1196 = vperm.xlu0 %1195, %v444
          %v1197 = vpop.permute.xlu0 %1196
          %1200 = vset.pattern.permute.xlu0 0
          %1201 = vperm.xlu0 %1200, %v445
          %v1202 = vpop.permute.xlu0 %1201
          %1205 = vset.pattern.permute.xlu0 0
          %1206 = vperm.xlu0 %1205, %v446
          %v1207 = vpop.permute.xlu0 %1206
          %1210 = vset.pattern.permute.xlu0 0
          %1211 = vperm.xlu0 %1210, %v447
          %v1212 = vpop.permute.xlu0 %1211
          %1215 = vset.pattern.permute.xlu0 0
          %1216 = vperm.xlu0 %1215, %v448
          %v1217 = vpop.permute.xlu0 %1216
          %1220 = vset.pattern.permute.xlu0 0
          %1221 = vperm.xlu0 %1220, %v449
          %v1222 = vpop.permute.xlu0 %1221
          %1225 = vset.pattern.permute.xlu0 0
          %1226 = vperm.xlu0 %1225, %v450
          %v1227 = vpop.permute.xlu0 %1226
          %1230 = vset.pattern.permute.xlu0 0
          %1231 = vperm.xlu0 %1230, %v451
          %v1232 = vpop.permute.xlu0 %1231
          %1235 = vset.pattern.permute.xlu0 0
          %1236 = vperm.xlu0 %1235, %v452
          %v1237 = vpop.permute.xlu0 %1236
          %1240 = vset.pattern.permute.xlu0 0
          %1241 = vperm.xlu0 %1240, %v453
          %v1242 = vpop.permute.xlu0 %1241
          %1245 = vset.pattern.permute.xlu0 0
          %1246 = vperm.xlu0 %1245, %v454
          %v1247 = vpop.permute.xlu0 %1246
          %1250 = vset.pattern.permute.xlu0 0
          %1251 = vperm.xlu0 %1250, %v455
          %v1252 = vpop.permute.xlu0 %1251
          %1255 = vset.pattern.permute.xlu0 0
          %1256 = vperm.xlu0 %1255, %v456
          %v1257 = vpop.permute.xlu0 %1256
          %1260 = vset.pattern.permute.xlu0 0
          %1261 = vperm.xlu0 %1260, %v457
          %v1262 = vpop.permute.xlu0 %1261
          %1265 = vset.pattern.permute.xlu0 0
          %1266 = vperm.xlu0 %1265, %v458
          %v1267 = vpop.permute.xlu0 %1266
          %1270 = vset.pattern.permute.xlu0 0
          %1271 = vperm.xlu0 %1270, %v459
          %v1272 = vpop.permute.xlu0 %1271
          %1275 = vset.pattern.permute.xlu0 0
          %1276 = vperm.xlu0 %1275, %v460
          %v1277 = vpop.permute.xlu0 %1276
          %1280 = vset.pattern.permute.xlu0 0
          %1281 = vperm.xlu0 %1280, %v461
          %v1282 = vpop.permute.xlu0 %1281
          %1285 = vset.pattern.permute.xlu0 0
          %1286 = vperm.xlu0 %1285, %v462
          %v1287 = vpop.permute.xlu0 %1286
          %1290 = vset.pattern.permute.xlu0 0
          %1291 = vperm.xlu0 %1290, %v463
          %v1292 = vpop.permute.xlu0 %1291
          %1295 = vset.pattern.permute.xlu0 0
          %1296 = vperm.xlu0 %1295, %v464
          %v1297 = vpop.permute.xlu0 %1296
          %1300 = vset.pattern.permute.xlu0 0
          %1301 = vperm.xlu0 %1300, %v465
          %v1302 = vpop.permute.xlu0 %1301
          %1305 = vset.pattern.permute.xlu0 0
          %1306 = vperm.xlu0 %1305, %v466
          %v1307 = vpop.permute.xlu0 %1306
          %v1309 = vsel %vm733, %v992, 0.0
          %v1310 = vsel %vm734, %v992, 0.0
          %v1311 = vsel %vm735, %v992, 0.0
          %v1312 = vsel %vm736, %v992, 0.0
          %v1313 = vsel %vm737, %v997, 0.0
          %v1314 = vsel %vm738, %v997, 0.0
          %v1315 = vsel %vm739, %v997, 0.0
          %v1316 = vsel %vm740, %v997, 0.0
          %v1317 = vsel %vm741, %v1002, 0.0
          %v1318 = vsel %vm742, %v1002, 0.0
          %v1319 = vsel %vm743, %v1002, 0.0
          %v1320 = vsel %vm744, %v1002, 0.0
          %v1321 = vsel %vm745, %v1007, 0.0
          %v1322 = vsel %vm746, %v1007, 0.0
          %v1323 = vsel %vm747, %v1007, 0.0
          %v1324 = vsel %vm748, %v1007, 0.0
          %v1325 = vsel %vm749, %v1012, 0.0
          %v1326 = vsel %vm750, %v1012, 0.0
          %v1327 = vsel %vm751, %v1012, 0.0
          %v1328 = vsel %vm752, %v1012, 0.0
          %v1329 = vsel %vm753, %v1017, 0.0
          %v1330 = vsel %vm754, %v1017, 0.0
          %v1331 = vsel %vm755, %v1017, 0.0
          %v1332 = vsel %vm756, %v1017, 0.0
          %v1333 = vsel %vm757, %v1022, 0.0
          %v1334 = vsel %vm758, %v1022, 0.0
          %v1335 = vsel %vm759, %v1022, 0.0
          %v1336 = vsel %vm760, %v1022, 0.0
          %v1337 = vsel %vm761, %v1027, 0.0
          %v1338 = vsel %vm762, %v1027, 0.0
          %v1339 = vsel %vm763, %v1027, 0.0
          %v1340 = vsel %vm764, %v1027, 0.0
          %v1341 = vsel %vm765, %v1032, 0.0
          %v1342 = vsel %vm766, %v1032, 0.0
          %v1343 = vsel %vm767, %v1032, 0.0
          %v1344 = vsel %vm768, %v1032, 0.0
          %v1345 = vsel %vm769, %v1037, 0.0
          %v1346 = vsel %vm770, %v1037, 0.0
          %v1347 = vsel %vm771, %v1037, 0.0
          %v1348 = vsel %vm772, %v1037, 0.0
          %v1349 = vsel %vm773, %v1042, 0.0
          %v1350 = vsel %vm774, %v1042, 0.0
          %v1351 = vsel %vm775, %v1042, 0.0
          %v1352 = vsel %vm776, %v1042, 0.0
          %v1353 = vsel %vm777, %v1047, 0.0
          %v1354 = vsel %vm778, %v1047, 0.0
          %v1355 = vsel %vm779, %v1047, 0.0
          %v1356 = vsel %vm780, %v1047, 0.0
          %v1357 = vsel %vm781, %v1052, 0.0
          %v1358 = vsel %vm782, %v1052, 0.0
          %v1359 = vsel %vm783, %v1052, 0.0
          %v1360 = vsel %vm784, %v1052, 0.0
          %v1361 = vsel %vm785, %v1057, 0.0
          %v1362 = vsel %vm786, %v1057, 0.0
          %v1363 = vsel %vm787, %v1057, 0.0
          %v1364 = vsel %vm788, %v1057, 0.0
          %v1365 = vsel %vm789, %v1062, 0.0
          %v1366 = vsel %vm790, %v1062, 0.0
          %v1367 = vsel %vm791, %v1062, 0.0
          %v1368 = vsel %vm792, %v1062, 0.0
          %v1369 = vsel %vm793, %v1067, 0.0
          %v1370 = vsel %vm794, %v1067, 0.0
          %v1371 = vsel %vm795, %v1067, 0.0
          %v1372 = vsel %vm796, %v1067, 0.0
          %v1373 = vsel %vm797, %v1072, 0.0
          %v1374 = vsel %vm798, %v1072, 0.0
          %v1375 = vsel %vm799, %v1072, 0.0
          %v1376 = vsel %vm800, %v1072, 0.0
          %v1377 = vsel %vm801, %v1077, 0.0
          %v1378 = vsel %vm802, %v1077, 0.0
          %v1379 = vsel %vm803, %v1077, 0.0
          %v1380 = vsel %vm804, %v1077, 0.0
          %v1381 = vsel %vm805, %v1082, 0.0
          %v1382 = vsel %vm806, %v1082, 0.0
          %v1383 = vsel %vm807, %v1082, 0.0
          %v1384 = vsel %vm808, %v1082, 0.0
          %v1385 = vsel %vm809, %v1087, 0.0
          %v1386 = vsel %vm810, %v1087, 0.0
          %v1387 = vsel %vm811, %v1087, 0.0
          %v1388 = vsel %vm812, %v1087, 0.0
          %v1389 = vsel %vm813, %v1092, 0.0
          %v1390 = vsel %vm814, %v1092, 0.0
          %v1391 = vsel %vm815, %v1092, 0.0
          %v1392 = vsel %vm816, %v1092, 0.0
          %v1393 = vsel %vm817, %v1097, 0.0
          %v1394 = vsel %vm818, %v1097, 0.0
          %v1395 = vsel %vm819, %v1097, 0.0
          %v1396 = vsel %vm820, %v1097, 0.0
          %v1397 = vsel %vm821, %v1102, 0.0
          %v1398 = vsel %vm822, %v1102, 0.0
          %v1399 = vsel %vm823, %v1102, 0.0
          %v1400 = vsel %vm824, %v1102, 0.0
          %v1401 = vsel %vm825, %v1107, 0.0
          %v1402 = vsel %vm826, %v1107, 0.0
          %v1403 = vsel %vm827, %v1107, 0.0
          %v1404 = vsel %vm828, %v1107, 0.0
          %v1405 = vsel %vm829, %v1112, 0.0
          %v1406 = vsel %vm830, %v1112, 0.0
          %v1407 = vsel %vm831, %v1112, 0.0
          %v1408 = vsel %vm832, %v1112, 0.0
          %v1409 = vsel %vm833, %v1117, 0.0
          %v1410 = vsel %vm834, %v1117, 0.0
          %v1411 = vsel %vm835, %v1117, 0.0
          %v1412 = vsel %vm836, %v1117, 0.0
          %v1413 = vsel %vm837, %v1122, 0.0
          %v1414 = vsel %vm838, %v1122, 0.0
          %v1415 = vsel %vm839, %v1122, 0.0
          %v1416 = vsel %vm840, %v1122, 0.0
          %v1417 = vsel %vm841, %v1127, 0.0
          %v1418 = vsel %vm842, %v1127, 0.0
          %v1419 = vsel %vm843, %v1127, 0.0
          %v1420 = vsel %vm844, %v1127, 0.0
          %v1421 = vsel %vm845, %v1132, 0.0
          %v1422 = vsel %vm846, %v1132, 0.0
          %v1423 = vsel %vm847, %v1132, 0.0
          %v1424 = vsel %vm848, %v1132, 0.0
          %v1425 = vsel %vm849, %v1137, 0.0
          %v1426 = vsel %vm850, %v1137, 0.0
          %v1427 = vsel %vm851, %v1137, 0.0
          %v1428 = vsel %vm852, %v1137, 0.0
          %v1429 = vsel %vm853, %v1142, 0.0
          %v1430 = vsel %vm854, %v1142, 0.0
          %v1431 = vsel %vm855, %v1142, 0.0
          %v1432 = vsel %vm856, %v1142, 0.0
          %v1433 = vsel %vm857, %v1147, 0.0
          %v1434 = vsel %vm858, %v1147, 0.0
          %v1435 = vsel %vm859, %v1147, 0.0
          %v1436 = vsel %vm860, %v1147, 0.0
          %v1437 = vsel %vm861, %v1152, 0.0
          %v1438 = vsel %vm862, %v1152, 0.0
          %v1439 = vsel %vm863, %v1152, 0.0
          %v1440 = vsel %vm864, %v1152, 0.0
          %v1441 = vsel %vm865, %v1157, 0.0
          %v1442 = vsel %vm866, %v1157, 0.0
          %v1443 = vsel %vm867, %v1157, 0.0
          %v1444 = vsel %vm868, %v1157, 0.0
          %v1445 = vsel %vm869, %v1162, 0.0
          %v1446 = vsel %vm870, %v1162, 0.0
          %v1447 = vsel %vm871, %v1162, 0.0
          %v1448 = vsel %vm872, %v1162, 0.0
          %v1449 = vsel %vm873, %v1167, 0.0
          %v1450 = vsel %vm874, %v1167, 0.0
          %v1451 = vsel %vm875, %v1167, 0.0
          %v1452 = vsel %vm876, %v1167, 0.0
          %v1453 = vsel %vm877, %v1172, 0.0
          %v1454 = vsel %vm878, %v1172, 0.0
          %v1455 = vsel %vm879, %v1172, 0.0
          %v1456 = vsel %vm880, %v1172, 0.0
          %v1457 = vsel %vm881, %v1177, 0.0
          %v1458 = vsel %vm882, %v1177, 0.0
          %v1459 = vsel %vm883, %v1177, 0.0
          %v1460 = vsel %vm884, %v1177, 0.0
          %v1461 = vsel %vm885, %v1182, 0.0
          %v1462 = vsel %vm886, %v1182, 0.0
          %v1463 = vsel %vm887, %v1182, 0.0
          %v1464 = vsel %vm888, %v1182, 0.0
          %v1465 = vsel %vm889, %v1187, 0.0
          %v1466 = vsel %vm890, %v1187, 0.0
          %v1467 = vsel %vm891, %v1187, 0.0
          %v1468 = vsel %vm892, %v1187, 0.0
          %v1469 = vsel %vm893, %v1192, 0.0
          %v1470 = vsel %vm894, %v1192, 0.0
          %v1471 = vsel %vm895, %v1192, 0.0
          %v1472 = vsel %vm896, %v1192, 0.0
          %v1473 = vsel %vm897, %v1197, 0.0
          %v1474 = vsel %vm898, %v1197, 0.0
          %v1475 = vsel %vm899, %v1197, 0.0
          %v1476 = vsel %vm900, %v1197, 0.0
          %v1477 = vsel %vm901, %v1202, 0.0
          %v1478 = vsel %vm902, %v1202, 0.0
          %v1479 = vsel %vm903, %v1202, 0.0
          %v1480 = vsel %vm904, %v1202, 0.0
          %v1481 = vsel %vm905, %v1207, 0.0
          %v1482 = vsel %vm906, %v1207, 0.0
          %v1483 = vsel %vm907, %v1207, 0.0
          %v1484 = vsel %vm908, %v1207, 0.0
          %v1485 = vsel %vm909, %v1212, 0.0
          %v1486 = vsel %vm910, %v1212, 0.0
          %v1487 = vsel %vm911, %v1212, 0.0
          %v1488 = vsel %vm912, %v1212, 0.0
          %v1489 = vsel %vm913, %v1217, 0.0
          %v1490 = vsel %vm914, %v1217, 0.0
          %v1491 = vsel %vm915, %v1217, 0.0
          %v1492 = vsel %vm916, %v1217, 0.0
          %v1493 = vsel %vm917, %v1222, 0.0
          %v1494 = vsel %vm918, %v1222, 0.0
          %v1495 = vsel %vm919, %v1222, 0.0
          %v1496 = vsel %vm920, %v1222, 0.0
          %v1497 = vsel %vm921, %v1227, 0.0
          %v1498 = vsel %vm922, %v1227, 0.0
          %v1499 = vsel %vm923, %v1227, 0.0
          %v1500 = vsel %vm924, %v1227, 0.0
          %v1501 = vsel %vm925, %v1232, 0.0
          %v1502 = vsel %vm926, %v1232, 0.0
          %v1503 = vsel %vm927, %v1232, 0.0
          %v1504 = vsel %vm928, %v1232, 0.0
          %v1505 = vsel %vm929, %v1237, 0.0
          %v1506 = vsel %vm930, %v1237, 0.0
          %v1507 = vsel %vm931, %v1237, 0.0
          %v1508 = vsel %vm932, %v1237, 0.0
          %v1509 = vsel %vm933, %v1242, 0.0
          %v1510 = vsel %vm934, %v1242, 0.0
          %v1511 = vsel %vm935, %v1242, 0.0
          %v1512 = vsel %vm936, %v1242, 0.0
          %v1513 = vsel %vm937, %v1247, 0.0
          %v1514 = vsel %vm938, %v1247, 0.0
          %v1515 = vsel %vm939, %v1247, 0.0
          %v1516 = vsel %vm940, %v1247, 0.0
          %v1517 = vsel %vm941, %v1252, 0.0
          %v1518 = vsel %vm942, %v1252, 0.0
          %v1519 = vsel %vm943, %v1252, 0.0
          %v1520 = vsel %vm944, %v1252, 0.0
          %v1521 = vsel %vm945, %v1257, 0.0
          %v1522 = vsel %vm946, %v1257, 0.0
          %v1523 = vsel %vm947, %v1257, 0.0
          %v1524 = vsel %vm948, %v1257, 0.0
          %v1525 = vsel %vm949, %v1262, 0.0
          %v1526 = vsel %vm950, %v1262, 0.0
          %v1527 = vsel %vm951, %v1262, 0.0
          %v1528 = vsel %vm952, %v1262, 0.0
          %v1529 = vsel %vm953, %v1267, 0.0
          %v1530 = vsel %vm954, %v1267, 0.0
          %v1531 = vsel %vm955, %v1267, 0.0
          %v1532 = vsel %vm956, %v1267, 0.0
          %v1533 = vsel %vm957, %v1272, 0.0
          %v1534 = vsel %vm958, %v1272, 0.0
          %v1535 = vsel %vm959, %v1272, 0.0
          %v1536 = vsel %vm960, %v1272, 0.0
          %v1537 = vsel %vm961, %v1277, 0.0
          %v1538 = vsel %vm962, %v1277, 0.0
          %v1539 = vsel %vm963, %v1277, 0.0
          %v1540 = vsel %vm964, %v1277, 0.0
          %v1541 = vsel %vm965, %v1282, 0.0
          %v1542 = vsel %vm966, %v1282, 0.0
          %v1543 = vsel %vm967, %v1282, 0.0
          %v1544 = vsel %vm968, %v1282, 0.0
          %v1545 = vsel %vm969, %v1287, 0.0
          %v1546 = vsel %vm970, %v1287, 0.0
          %v1547 = vsel %vm971, %v1287, 0.0
          %v1548 = vsel %vm972, %v1287, 0.0
          %v1549 = vsel %vm973, %v1292, 0.0
          %v1550 = vsel %vm974, %v1292, 0.0
          %v1551 = vsel %vm975, %v1292, 0.0
          %v1552 = vsel %vm976, %v1292, 0.0
          %v1553 = vsel %vm977, %v1297, 0.0
          %v1554 = vsel %vm978, %v1297, 0.0
          %v1555 = vsel %vm979, %v1297, 0.0
          %v1556 = vsel %vm980, %v1297, 0.0
          %v1557 = vsel %vm981, %v1302, 0.0
          %v1558 = vsel %vm982, %v1302, 0.0
          %v1559 = vsel %vm983, %v1302, 0.0
          %v1560 = vsel %vm984, %v1302, 0.0
          %v1561 = vsel %vm985, %v1307, 0.0
          %v1562 = vsel %vm986, %v1307, 0.0
          %v1563 = vsel %vm987, %v1307, 0.0
          %v1564 = vsel %vm988, %v1307, 0.0
          %v1565 = vsub.s32 %v537, 1
          %v1566 = vsub.s32 %v538, 1
          %v1567 = vsub.s32 %v539, 1
          %v1568 = vsub.s32 %v540, 1
          %vm1569 = vcmp.eq.s32.totalorder %v543, %v1565
          %vm1570 = vcmp.eq.s32.totalorder %v543, %v1566
          %vm1571 = vcmp.eq.s32.totalorder %v543, %v1567
          %vm1572 = vcmp.eq.s32.totalorder %v543, %v1568
          %vm1573 = vcmp.eq.s32.totalorder %v546, %v1565
          %vm1574 = vcmp.eq.s32.totalorder %v546, %v1566
          %vm1575 = vcmp.eq.s32.totalorder %v546, %v1567
          %vm1576 = vcmp.eq.s32.totalorder %v546, %v1568
          %vm1577 = vcmp.eq.s32.totalorder %v549, %v1565
          %vm1578 = vcmp.eq.s32.totalorder %v549, %v1566
          %vm1579 = vcmp.eq.s32.totalorder %v549, %v1567
          %vm1580 = vcmp.eq.s32.totalorder %v549, %v1568
          %vm1581 = vcmp.eq.s32.totalorder %v552, %v1565
          %vm1582 = vcmp.eq.s32.totalorder %v552, %v1566
          %vm1583 = vcmp.eq.s32.totalorder %v552, %v1567
          %vm1584 = vcmp.eq.s32.totalorder %v552, %v1568
          %vm1585 = vcmp.eq.s32.totalorder %v555, %v1565
          %vm1586 = vcmp.eq.s32.totalorder %v555, %v1566
          %vm1587 = vcmp.eq.s32.totalorder %v555, %v1567
          %vm1588 = vcmp.eq.s32.totalorder %v555, %v1568
          %vm1589 = vcmp.eq.s32.totalorder %v558, %v1565
          %vm1590 = vcmp.eq.s32.totalorder %v558, %v1566
          %vm1591 = vcmp.eq.s32.totalorder %v558, %v1567
          %vm1592 = vcmp.eq.s32.totalorder %v558, %v1568
          %vm1593 = vcmp.eq.s32.totalorder %v561, %v1565
          %vm1594 = vcmp.eq.s32.totalorder %v561, %v1566
          %vm1595 = vcmp.eq.s32.totalorder %v561, %v1567
          %vm1596 = vcmp.eq.s32.totalorder %v561, %v1568
          %vm1597 = vcmp.eq.s32.totalorder %v564, %v1565
          %vm1598 = vcmp.eq.s32.totalorder %v564, %v1566
          %vm1599 = vcmp.eq.s32.totalorder %v564, %v1567
          %vm1600 = vcmp.eq.s32.totalorder %v564, %v1568
          %vm1601 = vcmp.eq.s32.totalorder %v567, %v1565
          %vm1602 = vcmp.eq.s32.totalorder %v567, %v1566
          %vm1603 = vcmp.eq.s32.totalorder %v567, %v1567
          %vm1604 = vcmp.eq.s32.totalorder %v567, %v1568
          %vm1605 = vcmp.eq.s32.totalorder %v570, %v1565
          %vm1606 = vcmp.eq.s32.totalorder %v570, %v1566
          %vm1607 = vcmp.eq.s32.totalorder %v570, %v1567
          %vm1608 = vcmp.eq.s32.totalorder %v570, %v1568
          %vm1609 = vcmp.eq.s32.totalorder %v573, %v1565
          %vm1610 = vcmp.eq.s32.totalorder %v573, %v1566
          %vm1611 = vcmp.eq.s32.totalorder %v573, %v1567
          %vm1612 = vcmp.eq.s32.totalorder %v573, %v1568
          %vm1613 = vcmp.eq.s32.totalorder %v576, %v1565
          %vm1614 = vcmp.eq.s32.totalorder %v576, %v1566
          %vm1615 = vcmp.eq.s32.totalorder %v576, %v1567
          %vm1616 = vcmp.eq.s32.totalorder %v576, %v1568
          %vm1617 = vcmp.eq.s32.totalorder %v579, %v1565
          %vm1618 = vcmp.eq.s32.totalorder %v579, %v1566
          %vm1619 = vcmp.eq.s32.totalorder %v579, %v1567
          %vm1620 = vcmp.eq.s32.totalorder %v579, %v1568
          %vm1621 = vcmp.eq.s32.totalorder %v582, %v1565
          %vm1622 = vcmp.eq.s32.totalorder %v582, %v1566
          %vm1623 = vcmp.eq.s32.totalorder %v582, %v1567
          %vm1624 = vcmp.eq.s32.totalorder %v582, %v1568
          %vm1625 = vcmp.eq.s32.totalorder %v585, %v1565
          %vm1626 = vcmp.eq.s32.totalorder %v585, %v1566
          %vm1627 = vcmp.eq.s32.totalorder %v585, %v1567
          %vm1628 = vcmp.eq.s32.totalorder %v585, %v1568
          %vm1629 = vcmp.eq.s32.totalorder %v588, %v1565
          %vm1630 = vcmp.eq.s32.totalorder %v588, %v1566
          %vm1631 = vcmp.eq.s32.totalorder %v588, %v1567
          %vm1632 = vcmp.eq.s32.totalorder %v588, %v1568
          %vm1633 = vcmp.eq.s32.totalorder %v591, %v1565
          %vm1634 = vcmp.eq.s32.totalorder %v591, %v1566
          %vm1635 = vcmp.eq.s32.totalorder %v591, %v1567
          %vm1636 = vcmp.eq.s32.totalorder %v591, %v1568
          %vm1637 = vcmp.eq.s32.totalorder %v594, %v1565
          %vm1638 = vcmp.eq.s32.totalorder %v594, %v1566
          %vm1639 = vcmp.eq.s32.totalorder %v594, %v1567
          %vm1640 = vcmp.eq.s32.totalorder %v594, %v1568
          %vm1641 = vcmp.eq.s32.totalorder %v597, %v1565
          %vm1642 = vcmp.eq.s32.totalorder %v597, %v1566
          %vm1643 = vcmp.eq.s32.totalorder %v597, %v1567
          %vm1644 = vcmp.eq.s32.totalorder %v597, %v1568
          %vm1645 = vcmp.eq.s32.totalorder %v600, %v1565
          %vm1646 = vcmp.eq.s32.totalorder %v600, %v1566
          %vm1647 = vcmp.eq.s32.totalorder %v600, %v1567
          %vm1648 = vcmp.eq.s32.totalorder %v600, %v1568
          %vm1649 = vcmp.eq.s32.totalorder %v603, %v1565
          %vm1650 = vcmp.eq.s32.totalorder %v603, %v1566
          %vm1651 = vcmp.eq.s32.totalorder %v603, %v1567
          %vm1652 = vcmp.eq.s32.totalorder %v603, %v1568
          %vm1653 = vcmp.eq.s32.totalorder %v606, %v1565
          %vm1654 = vcmp.eq.s32.totalorder %v606, %v1566
          %vm1655 = vcmp.eq.s32.totalorder %v606, %v1567
          %vm1656 = vcmp.eq.s32.totalorder %v606, %v1568
          %vm1657 = vcmp.eq.s32.totalorder %v609, %v1565
          %vm1658 = vcmp.eq.s32.totalorder %v609, %v1566
          %vm1659 = vcmp.eq.s32.totalorder %v609, %v1567
          %vm1660 = vcmp.eq.s32.totalorder %v609, %v1568
          %vm1661 = vcmp.eq.s32.totalorder %v612, %v1565
          %vm1662 = vcmp.eq.s32.totalorder %v612, %v1566
          %vm1663 = vcmp.eq.s32.totalorder %v612, %v1567
          %vm1664 = vcmp.eq.s32.totalorder %v612, %v1568
          %vm1665 = vcmp.eq.s32.totalorder %v615, %v1565
          %vm1666 = vcmp.eq.s32.totalorder %v615, %v1566
          %vm1667 = vcmp.eq.s32.totalorder %v615, %v1567
          %vm1668 = vcmp.eq.s32.totalorder %v615, %v1568
          %vm1669 = vcmp.eq.s32.totalorder %v618, %v1565
          %vm1670 = vcmp.eq.s32.totalorder %v618, %v1566
          %vm1671 = vcmp.eq.s32.totalorder %v618, %v1567
          %vm1672 = vcmp.eq.s32.totalorder %v618, %v1568
          %vm1673 = vcmp.eq.s32.totalorder %v621, %v1565
          %vm1674 = vcmp.eq.s32.totalorder %v621, %v1566
          %vm1675 = vcmp.eq.s32.totalorder %v621, %v1567
          %vm1676 = vcmp.eq.s32.totalorder %v621, %v1568
          %vm1677 = vcmp.eq.s32.totalorder %v624, %v1565
          %vm1678 = vcmp.eq.s32.totalorder %v624, %v1566
          %vm1679 = vcmp.eq.s32.totalorder %v624, %v1567
          %vm1680 = vcmp.eq.s32.totalorder %v624, %v1568
          %vm1681 = vcmp.eq.s32.totalorder %v627, %v1565
          %vm1682 = vcmp.eq.s32.totalorder %v627, %v1566
          %vm1683 = vcmp.eq.s32.totalorder %v627, %v1567
          %vm1684 = vcmp.eq.s32.totalorder %v627, %v1568
          %vm1685 = vcmp.eq.s32.totalorder %v630, %v1565
          %vm1686 = vcmp.eq.s32.totalorder %v630, %v1566
          %vm1687 = vcmp.eq.s32.totalorder %v630, %v1567
          %vm1688 = vcmp.eq.s32.totalorder %v630, %v1568
          %vm1689 = vcmp.eq.s32.totalorder %v633, %v1565
          %vm1690 = vcmp.eq.s32.totalorder %v633, %v1566
          %vm1691 = vcmp.eq.s32.totalorder %v633, %v1567
          %vm1692 = vcmp.eq.s32.totalorder %v633, %v1568
          %vm1693 = vcmp.eq.s32.totalorder %v636, %v1565
          %vm1694 = vcmp.eq.s32.totalorder %v636, %v1566
          %vm1695 = vcmp.eq.s32.totalorder %v636, %v1567
          %vm1696 = vcmp.eq.s32.totalorder %v636, %v1568
          %vm1697 = vcmp.eq.s32.totalorder %v639, %v1565
          %vm1698 = vcmp.eq.s32.totalorder %v639, %v1566
          %vm1699 = vcmp.eq.s32.totalorder %v639, %v1567
          %vm1700 = vcmp.eq.s32.totalorder %v639, %v1568
          %vm1701 = vcmp.eq.s32.totalorder %v642, %v1565
          %vm1702 = vcmp.eq.s32.totalorder %v642, %v1566
          %vm1703 = vcmp.eq.s32.totalorder %v642, %v1567
          %vm1704 = vcmp.eq.s32.totalorder %v642, %v1568
          %vm1705 = vcmp.eq.s32.totalorder %v645, %v1565
          %vm1706 = vcmp.eq.s32.totalorder %v645, %v1566
          %vm1707 = vcmp.eq.s32.totalorder %v645, %v1567
          %vm1708 = vcmp.eq.s32.totalorder %v645, %v1568
          %vm1709 = vcmp.eq.s32.totalorder %v648, %v1565
          %vm1710 = vcmp.eq.s32.totalorder %v648, %v1566
          %vm1711 = vcmp.eq.s32.totalorder %v648, %v1567
          %vm1712 = vcmp.eq.s32.totalorder %v648, %v1568
          %vm1713 = vcmp.eq.s32.totalorder %v651, %v1565
          %vm1714 = vcmp.eq.s32.totalorder %v651, %v1566
          %vm1715 = vcmp.eq.s32.totalorder %v651, %v1567
          %vm1716 = vcmp.eq.s32.totalorder %v651, %v1568
          %vm1717 = vcmp.eq.s32.totalorder %v654, %v1565
          %vm1718 = vcmp.eq.s32.totalorder %v654, %v1566
          %vm1719 = vcmp.eq.s32.totalorder %v654, %v1567
          %vm1720 = vcmp.eq.s32.totalorder %v654, %v1568
          %vm1721 = vcmp.eq.s32.totalorder %v657, %v1565
          %vm1722 = vcmp.eq.s32.totalorder %v657, %v1566
          %vm1723 = vcmp.eq.s32.totalorder %v657, %v1567
          %vm1724 = vcmp.eq.s32.totalorder %v657, %v1568
          %vm1725 = vcmp.eq.s32.totalorder %v660, %v1565
          %vm1726 = vcmp.eq.s32.totalorder %v660, %v1566
          %vm1727 = vcmp.eq.s32.totalorder %v660, %v1567
          %vm1728 = vcmp.eq.s32.totalorder %v660, %v1568
          %vm1729 = vcmp.eq.s32.totalorder %v663, %v1565
          %vm1730 = vcmp.eq.s32.totalorder %v663, %v1566
          %vm1731 = vcmp.eq.s32.totalorder %v663, %v1567
          %vm1732 = vcmp.eq.s32.totalorder %v663, %v1568
          %vm1733 = vcmp.eq.s32.totalorder %v666, %v1565
          %vm1734 = vcmp.eq.s32.totalorder %v666, %v1566
          %vm1735 = vcmp.eq.s32.totalorder %v666, %v1567
          %vm1736 = vcmp.eq.s32.totalorder %v666, %v1568
          %vm1737 = vcmp.eq.s32.totalorder %v669, %v1565
          %vm1738 = vcmp.eq.s32.totalorder %v669, %v1566
          %vm1739 = vcmp.eq.s32.totalorder %v669, %v1567
          %vm1740 = vcmp.eq.s32.totalorder %v669, %v1568
          %vm1741 = vcmp.eq.s32.totalorder %v672, %v1565
          %vm1742 = vcmp.eq.s32.totalorder %v672, %v1566
          %vm1743 = vcmp.eq.s32.totalorder %v672, %v1567
          %vm1744 = vcmp.eq.s32.totalorder %v672, %v1568
          %vm1745 = vcmp.eq.s32.totalorder %v675, %v1565
          %vm1746 = vcmp.eq.s32.totalorder %v675, %v1566
          %vm1747 = vcmp.eq.s32.totalorder %v675, %v1567
          %vm1748 = vcmp.eq.s32.totalorder %v675, %v1568
          %vm1749 = vcmp.eq.s32.totalorder %v678, %v1565
          %vm1750 = vcmp.eq.s32.totalorder %v678, %v1566
          %vm1751 = vcmp.eq.s32.totalorder %v678, %v1567
          %vm1752 = vcmp.eq.s32.totalorder %v678, %v1568
          %vm1753 = vcmp.eq.s32.totalorder %v681, %v1565
          %vm1754 = vcmp.eq.s32.totalorder %v681, %v1566
          %vm1755 = vcmp.eq.s32.totalorder %v681, %v1567
          %vm1756 = vcmp.eq.s32.totalorder %v681, %v1568
          %vm1757 = vcmp.eq.s32.totalorder %v684, %v1565
          %vm1758 = vcmp.eq.s32.totalorder %v684, %v1566
          %vm1759 = vcmp.eq.s32.totalorder %v684, %v1567
          %vm1760 = vcmp.eq.s32.totalorder %v684, %v1568
          %vm1761 = vcmp.eq.s32.totalorder %v687, %v1565
          %vm1762 = vcmp.eq.s32.totalorder %v687, %v1566
          %vm1763 = vcmp.eq.s32.totalorder %v687, %v1567
          %vm1764 = vcmp.eq.s32.totalorder %v687, %v1568
          %vm1765 = vcmp.eq.s32.totalorder %v690, %v1565
          %vm1766 = vcmp.eq.s32.totalorder %v690, %v1566
          %vm1767 = vcmp.eq.s32.totalorder %v690, %v1567
          %vm1768 = vcmp.eq.s32.totalorder %v690, %v1568
          %vm1769 = vcmp.eq.s32.totalorder %v693, %v1565
          %vm1770 = vcmp.eq.s32.totalorder %v693, %v1566
          %vm1771 = vcmp.eq.s32.totalorder %v693, %v1567
          %vm1772 = vcmp.eq.s32.totalorder %v693, %v1568
          %vm1773 = vcmp.eq.s32.totalorder %v696, %v1565
          %vm1774 = vcmp.eq.s32.totalorder %v696, %v1566
          %vm1775 = vcmp.eq.s32.totalorder %v696, %v1567
          %vm1776 = vcmp.eq.s32.totalorder %v696, %v1568
          %vm1777 = vcmp.eq.s32.totalorder %v699, %v1565
          %vm1778 = vcmp.eq.s32.totalorder %v699, %v1566
          %vm1779 = vcmp.eq.s32.totalorder %v699, %v1567
          %vm1780 = vcmp.eq.s32.totalorder %v699, %v1568
          %vm1781 = vcmp.eq.s32.totalorder %v702, %v1565
          %vm1782 = vcmp.eq.s32.totalorder %v702, %v1566
          %vm1783 = vcmp.eq.s32.totalorder %v702, %v1567
          %vm1784 = vcmp.eq.s32.totalorder %v702, %v1568
          %vm1785 = vcmp.eq.s32.totalorder %v705, %v1565
          %vm1786 = vcmp.eq.s32.totalorder %v705, %v1566
          %vm1787 = vcmp.eq.s32.totalorder %v705, %v1567
          %vm1788 = vcmp.eq.s32.totalorder %v705, %v1568
          %vm1789 = vcmp.eq.s32.totalorder %v708, %v1565
          %vm1790 = vcmp.eq.s32.totalorder %v708, %v1566
          %vm1791 = vcmp.eq.s32.totalorder %v708, %v1567
          %vm1792 = vcmp.eq.s32.totalorder %v708, %v1568
          %vm1793 = vcmp.eq.s32.totalorder %v711, %v1565
          %vm1794 = vcmp.eq.s32.totalorder %v711, %v1566
          %vm1795 = vcmp.eq.s32.totalorder %v711, %v1567
          %vm1796 = vcmp.eq.s32.totalorder %v711, %v1568
          %vm1797 = vcmp.eq.s32.totalorder %v714, %v1565
          %vm1798 = vcmp.eq.s32.totalorder %v714, %v1566
          %vm1799 = vcmp.eq.s32.totalorder %v714, %v1567
          %vm1800 = vcmp.eq.s32.totalorder %v714, %v1568
          %vm1801 = vcmp.eq.s32.totalorder %v717, %v1565
          %vm1802 = vcmp.eq.s32.totalorder %v717, %v1566
          %vm1803 = vcmp.eq.s32.totalorder %v717, %v1567
          %vm1804 = vcmp.eq.s32.totalorder %v717, %v1568
          %vm1805 = vcmp.eq.s32.totalorder %v720, %v1565
          %vm1806 = vcmp.eq.s32.totalorder %v720, %v1566
          %vm1807 = vcmp.eq.s32.totalorder %v720, %v1567
          %vm1808 = vcmp.eq.s32.totalorder %v720, %v1568
          %vm1809 = vcmp.eq.s32.totalorder %v723, %v1565
          %vm1810 = vcmp.eq.s32.totalorder %v723, %v1566
          %vm1811 = vcmp.eq.s32.totalorder %v723, %v1567
          %vm1812 = vcmp.eq.s32.totalorder %v723, %v1568
          %vm1813 = vcmp.eq.s32.totalorder %v726, %v1565
          %vm1814 = vcmp.eq.s32.totalorder %v726, %v1566
          %vm1815 = vcmp.eq.s32.totalorder %v726, %v1567
          %vm1816 = vcmp.eq.s32.totalorder %v726, %v1568
          %vm1817 = vcmp.eq.s32.totalorder %v729, %v1565
          %vm1818 = vcmp.eq.s32.totalorder %v729, %v1566
          %vm1819 = vcmp.eq.s32.totalorder %v729, %v1567
          %vm1820 = vcmp.eq.s32.totalorder %v729, %v1568
          %vm1821 = vcmp.eq.s32.totalorder %v732, %v1565
          %vm1822 = vcmp.eq.s32.totalorder %v732, %v1566
          %vm1823 = vcmp.eq.s32.totalorder %v732, %v1567
          %vm1824 = vcmp.eq.s32.totalorder %v732, %v1568
          %1825 = vset.pattern.permute.xlu0 1
          %1826 = vperm.xlu0 %1825, %v403
          %v1827 = vpop.permute.xlu0 %1826
          %1829 = vset.pattern.permute.xlu0 1
          %1830 = vperm.xlu0 %1829, %v404
          %v1831 = vpop.permute.xlu0 %1830
          %1833 = vset.pattern.permute.xlu0 1
          %1834 = vperm.xlu0 %1833, %v405
          %v1835 = vpop.permute.xlu0 %1834
          %1837 = vset.pattern.permute.xlu0 1
          %1838 = vperm.xlu0 %1837, %v406
          %v1839 = vpop.permute.xlu0 %1838
          %1841 = vset.pattern.permute.xlu0 1
          %1842 = vperm.xlu0 %1841, %v407
          %v1843 = vpop.permute.xlu0 %1842
          %1845 = vset.pattern.permute.xlu0 1
          %1846 = vperm.xlu0 %1845, %v408
          %v1847 = vpop.permute.xlu0 %1846
          %1849 = vset.pattern.permute.xlu0 1
          %1850 = vperm.xlu0 %1849, %v409
          %v1851 = vpop.permute.xlu0 %1850
          %1853 = vset.pattern.permute.xlu0 1
          %1854 = vperm.xlu0 %1853, %v410
          %v1855 = vpop.permute.xlu0 %1854
          %1857 = vset.pattern.permute.xlu0 1
          %1858 = vperm.xlu0 %1857, %v411
          %v1859 = vpop.permute.xlu0 %1858
          %1861 = vset.pattern.permute.xlu0 1
          %1862 = vperm.xlu0 %1861, %v412
          %v1863 = vpop.permute.xlu0 %1862
          %1865 = vset.pattern.permute.xlu0 1
          %1866 = vperm.xlu0 %1865, %v413
          %v1867 = vpop.permute.xlu0 %1866
          %1869 = vset.pattern.permute.xlu0 1
          %1870 = vperm.xlu0 %1869, %v414
          %v1871 = vpop.permute.xlu0 %1870
          %1873 = vset.pattern.permute.xlu0 1
          %1874 = vperm.xlu0 %1873, %v415
          %v1875 = vpop.permute.xlu0 %1874
          %1877 = vset.pattern.permute.xlu0 1
          %1878 = vperm.xlu0 %1877, %v416
          %v1879 = vpop.permute.xlu0 %1878
          %1881 = vset.pattern.permute.xlu0 1
          %1882 = vperm.xlu0 %1881, %v417
          %v1883 = vpop.permute.xlu0 %1882
          %1885 = vset.pattern.permute.xlu0 1
          %1886 = vperm.xlu0 %1885, %v418
          %v1887 = vpop.permute.xlu0 %1886
          %1889 = vset.pattern.permute.xlu0 1
          %1890 = vperm.xlu0 %1889, %v419
          %v1891 = vpop.permute.xlu0 %1890
          %1893 = vset.pattern.permute.xlu0 1
          %1894 = vperm.xlu0 %1893, %v420
          %v1895 = vpop.permute.xlu0 %1894
          %1897 = vset.pattern.permute.xlu0 1
          %1898 = vperm.xlu0 %1897, %v421
          %v1899 = vpop.permute.xlu0 %1898
          %1901 = vset.pattern.permute.xlu0 1
          %1902 = vperm.xlu0 %1901, %v422
          %v1903 = vpop.permute.xlu0 %1902
          %1905 = vset.pattern.permute.xlu0 1
          %1906 = vperm.xlu0 %1905, %v423
          %v1907 = vpop.permute.xlu0 %1906
          %1909 = vset.pattern.permute.xlu0 1
          %1910 = vperm.xlu0 %1909, %v424
          %v1911 = vpop.permute.xlu0 %1910
          %1913 = vset.pattern.permute.xlu0 1
          %1914 = vperm.xlu0 %1913, %v425
          %v1915 = vpop.permute.xlu0 %1914
          %1917 = vset.pattern.permute.xlu0 1
          %1918 = vperm.xlu0 %1917, %v426
          %v1919 = vpop.permute.xlu0 %1918
          %1921 = vset.pattern.permute.xlu0 1
          %1922 = vperm.xlu0 %1921, %v427
          %v1923 = vpop.permute.xlu0 %1922
          %1925 = vset.pattern.permute.xlu0 1
          %1926 = vperm.xlu0 %1925, %v428
          %v1927 = vpop.permute.xlu0 %1926
          %1929 = vset.pattern.permute.xlu0 1
          %1930 = vperm.xlu0 %1929, %v429
          %v1931 = vpop.permute.xlu0 %1930
          %1933 = vset.pattern.permute.xlu0 1
          %1934 = vperm.xlu0 %1933, %v430
          %v1935 = vpop.permute.xlu0 %1934
          %1937 = vset.pattern.permute.xlu0 1
          %1938 = vperm.xlu0 %1937, %v431
          %v1939 = vpop.permute.xlu0 %1938
          %1941 = vset.pattern.permute.xlu0 1
          %1942 = vperm.xlu0 %1941, %v432
          %v1943 = vpop.permute.xlu0 %1942
          %1945 = vset.pattern.permute.xlu0 1
          %1946 = vperm.xlu0 %1945, %v433
          %v1947 = vpop.permute.xlu0 %1946
          %1949 = vset.pattern.permute.xlu0 1
          %1950 = vperm.xlu0 %1949, %v434
          %v1951 = vpop.permute.xlu0 %1950
          %1953 = vset.pattern.permute.xlu0 1
          %1954 = vperm.xlu0 %1953, %v435
          %v1955 = vpop.permute.xlu0 %1954
          %1957 = vset.pattern.permute.xlu0 1
          %1958 = vperm.xlu0 %1957, %v436
          %v1959 = vpop.permute.xlu0 %1958
          %1961 = vset.pattern.permute.xlu0 1
          %1962 = vperm.xlu0 %1961, %v437
          %v1963 = vpop.permute.xlu0 %1962
          %1965 = vset.pattern.permute.xlu0 1
          %1966 = vperm.xlu0 %1965, %v438
          %v1967 = vpop.permute.xlu0 %1966
          %1969 = vset.pattern.permute.xlu0 1
          %1970 = vperm.xlu0 %1969, %v439
          %v1971 = vpop.permute.xlu0 %1970
          %1973 = vset.pattern.permute.xlu0 1
          %1974 = vperm.xlu0 %1973, %v440
          %v1975 = vpop.permute.xlu0 %1974
          %1977 = vset.pattern.permute.xlu0 1
          %1978 = vperm.xlu0 %1977, %v441
          %v1979 = vpop.permute.xlu0 %1978
          %1981 = vset.pattern.permute.xlu0 1
          %1982 = vperm.xlu0 %1981, %v442
          %v1983 = vpop.permute.xlu0 %1982
          %1985 = vset.pattern.permute.xlu0 1
          %1986 = vperm.xlu0 %1985, %v443
          %v1987 = vpop.permute.xlu0 %1986
          %1989 = vset.pattern.permute.xlu0 1
          %1990 = vperm.xlu0 %1989, %v444
          %v1991 = vpop.permute.xlu0 %1990
          %1993 = vset.pattern.permute.xlu0 1
          %1994 = vperm.xlu0 %1993, %v445
          %v1995 = vpop.permute.xlu0 %1994
          %1997 = vset.pattern.permute.xlu0 1
          %1998 = vperm.xlu0 %1997, %v446
          %v1999 = vpop.permute.xlu0 %1998
          %2001 = vset.pattern.permute.xlu0 1
          %2002 = vperm.xlu0 %2001, %v447
          %v2003 = vpop.permute.xlu0 %2002
          %2005 = vset.pattern.permute.xlu0 1
          %2006 = vperm.xlu0 %2005, %v448
          %v2007 = vpop.permute.xlu0 %2006
          %2009 = vset.pattern.permute.xlu0 1
          %2010 = vperm.xlu0 %2009, %v449
          %v2011 = vpop.permute.xlu0 %2010
          %2013 = vset.pattern.permute.xlu0 1
          %2014 = vperm.xlu0 %2013, %v450
          %v2015 = vpop.permute.xlu0 %2014
          %2017 = vset.pattern.permute.xlu0 1
          %2018 = vperm.xlu0 %2017, %v451
          %v2019 = vpop.permute.xlu0 %2018
          %2021 = vset.pattern.permute.xlu0 1
          %2022 = vperm.xlu0 %2021, %v452
          %v2023 = vpop.permute.xlu0 %2022
          %2025 = vset.pattern.permute.xlu0 1
          %2026 = vperm.xlu0 %2025, %v453
          %v2027 = vpop.permute.xlu0 %2026
          %2029 = vset.pattern.permute.xlu0 1
          %2030 = vperm.xlu0 %2029, %v454
          %v2031 = vpop.permute.xlu0 %2030
          %2033 = vset.pattern.permute.xlu0 1
          %2034 = vperm.xlu0 %2033, %v455
          %v2035 = vpop.permute.xlu0 %2034
          %2037 = vset.pattern.permute.xlu0 1
          %2038 = vperm.xlu0 %2037, %v456
          %v2039 = vpop.permute.xlu0 %2038
          %2041 = vset.pattern.permute.xlu0 1
          %2042 = vperm.xlu0 %2041, %v457
          %v2043 = vpop.permute.xlu0 %2042
          %2045 = vset.pattern.permute.xlu0 1
          %2046 = vperm.xlu0 %2045, %v458
          %v2047 = vpop.permute.xlu0 %2046
          %2049 = vset.pattern.permute.xlu0 1
          %2050 = vperm.xlu0 %2049, %v459
          %v2051 = vpop.permute.xlu0 %2050
          %2053 = vset.pattern.permute.xlu0 1
          %2054 = vperm.xlu0 %2053, %v460
          %v2055 = vpop.permute.xlu0 %2054
          %2057 = vset.pattern.permute.xlu0 1
          %2058 = vperm.xlu0 %2057, %v461
          %v2059 = vpop.permute.xlu0 %2058
          %2061 = vset.pattern.permute.xlu0 1
          %2062 = vperm.xlu0 %2061, %v462
          %v2063 = vpop.permute.xlu0 %2062
          %2065 = vset.pattern.permute.xlu0 1
          %2066 = vperm.xlu0 %2065, %v463
          %v2067 = vpop.permute.xlu0 %2066
          %2069 = vset.pattern.permute.xlu0 1
          %2070 = vperm.xlu0 %2069, %v464
          %v2071 = vpop.permute.xlu0 %2070
          %2073 = vset.pattern.permute.xlu0 1
          %2074 = vperm.xlu0 %2073, %v465
          %v2075 = vpop.permute.xlu0 %2074
          %2077 = vset.pattern.permute.xlu0 1
          %2078 = vperm.xlu0 %2077, %v466
          %v2079 = vpop.permute.xlu0 %2078
          %v2081 = vsel %vm1569, %v1827, 0.0
          %v2082 = vsel %vm1570, %v1827, 0.0
          %v2083 = vsel %vm1571, %v1827, 0.0
          %v2084 = vsel %vm1572, %v1827, 0.0
          %v2085 = vsel %vm1573, %v1831, 0.0
          %v2086 = vsel %vm1574, %v1831, 0.0
          %v2087 = vsel %vm1575, %v1831, 0.0
          %v2088 = vsel %vm1576, %v1831, 0.0
          %v2089 = vsel %vm1577, %v1835, 0.0
          %v2090 = vsel %vm1578, %v1835, 0.0
          %v2091 = vsel %vm1579, %v1835, 0.0
          %v2092 = vsel %vm1580, %v1835, 0.0
          %v2093 = vsel %vm1581, %v1839, 0.0
          %v2094 = vsel %vm1582, %v1839, 0.0
          %v2095 = vsel %vm1583, %v1839, 0.0
          %v2096 = vsel %vm1584, %v1839, 0.0
          %v2097 = vsel %vm1585, %v1843, 0.0
          %v2098 = vsel %vm1586, %v1843, 0.0
          %v2099 = vsel %vm1587, %v1843, 0.0
          %v2100 = vsel %vm1588, %v1843, 0.0
          %v2101 = vsel %vm1589, %v1847, 0.0
          %v2102 = vsel %vm1590, %v1847, 0.0
          %v2103 = vsel %vm1591, %v1847, 0.0
          %v2104 = vsel %vm1592, %v1847, 0.0
          %v2105 = vsel %vm1593, %v1851, 0.0
          %v2106 = vsel %vm1594, %v1851, 0.0
          %v2107 = vsel %vm1595, %v1851, 0.0
          %v2108 = vsel %vm1596, %v1851, 0.0
          %v2109 = vsel %vm1597, %v1855, 0.0
          %v2110 = vsel %vm1598, %v1855, 0.0
          %v2111 = vsel %vm1599, %v1855, 0.0
          %v2112 = vsel %vm1600, %v1855, 0.0
          %v2113 = vsel %vm1601, %v1859, 0.0
          %v2114 = vsel %vm1602, %v1859, 0.0
          %v2115 = vsel %vm1603, %v1859, 0.0
          %v2116 = vsel %vm1604, %v1859, 0.0
          %v2117 = vsel %vm1605, %v1863, 0.0
          %v2118 = vsel %vm1606, %v1863, 0.0
          %v2119 = vsel %vm1607, %v1863, 0.0
          %v2120 = vsel %vm1608, %v1863, 0.0
          %v2121 = vsel %vm1609, %v1867, 0.0
          %v2122 = vsel %vm1610, %v1867, 0.0
          %v2123 = vsel %vm1611, %v1867, 0.0
          %v2124 = vsel %vm1612, %v1867, 0.0
          %v2125 = vsel %vm1613, %v1871, 0.0
          %v2126 = vsel %vm1614, %v1871, 0.0
          %v2127 = vsel %vm1615, %v1871, 0.0
          %v2128 = vsel %vm1616, %v1871, 0.0
          %v2129 = vsel %vm1617, %v1875, 0.0
          %v2130 = vsel %vm1618, %v1875, 0.0
          %v2131 = vsel %vm1619, %v1875, 0.0
          %v2132 = vsel %vm1620, %v1875, 0.0
          %v2133 = vsel %vm1621, %v1879, 0.0
          %v2134 = vsel %vm1622, %v1879, 0.0
          %v2135 = vsel %vm1623, %v1879, 0.0
          %v2136 = vsel %vm1624, %v1879, 0.0
          %v2137 = vsel %vm1625, %v1883, 0.0
          %v2138 = vsel %vm1626, %v1883, 0.0
          %v2139 = vsel %vm1627, %v1883, 0.0
          %v2140 = vsel %vm1628, %v1883, 0.0
          %v2141 = vsel %vm1629, %v1887, 0.0
          %v2142 = vsel %vm1630, %v1887, 0.0
          %v2143 = vsel %vm1631, %v1887, 0.0
          %v2144 = vsel %vm1632, %v1887, 0.0
          %v2145 = vsel %vm1633, %v1891, 0.0
          %v2146 = vsel %vm1634, %v1891, 0.0
          %v2147 = vsel %vm1635, %v1891, 0.0
          %v2148 = vsel %vm1636, %v1891, 0.0
          %v2149 = vsel %vm1637, %v1895, 0.0
          %v2150 = vsel %vm1638, %v1895, 0.0
          %v2151 = vsel %vm1639, %v1895, 0.0
          %v2152 = vsel %vm1640, %v1895, 0.0
          %v2153 = vsel %vm1641, %v1899, 0.0
          %v2154 = vsel %vm1642, %v1899, 0.0
          %v2155 = vsel %vm1643, %v1899, 0.0
          %v2156 = vsel %vm1644, %v1899, 0.0
          %v2157 = vsel %vm1645, %v1903, 0.0
          %v2158 = vsel %vm1646, %v1903, 0.0
          %v2159 = vsel %vm1647, %v1903, 0.0
          %v2160 = vsel %vm1648, %v1903, 0.0
          %v2161 = vsel %vm1649, %v1907, 0.0
          %v2162 = vsel %vm1650, %v1907, 0.0
          %v2163 = vsel %vm1651, %v1907, 0.0
          %v2164 = vsel %vm1652, %v1907, 0.0
          %v2165 = vsel %vm1653, %v1911, 0.0
          %v2166 = vsel %vm1654, %v1911, 0.0
          %v2167 = vsel %vm1655, %v1911, 0.0
          %v2168 = vsel %vm1656, %v1911, 0.0
          %v2169 = vsel %vm1657, %v1915, 0.0
          %v2170 = vsel %vm1658, %v1915, 0.0
          %v2171 = vsel %vm1659, %v1915, 0.0
          %v2172 = vsel %vm1660, %v1915, 0.0
          %v2173 = vsel %vm1661, %v1919, 0.0
          %v2174 = vsel %vm1662, %v1919, 0.0
          %v2175 = vsel %vm1663, %v1919, 0.0
          %v2176 = vsel %vm1664, %v1919, 0.0
          %v2177 = vsel %vm1665, %v1923, 0.0
          %v2178 = vsel %vm1666, %v1923, 0.0
          %v2179 = vsel %vm1667, %v1923, 0.0
          %v2180 = vsel %vm1668, %v1923, 0.0
          %v2181 = vsel %vm1669, %v1927, 0.0
          %v2182 = vsel %vm1670, %v1927, 0.0
          %v2183 = vsel %vm1671, %v1927, 0.0
          %v2184 = vsel %vm1672, %v1927, 0.0
          %v2185 = vsel %vm1673, %v1931, 0.0
          %v2186 = vsel %vm1674, %v1931, 0.0
          %v2187 = vsel %vm1675, %v1931, 0.0
          %v2188 = vsel %vm1676, %v1931, 0.0
          %v2189 = vsel %vm1677, %v1935, 0.0
          %v2190 = vsel %vm1678, %v1935, 0.0
          %v2191 = vsel %vm1679, %v1935, 0.0
          %v2192 = vsel %vm1680, %v1935, 0.0
          %v2193 = vsel %vm1681, %v1939, 0.0
          %v2194 = vsel %vm1682, %v1939, 0.0
          %v2195 = vsel %vm1683, %v1939, 0.0
          %v2196 = vsel %vm1684, %v1939, 0.0
          %v2197 = vsel %vm1685, %v1943, 0.0
          %v2198 = vsel %vm1686, %v1943, 0.0
          %v2199 = vsel %vm1687, %v1943, 0.0
          %v2200 = vsel %vm1688, %v1943, 0.0
          %v2201 = vsel %vm1689, %v1947, 0.0
          %v2202 = vsel %vm1690, %v1947, 0.0
          %v2203 = vsel %vm1691, %v1947, 0.0
          %v2204 = vsel %vm1692, %v1947, 0.0
          %v2205 = vsel %vm1693, %v1951, 0.0
          %v2206 = vsel %vm1694, %v1951, 0.0
          %v2207 = vsel %vm1695, %v1951, 0.0
          %v2208 = vsel %vm1696, %v1951, 0.0
          %v2209 = vsel %vm1697, %v1955, 0.0
          %v2210 = vsel %vm1698, %v1955, 0.0
          %v2211 = vsel %vm1699, %v1955, 0.0
          %v2212 = vsel %vm1700, %v1955, 0.0
          %v2213 = vsel %vm1701, %v1959, 0.0
          %v2214 = vsel %vm1702, %v1959, 0.0
          %v2215 = vsel %vm1703, %v1959, 0.0
          %v2216 = vsel %vm1704, %v1959, 0.0
          %v2217 = vsel %vm1705, %v1963, 0.0
          %v2218 = vsel %vm1706, %v1963, 0.0
          %v2219 = vsel %vm1707, %v1963, 0.0
          %v2220 = vsel %vm1708, %v1963, 0.0
          %v2221 = vsel %vm1709, %v1967, 0.0
          %v2222 = vsel %vm1710, %v1967, 0.0
          %v2223 = vsel %vm1711, %v1967, 0.0
          %v2224 = vsel %vm1712, %v1967, 0.0
          %v2225 = vsel %vm1713, %v1971, 0.0
          %v2226 = vsel %vm1714, %v1971, 0.0
          %v2227 = vsel %vm1715, %v1971, 0.0
          %v2228 = vsel %vm1716, %v1971, 0.0
          %v2229 = vsel %vm1717, %v1975, 0.0
          %v2230 = vsel %vm1718, %v1975, 0.0
          %v2231 = vsel %vm1719, %v1975, 0.0
          %v2232 = vsel %vm1720, %v1975, 0.0
          %v2233 = vsel %vm1721, %v1979, 0.0
          %v2234 = vsel %vm1722, %v1979, 0.0
          %v2235 = vsel %vm1723, %v1979, 0.0
          %v2236 = vsel %vm1724, %v1979, 0.0
          %v2237 = vsel %vm1725, %v1983, 0.0
          %v2238 = vsel %vm1726, %v1983, 0.0
          %v2239 = vsel %vm1727, %v1983, 0.0
          %v2240 = vsel %vm1728, %v1983, 0.0
          %v2241 = vsel %vm1729, %v1987, 0.0
          %v2242 = vsel %vm1730, %v1987, 0.0
          %v2243 = vsel %vm1731, %v1987, 0.0
          %v2244 = vsel %vm1732, %v1987, 0.0
          %v2245 = vsel %vm1733, %v1991, 0.0
          %v2246 = vsel %vm1734, %v1991, 0.0
          %v2247 = vsel %vm1735, %v1991, 0.0
          %v2248 = vsel %vm1736, %v1991, 0.0
          %v2249 = vsel %vm1737, %v1995, 0.0
          %v2250 = vsel %vm1738, %v1995, 0.0
          %v2251 = vsel %vm1739, %v1995, 0.0
          %v2252 = vsel %vm1740, %v1995, 0.0
          %v2253 = vsel %vm1741, %v1999, 0.0
          %v2254 = vsel %vm1742, %v1999, 0.0
          %v2255 = vsel %vm1743, %v1999, 0.0
          %v2256 = vsel %vm1744, %v1999, 0.0
          %v2257 = vsel %vm1745, %v2003, 0.0
          %v2258 = vsel %vm1746, %v2003, 0.0
          %v2259 = vsel %vm1747, %v2003, 0.0
          %v2260 = vsel %vm1748, %v2003, 0.0
          %v2261 = vsel %vm1749, %v2007, 0.0
          %v2262 = vsel %vm1750, %v2007, 0.0
          %v2263 = vsel %vm1751, %v2007, 0.0
          %v2264 = vsel %vm1752, %v2007, 0.0
          %v2265 = vsel %vm1753, %v2011, 0.0
          %v2266 = vsel %vm1754, %v2011, 0.0
          %v2267 = vsel %vm1755, %v2011, 0.0
          %v2268 = vsel %vm1756, %v2011, 0.0
          %v2269 = vsel %vm1757, %v2015, 0.0
          %v2270 = vsel %vm1758, %v2015, 0.0
          %v2271 = vsel %vm1759, %v2015, 0.0
          %v2272 = vsel %vm1760, %v2015, 0.0
          %v2273 = vsel %vm1761, %v2019, 0.0
          %v2274 = vsel %vm1762, %v2019, 0.0
          %v2275 = vsel %vm1763, %v2019, 0.0
          %v2276 = vsel %vm1764, %v2019, 0.0
          %v2277 = vsel %vm1765, %v2023, 0.0
          %v2278 = vsel %vm1766, %v2023, 0.0
          %v2279 = vsel %vm1767, %v2023, 0.0
          %v2280 = vsel %vm1768, %v2023, 0.0
          %v2281 = vsel %vm1769, %v2027, 0.0
          %v2282 = vsel %vm1770, %v2027, 0.0
          %v2283 = vsel %vm1771, %v2027, 0.0
          %v2284 = vsel %vm1772, %v2027, 0.0
          %v2285 = vsel %vm1773, %v2031, 0.0
          %v2286 = vsel %vm1774, %v2031, 0.0
          %v2287 = vsel %vm1775, %v2031, 0.0
          %v2288 = vsel %vm1776, %v2031, 0.0
          %v2289 = vsel %vm1777, %v2035, 0.0
          %v2290 = vsel %vm1778, %v2035, 0.0
          %v2291 = vsel %vm1779, %v2035, 0.0
          %v2292 = vsel %vm1780, %v2035, 0.0
          %v2293 = vsel %vm1781, %v2039, 0.0
          %v2294 = vsel %vm1782, %v2039, 0.0
          %v2295 = vsel %vm1783, %v2039, 0.0
          %v2296 = vsel %vm1784, %v2039, 0.0
          %v2297 = vsel %vm1785, %v2043, 0.0
          %v2298 = vsel %vm1786, %v2043, 0.0
          %v2299 = vsel %vm1787, %v2043, 0.0
          %v2300 = vsel %vm1788, %v2043, 0.0
          %v2301 = vsel %vm1789, %v2047, 0.0
          %v2302 = vsel %vm1790, %v2047, 0.0
          %v2303 = vsel %vm1791, %v2047, 0.0
          %v2304 = vsel %vm1792, %v2047, 0.0
          %v2305 = vsel %vm1793, %v2051, 0.0
          %v2306 = vsel %vm1794, %v2051, 0.0
          %v2307 = vsel %vm1795, %v2051, 0.0
          %v2308 = vsel %vm1796, %v2051, 0.0
          %v2309 = vsel %vm1797, %v2055, 0.0
          %v2310 = vsel %vm1798, %v2055, 0.0
          %v2311 = vsel %vm1799, %v2055, 0.0
          %v2312 = vsel %vm1800, %v2055, 0.0
          %v2313 = vsel %vm1801, %v2059, 0.0
          %v2314 = vsel %vm1802, %v2059, 0.0
          %v2315 = vsel %vm1803, %v2059, 0.0
          %v2316 = vsel %vm1804, %v2059, 0.0
          %v2317 = vsel %vm1805, %v2063, 0.0
          %v2318 = vsel %vm1806, %v2063, 0.0
          %v2319 = vsel %vm1807, %v2063, 0.0
          %v2320 = vsel %vm1808, %v2063, 0.0
          %v2321 = vsel %vm1809, %v2067, 0.0
          %v2322 = vsel %vm1810, %v2067, 0.0
          %v2323 = vsel %vm1811, %v2067, 0.0
          %v2324 = vsel %vm1812, %v2067, 0.0
          %v2325 = vsel %vm1813, %v2071, 0.0
          %v2326 = vsel %vm1814, %v2071, 0.0
          %v2327 = vsel %vm1815, %v2071, 0.0
          %v2328 = vsel %vm1816, %v2071, 0.0
          %v2329 = vsel %vm1817, %v2075, 0.0
          %v2330 = vsel %vm1818, %v2075, 0.0
          %v2331 = vsel %vm1819, %v2075, 0.0
          %v2332 = vsel %vm1820, %v2075, 0.0
          %v2333 = vsel %vm1821, %v2079, 0.0
          %v2334 = vsel %vm1822, %v2079, 0.0
          %v2335 = vsel %vm1823, %v2079, 0.0
          %v2336 = vsel %vm1824, %v2079, 0.0
          %v2337 = vadd.f32 %v1309, %v2081
          %v2338 = vadd.f32 %v1310, %v2082
          %v2339 = vadd.f32 %v1311, %v2083
          %v2340 = vadd.f32 %v1312, %v2084
          %v2341 = vadd.f32 %v1313, %v2085
          %v2342 = vadd.f32 %v1314, %v2086
          %v2343 = vadd.f32 %v1315, %v2087
          %v2344 = vadd.f32 %v1316, %v2088
          %v2345 = vadd.f32 %v1317, %v2089
          %v2346 = vadd.f32 %v1318, %v2090
          %v2347 = vadd.f32 %v1319, %v2091
          %v2348 = vadd.f32 %v1320, %v2092
          %v2349 = vadd.f32 %v1321, %v2093
          %v2350 = vadd.f32 %v1322, %v2094
          %v2351 = vadd.f32 %v1323, %v2095
          %v2352 = vadd.f32 %v1324, %v2096
          %v2353 = vadd.f32 %v1325, %v2097
          %v2354 = vadd.f32 %v1326, %v2098
          %v2355 = vadd.f32 %v1327, %v2099
          %v2356 = vadd.f32 %v1328, %v2100
          %v2357 = vadd.f32 %v1329, %v2101
          %v2358 = vadd.f32 %v1330, %v2102
          %v2359 = vadd.f32 %v1331, %v2103
          %v2360 = vadd.f32 %v1332, %v2104
          %v2361 = vadd.f32 %v1333, %v2105
          %v2362 = vadd.f32 %v1334, %v2106
          %v2363 = vadd.f32 %v1335, %v2107
          %v2364 = vadd.f32 %v1336, %v2108
          %v2365 = vadd.f32 %v1337, %v2109
          %v2366 = vadd.f32 %v1338, %v2110
          %v2367 = vadd.f32 %v1339, %v2111
          %v2368 = vadd.f32 %v1340, %v2112
          %v2369 = vadd.f32 %v1341, %v2113
          %v2370 = vadd.f32 %v1342, %v2114
          %v2371 = vadd.f32 %v1343, %v2115
          %v2372 = vadd.f32 %v1344, %v2116
          %v2373 = vadd.f32 %v1345, %v2117
          %v2374 = vadd.f32 %v1346, %v2118
          %v2375 = vadd.f32 %v1347, %v2119
          %v2376 = vadd.f32 %v1348, %v2120
          %v2377 = vadd.f32 %v1349, %v2121
          %v2378 = vadd.f32 %v1350, %v2122
          %v2379 = vadd.f32 %v1351, %v2123
          %v2380 = vadd.f32 %v1352, %v2124
          %v2381 = vadd.f32 %v1353, %v2125
          %v2382 = vadd.f32 %v1354, %v2126
          %v2383 = vadd.f32 %v1355, %v2127
          %v2384 = vadd.f32 %v1356, %v2128
          %v2385 = vadd.f32 %v1357, %v2129
          %v2386 = vadd.f32 %v1358, %v2130
          %v2387 = vadd.f32 %v1359, %v2131
          %v2388 = vadd.f32 %v1360, %v2132
          %v2389 = vadd.f32 %v1361, %v2133
          %v2390 = vadd.f32 %v1362, %v2134
          %v2391 = vadd.f32 %v1363, %v2135
          %v2392 = vadd.f32 %v1364, %v2136
          %v2393 = vadd.f32 %v1365, %v2137
          %v2394 = vadd.f32 %v1366, %v2138
          %v2395 = vadd.f32 %v1367, %v2139
          %v2396 = vadd.f32 %v1368, %v2140
          %v2397 = vadd.f32 %v1369, %v2141
          %v2398 = vadd.f32 %v1370, %v2142
          %v2399 = vadd.f32 %v1371, %v2143
          %v2400 = vadd.f32 %v1372, %v2144
          %v2401 = vadd.f32 %v1373, %v2145
          %v2402 = vadd.f32 %v1374, %v2146
          %v2403 = vadd.f32 %v1375, %v2147
          %v2404 = vadd.f32 %v1376, %v2148
          %v2405 = vadd.f32 %v1377, %v2149
          %v2406 = vadd.f32 %v1378, %v2150
          %v2407 = vadd.f32 %v1379, %v2151
          %v2408 = vadd.f32 %v1380, %v2152
          %v2409 = vadd.f32 %v1381, %v2153
          %v2410 = vadd.f32 %v1382, %v2154
          %v2411 = vadd.f32 %v1383, %v2155
          %v2412 = vadd.f32 %v1384, %v2156
          %v2413 = vadd.f32 %v1385, %v2157
          %v2414 = vadd.f32 %v1386, %v2158
          %v2415 = vadd.f32 %v1387, %v2159
          %v2416 = vadd.f32 %v1388, %v2160
          %v2417 = vadd.f32 %v1389, %v2161
          %v2418 = vadd.f32 %v1390, %v2162
          %v2419 = vadd.f32 %v1391, %v2163
          %v2420 = vadd.f32 %v1392, %v2164
          %v2421 = vadd.f32 %v1393, %v2165
          %v2422 = vadd.f32 %v1394, %v2166
          %v2423 = vadd.f32 %v1395, %v2167
          %v2424 = vadd.f32 %v1396, %v2168
          %v2425 = vadd.f32 %v1397, %v2169
          %v2426 = vadd.f32 %v1398, %v2170
          %v2427 = vadd.f32 %v1399, %v2171
          %v2428 = vadd.f32 %v1400, %v2172
          %v2429 = vadd.f32 %v1401, %v2173
          %v2430 = vadd.f32 %v1402, %v2174
          %v2431 = vadd.f32 %v1403, %v2175
          %v2432 = vadd.f32 %v1404, %v2176
          %v2433 = vadd.f32 %v1405, %v2177
          %v2434 = vadd.f32 %v1406, %v2178
          %v2435 = vadd.f32 %v1407, %v2179
          %v2436 = vadd.f32 %v1408, %v2180
          %v2437 = vadd.f32 %v1409, %v2181
          %v2438 = vadd.f32 %v1410, %v2182
          %v2439 = vadd.f32 %v1411, %v2183
          %v2440 = vadd.f32 %v1412, %v2184
          %v2441 = vadd.f32 %v1413, %v2185
          %v2442 = vadd.f32 %v1414, %v2186
          %v2443 = vadd.f32 %v1415, %v2187
          %v2444 = vadd.f32 %v1416, %v2188
          %v2445 = vadd.f32 %v1417, %v2189
          %v2446 = vadd.f32 %v1418, %v2190
          %v2447 = vadd.f32 %v1419, %v2191
          %v2448 = vadd.f32 %v1420, %v2192
          %v2449 = vadd.f32 %v1421, %v2193
          %v2450 = vadd.f32 %v1422, %v2194
          %v2451 = vadd.f32 %v1423, %v2195
          %v2452 = vadd.f32 %v1424, %v2196
          %v2453 = vadd.f32 %v1425, %v2197
          %v2454 = vadd.f32 %v1426, %v2198
          %v2455 = vadd.f32 %v1427, %v2199
          %v2456 = vadd.f32 %v1428, %v2200
          %v2457 = vadd.f32 %v1429, %v2201
          %v2458 = vadd.f32 %v1430, %v2202
          %v2459 = vadd.f32 %v1431, %v2203
          %v2460 = vadd.f32 %v1432, %v2204
          %v2461 = vadd.f32 %v1433, %v2205
          %v2462 = vadd.f32 %v1434, %v2206
          %v2463 = vadd.f32 %v1435, %v2207
          %v2464 = vadd.f32 %v1436, %v2208
          %v2465 = vadd.f32 %v1437, %v2209
          %v2466 = vadd.f32 %v1438, %v2210
          %v2467 = vadd.f32 %v1439, %v2211
          %v2468 = vadd.f32 %v1440, %v2212
          %v2469 = vadd.f32 %v1441, %v2213
          %v2470 = vadd.f32 %v1442, %v2214
          %v2471 = vadd.f32 %v1443, %v2215
          %v2472 = vadd.f32 %v1444, %v2216
          %v2473 = vadd.f32 %v1445, %v2217
          %v2474 = vadd.f32 %v1446, %v2218
          %v2475 = vadd.f32 %v1447, %v2219
          %v2476 = vadd.f32 %v1448, %v2220
          %v2477 = vadd.f32 %v1449, %v2221
          %v2478 = vadd.f32 %v1450, %v2222
          %v2479 = vadd.f32 %v1451, %v2223
          %v2480 = vadd.f32 %v1452, %v2224
          %v2481 = vadd.f32 %v1453, %v2225
          %v2482 = vadd.f32 %v1454, %v2226
          %v2483 = vadd.f32 %v1455, %v2227
          %v2484 = vadd.f32 %v1456, %v2228
          %v2485 = vadd.f32 %v1457, %v2229
          %v2486 = vadd.f32 %v1458, %v2230
          %v2487 = vadd.f32 %v1459, %v2231
          %v2488 = vadd.f32 %v1460, %v2232
          %v2489 = vadd.f32 %v1461, %v2233
          %v2490 = vadd.f32 %v1462, %v2234
          %v2491 = vadd.f32 %v1463, %v2235
          %v2492 = vadd.f32 %v1464, %v2236
          %v2493 = vadd.f32 %v1465, %v2237
          %v2494 = vadd.f32 %v1466, %v2238
          %v2495 = vadd.f32 %v1467, %v2239
          %v2496 = vadd.f32 %v1468, %v2240
          %v2497 = vadd.f32 %v1469, %v2241
          %v2498 = vadd.f32 %v1470, %v2242
          %v2499 = vadd.f32 %v1471, %v2243
          %v2500 = vadd.f32 %v1472, %v2244
          %v2501 = vadd.f32 %v1473, %v2245
          %v2502 = vadd.f32 %v1474, %v2246
          %v2503 = vadd.f32 %v1475, %v2247
          %v2504 = vadd.f32 %v1476, %v2248
          %v2505 = vadd.f32 %v1477, %v2249
          %v2506 = vadd.f32 %v1478, %v2250
          %v2507 = vadd.f32 %v1479, %v2251
          %v2508 = vadd.f32 %v1480, %v2252
          %v2509 = vadd.f32 %v1481, %v2253
          %v2510 = vadd.f32 %v1482, %v2254
          %v2511 = vadd.f32 %v1483, %v2255
          %v2512 = vadd.f32 %v1484, %v2256
          %v2513 = vadd.f32 %v1485, %v2257
          %v2514 = vadd.f32 %v1486, %v2258
          %v2515 = vadd.f32 %v1487, %v2259
          %v2516 = vadd.f32 %v1488, %v2260
          %v2517 = vadd.f32 %v1489, %v2261
          %v2518 = vadd.f32 %v1490, %v2262
          %v2519 = vadd.f32 %v1491, %v2263
          %v2520 = vadd.f32 %v1492, %v2264
          %v2521 = vadd.f32 %v1493, %v2265
          %v2522 = vadd.f32 %v1494, %v2266
          %v2523 = vadd.f32 %v1495, %v2267
          %v2524 = vadd.f32 %v1496, %v2268
          %v2525 = vadd.f32 %v1497, %v2269
          %v2526 = vadd.f32 %v1498, %v2270
          %v2527 = vadd.f32 %v1499, %v2271
          %v2528 = vadd.f32 %v1500, %v2272
          %v2529 = vadd.f32 %v1501, %v2273
          %v2530 = vadd.f32 %v1502, %v2274
          %v2531 = vadd.f32 %v1503, %v2275
          %v2532 = vadd.f32 %v1504, %v2276
          %v2533 = vadd.f32 %v1505, %v2277
          %v2534 = vadd.f32 %v1506, %v2278
          %v2535 = vadd.f32 %v1507, %v2279
          %v2536 = vadd.f32 %v1508, %v2280
          %v2537 = vadd.f32 %v1509, %v2281
          %v2538 = vadd.f32 %v1510, %v2282
          %v2539 = vadd.f32 %v1511, %v2283
          %v2540 = vadd.f32 %v1512, %v2284
          %v2541 = vadd.f32 %v1513, %v2285
          %v2542 = vadd.f32 %v1514, %v2286
          %v2543 = vadd.f32 %v1515, %v2287
          %v2544 = vadd.f32 %v1516, %v2288
          %v2545 = vadd.f32 %v1517, %v2289
          %v2546 = vadd.f32 %v1518, %v2290
          %v2547 = vadd.f32 %v1519, %v2291
          %v2548 = vadd.f32 %v1520, %v2292
          %v2549 = vadd.f32 %v1521, %v2293
          %v2550 = vadd.f32 %v1522, %v2294
          %v2551 = vadd.f32 %v1523, %v2295
          %v2552 = vadd.f32 %v1524, %v2296
          %v2553 = vadd.f32 %v1525, %v2297
          %v2554 = vadd.f32 %v1526, %v2298
          %v2555 = vadd.f32 %v1527, %v2299
          %v2556 = vadd.f32 %v1528, %v2300
          %v2557 = vadd.f32 %v1529, %v2301
          %v2558 = vadd.f32 %v1530, %v2302
          %v2559 = vadd.f32 %v1531, %v2303
          %v2560 = vadd.f32 %v1532, %v2304
          %v2561 = vadd.f32 %v1533, %v2305
          %v2562 = vadd.f32 %v1534, %v2306
          %v2563 = vadd.f32 %v1535, %v2307
          %v2564 = vadd.f32 %v1536, %v2308
          %v2565 = vadd.f32 %v1537, %v2309
          %v2566 = vadd.f32 %v1538, %v2310
          %v2567 = vadd.f32 %v1539, %v2311
          %v2568 = vadd.f32 %v1540, %v2312
          %v2569 = vadd.f32 %v1541, %v2313
          %v2570 = vadd.f32 %v1542, %v2314
          %v2571 = vadd.f32 %v1543, %v2315
          %v2572 = vadd.f32 %v1544, %v2316
          %v2573 = vadd.f32 %v1545, %v2317
          %v2574 = vadd.f32 %v1546, %v2318
          %v2575 = vadd.f32 %v1547, %v2319
          %v2576 = vadd.f32 %v1548, %v2320
          %v2577 = vadd.f32 %v1549, %v2321
          %v2578 = vadd.f32 %v1550, %v2322
          %v2579 = vadd.f32 %v1551, %v2323
          %v2580 = vadd.f32 %v1552, %v2324
          %v2581 = vadd.f32 %v1553, %v2325
          %v2582 = vadd.f32 %v1554, %v2326
          %v2583 = vadd.f32 %v1555, %v2327
          %v2584 = vadd.f32 %v1556, %v2328
          %v2585 = vadd.f32 %v1557, %v2329
          %v2586 = vadd.f32 %v1558, %v2330
          %v2587 = vadd.f32 %v1559, %v2331
          %v2588 = vadd.f32 %v1560, %v2332
          %v2589 = vadd.f32 %v1561, %v2333
          %v2590 = vadd.f32 %v1562, %v2334
          %v2591 = vadd.f32 %v1563, %v2335
          %v2592 = vadd.f32 %v1564, %v2336
          %v2593 = vsub.s32 %v537, 24
          %v2594 = vsub.s32 %v538, 24
          %v2595 = vsub.s32 %v539, 24
          %v2596 = vsub.s32 %v540, 24
          %vm2597 = vcmp.eq.s32.totalorder %v543, %v2593
          %vm2598 = vcmp.eq.s32.totalorder %v543, %v2594
          %vm2599 = vcmp.eq.s32.totalorder %v543, %v2595
          %vm2600 = vcmp.eq.s32.totalorder %v543, %v2596
          %vm2601 = vcmp.eq.s32.totalorder %v546, %v2593
          %vm2602 = vcmp.eq.s32.totalorder %v546, %v2594
          %vm2603 = vcmp.eq.s32.totalorder %v546, %v2595
          %vm2604 = vcmp.eq.s32.totalorder %v546, %v2596
          %vm2605 = vcmp.eq.s32.totalorder %v549, %v2593
          %vm2606 = vcmp.eq.s32.totalorder %v549, %v2594
          %vm2607 = vcmp.eq.s32.totalorder %v549, %v2595
          %vm2608 = vcmp.eq.s32.totalorder %v549, %v2596
          %vm2609 = vcmp.eq.s32.totalorder %v552, %v2593
          %vm2610 = vcmp.eq.s32.totalorder %v552, %v2594
          %vm2611 = vcmp.eq.s32.totalorder %v552, %v2595
          %vm2612 = vcmp.eq.s32.totalorder %v552, %v2596
          %vm2613 = vcmp.eq.s32.totalorder %v555, %v2593
          %vm2614 = vcmp.eq.s32.totalorder %v555, %v2594
          %vm2615 = vcmp.eq.s32.totalorder %v555, %v2595
          %vm2616 = vcmp.eq.s32.totalorder %v555, %v2596
          %vm2617 = vcmp.eq.s32.totalorder %v558, %v2593
          %vm2618 = vcmp.eq.s32.totalorder %v558, %v2594
          %vm2619 = vcmp.eq.s32.totalorder %v558, %v2595
          %vm2620 = vcmp.eq.s32.totalorder %v558, %v2596
          %vm2621 = vcmp.eq.s32.totalorder %v561, %v2593
          %vm2622 = vcmp.eq.s32.totalorder %v561, %v2594
          %vm2623 = vcmp.eq.s32.totalorder %v561, %v2595
          %vm2624 = vcmp.eq.s32.totalorder %v561, %v2596
          %vm2625 = vcmp.eq.s32.totalorder %v564, %v2593
          %vm2626 = vcmp.eq.s32.totalorder %v564, %v2594
          %vm2627 = vcmp.eq.s32.totalorder %v564, %v2595
          %vm2628 = vcmp.eq.s32.totalorder %v564, %v2596
          %vm2629 = vcmp.eq.s32.totalorder %v567, %v2593
          %vm2630 = vcmp.eq.s32.totalorder %v567, %v2594
          %vm2631 = vcmp.eq.s32.totalorder %v567, %v2595
          %vm2632 = vcmp.eq.s32.totalorder %v567, %v2596
          %vm2633 = vcmp.eq.s32.totalorder %v570, %v2593
          %vm2634 = vcmp.eq.s32.totalorder %v570, %v2594
          %vm2635 = vcmp.eq.s32.totalorder %v570, %v2595
          %vm2636 = vcmp.eq.s32.totalorder %v570, %v2596
          %vm2637 = vcmp.eq.s32.totalorder %v573, %v2593
          %vm2638 = vcmp.eq.s32.totalorder %v573, %v2594
          %vm2639 = vcmp.eq.s32.totalorder %v573, %v2595
          %vm2640 = vcmp.eq.s32.totalorder %v573, %v2596
          %vm2641 = vcmp.eq.s32.totalorder %v576, %v2593
          %vm2642 = vcmp.eq.s32.totalorder %v576, %v2594
          %vm2643 = vcmp.eq.s32.totalorder %v576, %v2595
          %vm2644 = vcmp.eq.s32.totalorder %v576, %v2596
          %vm2645 = vcmp.eq.s32.totalorder %v579, %v2593
          %vm2646 = vcmp.eq.s32.totalorder %v579, %v2594
          %vm2647 = vcmp.eq.s32.totalorder %v579, %v2595
          %vm2648 = vcmp.eq.s32.totalorder %v579, %v2596
          %vm2649 = vcmp.eq.s32.totalorder %v582, %v2593
          %vm2650 = vcmp.eq.s32.totalorder %v582, %v2594
          %vm2651 = vcmp.eq.s32.totalorder %v582, %v2595
          %vm2652 = vcmp.eq.s32.totalorder %v582, %v2596
          %vm2653 = vcmp.eq.s32.totalorder %v585, %v2593
          %vm2654 = vcmp.eq.s32.totalorder %v585, %v2594
          %vm2655 = vcmp.eq.s32.totalorder %v585, %v2595
          %vm2656 = vcmp.eq.s32.totalorder %v585, %v2596
          %vm2657 = vcmp.eq.s32.totalorder %v588, %v2593
          %vm2658 = vcmp.eq.s32.totalorder %v588, %v2594
          %vm2659 = vcmp.eq.s32.totalorder %v588, %v2595
          %vm2660 = vcmp.eq.s32.totalorder %v588, %v2596
          %vm2661 = vcmp.eq.s32.totalorder %v591, %v2593
          %vm2662 = vcmp.eq.s32.totalorder %v591, %v2594
          %vm2663 = vcmp.eq.s32.totalorder %v591, %v2595
          %vm2664 = vcmp.eq.s32.totalorder %v591, %v2596
          %vm2665 = vcmp.eq.s32.totalorder %v594, %v2593
          %vm2666 = vcmp.eq.s32.totalorder %v594, %v2594
          %vm2667 = vcmp.eq.s32.totalorder %v594, %v2595
          %vm2668 = vcmp.eq.s32.totalorder %v594, %v2596
          %vm2669 = vcmp.eq.s32.totalorder %v597, %v2593
          %vm2670 = vcmp.eq.s32.totalorder %v597, %v2594
          %vm2671 = vcmp.eq.s32.totalorder %v597, %v2595
          %vm2672 = vcmp.eq.s32.totalorder %v597, %v2596
          %vm2673 = vcmp.eq.s32.totalorder %v600, %v2593
          %vm2674 = vcmp.eq.s32.totalorder %v600, %v2594
          %vm2675 = vcmp.eq.s32.totalorder %v600, %v2595
          %vm2676 = vcmp.eq.s32.totalorder %v600, %v2596
          %vm2677 = vcmp.eq.s32.totalorder %v603, %v2593
          %vm2678 = vcmp.eq.s32.totalorder %v603, %v2594
          %vm2679 = vcmp.eq.s32.totalorder %v603, %v2595
          %vm2680 = vcmp.eq.s32.totalorder %v603, %v2596
          %vm2681 = vcmp.eq.s32.totalorder %v606, %v2593
          %vm2682 = vcmp.eq.s32.totalorder %v606, %v2594
          %vm2683 = vcmp.eq.s32.totalorder %v606, %v2595
          %vm2684 = vcmp.eq.s32.totalorder %v606, %v2596
          %vm2685 = vcmp.eq.s32.totalorder %v609, %v2593
          %vm2686 = vcmp.eq.s32.totalorder %v609, %v2594
          %vm2687 = vcmp.eq.s32.totalorder %v609, %v2595
          %vm2688 = vcmp.eq.s32.totalorder %v609, %v2596
          %vm2689 = vcmp.eq.s32.totalorder %v612, %v2593
          %vm2690 = vcmp.eq.s32.totalorder %v612, %v2594
          %vm2691 = vcmp.eq.s32.totalorder %v612, %v2595
          %vm2692 = vcmp.eq.s32.totalorder %v612, %v2596
          %vm2693 = vcmp.eq.s32.totalorder %v615, %v2593
          %vm2694 = vcmp.eq.s32.totalorder %v615, %v2594
          %vm2695 = vcmp.eq.s32.totalorder %v615, %v2595
          %vm2696 = vcmp.eq.s32.totalorder %v615, %v2596
          %vm2697 = vcmp.eq.s32.totalorder %v618, %v2593
          %vm2698 = vcmp.eq.s32.totalorder %v618, %v2594
          %vm2699 = vcmp.eq.s32.totalorder %v618, %v2595
          %vm2700 = vcmp.eq.s32.totalorder %v618, %v2596
          %vm2701 = vcmp.eq.s32.totalorder %v621, %v2593
          %vm2702 = vcmp.eq.s32.totalorder %v621, %v2594
          %vm2703 = vcmp.eq.s32.totalorder %v621, %v2595
          %vm2704 = vcmp.eq.s32.totalorder %v621, %v2596
          %vm2705 = vcmp.eq.s32.totalorder %v624, %v2593
          %vm2706 = vcmp.eq.s32.totalorder %v624, %v2594
          %vm2707 = vcmp.eq.s32.totalorder %v624, %v2595
          %vm2708 = vcmp.eq.s32.totalorder %v624, %v2596
          %vm2709 = vcmp.eq.s32.totalorder %v627, %v2593
          %vm2710 = vcmp.eq.s32.totalorder %v627, %v2594
          %vm2711 = vcmp.eq.s32.totalorder %v627, %v2595
          %vm2712 = vcmp.eq.s32.totalorder %v627, %v2596
          %vm2713 = vcmp.eq.s32.totalorder %v630, %v2593
          %vm2714 = vcmp.eq.s32.totalorder %v630, %v2594
          %vm2715 = vcmp.eq.s32.totalorder %v630, %v2595
          %vm2716 = vcmp.eq.s32.totalorder %v630, %v2596
          %vm2717 = vcmp.eq.s32.totalorder %v633, %v2593
          %vm2718 = vcmp.eq.s32.totalorder %v633, %v2594
          %vm2719 = vcmp.eq.s32.totalorder %v633, %v2595
          %vm2720 = vcmp.eq.s32.totalorder %v633, %v2596
          %vm2721 = vcmp.eq.s32.totalorder %v636, %v2593
          %vm2722 = vcmp.eq.s32.totalorder %v636, %v2594
          %vm2723 = vcmp.eq.s32.totalorder %v636, %v2595
          %vm2724 = vcmp.eq.s32.totalorder %v636, %v2596
          %vm2725 = vcmp.eq.s32.totalorder %v639, %v2593
          %vm2726 = vcmp.eq.s32.totalorder %v639, %v2594
          %vm2727 = vcmp.eq.s32.totalorder %v639, %v2595
          %vm2728 = vcmp.eq.s32.totalorder %v639, %v2596
          %vm2729 = vcmp.eq.s32.totalorder %v642, %v2593
          %vm2730 = vcmp.eq.s32.totalorder %v642, %v2594
          %vm2731 = vcmp.eq.s32.totalorder %v642, %v2595
          %vm2732 = vcmp.eq.s32.totalorder %v642, %v2596
          %vm2733 = vcmp.eq.s32.totalorder %v645, %v2593
          %vm2734 = vcmp.eq.s32.totalorder %v645, %v2594
          %vm2735 = vcmp.eq.s32.totalorder %v645, %v2595
          %vm2736 = vcmp.eq.s32.totalorder %v645, %v2596
          %vm2737 = vcmp.eq.s32.totalorder %v648, %v2593
          %vm2738 = vcmp.eq.s32.totalorder %v648, %v2594
          %vm2739 = vcmp.eq.s32.totalorder %v648, %v2595
          %vm2740 = vcmp.eq.s32.totalorder %v648, %v2596
          %vm2741 = vcmp.eq.s32.totalorder %v651, %v2593
          %vm2742 = vcmp.eq.s32.totalorder %v651, %v2594
          %vm2743 = vcmp.eq.s32.totalorder %v651, %v2595
          %vm2744 = vcmp.eq.s32.totalorder %v651, %v2596
          %vm2745 = vcmp.eq.s32.totalorder %v654, %v2593
          %vm2746 = vcmp.eq.s32.totalorder %v654, %v2594
          %vm2747 = vcmp.eq.s32.totalorder %v654, %v2595
          %vm2748 = vcmp.eq.s32.totalorder %v654, %v2596
          %vm2749 = vcmp.eq.s32.totalorder %v657, %v2593
          %vm2750 = vcmp.eq.s32.totalorder %v657, %v2594
          %vm2751 = vcmp.eq.s32.totalorder %v657, %v2595
          %vm2752 = vcmp.eq.s32.totalorder %v657, %v2596
          %vm2753 = vcmp.eq.s32.totalorder %v660, %v2593
          %vm2754 = vcmp.eq.s32.totalorder %v660, %v2594
          %vm2755 = vcmp.eq.s32.totalorder %v660, %v2595
          %vm2756 = vcmp.eq.s32.totalorder %v660, %v2596
          %vm2757 = vcmp.eq.s32.totalorder %v663, %v2593
          %vm2758 = vcmp.eq.s32.totalorder %v663, %v2594
          %vm2759 = vcmp.eq.s32.totalorder %v663, %v2595
          %vm2760 = vcmp.eq.s32.totalorder %v663, %v2596
          %vm2761 = vcmp.eq.s32.totalorder %v666, %v2593
          %vm2762 = vcmp.eq.s32.totalorder %v666, %v2594
          %vm2763 = vcmp.eq.s32.totalorder %v666, %v2595
          %vm2764 = vcmp.eq.s32.totalorder %v666, %v2596
          %vm2765 = vcmp.eq.s32.totalorder %v669, %v2593
          %vm2766 = vcmp.eq.s32.totalorder %v669, %v2594
          %vm2767 = vcmp.eq.s32.totalorder %v669, %v2595
          %vm2768 = vcmp.eq.s32.totalorder %v669, %v2596
          %vm2769 = vcmp.eq.s32.totalorder %v672, %v2593
          %vm2770 = vcmp.eq.s32.totalorder %v672, %v2594
          %vm2771 = vcmp.eq.s32.totalorder %v672, %v2595
          %vm2772 = vcmp.eq.s32.totalorder %v672, %v2596
          %vm2773 = vcmp.eq.s32.totalorder %v675, %v2593
          %vm2774 = vcmp.eq.s32.totalorder %v675, %v2594
          %vm2775 = vcmp.eq.s32.totalorder %v675, %v2595
          %vm2776 = vcmp.eq.s32.totalorder %v675, %v2596
          %vm2777 = vcmp.eq.s32.totalorder %v678, %v2593
          %vm2778 = vcmp.eq.s32.totalorder %v678, %v2594
          %vm2779 = vcmp.eq.s32.totalorder %v678, %v2595
          %vm2780 = vcmp.eq.s32.totalorder %v678, %v2596
          %vm2781 = vcmp.eq.s32.totalorder %v681, %v2593
          %vm2782 = vcmp.eq.s32.totalorder %v681, %v2594
          %vm2783 = vcmp.eq.s32.totalorder %v681, %v2595
          %vm2784 = vcmp.eq.s32.totalorder %v681, %v2596
          %vm2785 = vcmp.eq.s32.totalorder %v684, %v2593
          %vm2786 = vcmp.eq.s32.totalorder %v684, %v2594
          %vm2787 = vcmp.eq.s32.totalorder %v684, %v2595
          %vm2788 = vcmp.eq.s32.totalorder %v684, %v2596
          %vm2789 = vcmp.eq.s32.totalorder %v687, %v2593
          %vm2790 = vcmp.eq.s32.totalorder %v687, %v2594
          %vm2791 = vcmp.eq.s32.totalorder %v687, %v2595
          %vm2792 = vcmp.eq.s32.totalorder %v687, %v2596
          %vm2793 = vcmp.eq.s32.totalorder %v690, %v2593
          %vm2794 = vcmp.eq.s32.totalorder %v690, %v2594
          %vm2795 = vcmp.eq.s32.totalorder %v690, %v2595
          %vm2796 = vcmp.eq.s32.totalorder %v690, %v2596
          %vm2797 = vcmp.eq.s32.totalorder %v693, %v2593
          %vm2798 = vcmp.eq.s32.totalorder %v693, %v2594
          %vm2799 = vcmp.eq.s32.totalorder %v693, %v2595
          %vm2800 = vcmp.eq.s32.totalorder %v693, %v2596
          %vm2801 = vcmp.eq.s32.totalorder %v696, %v2593
          %vm2802 = vcmp.eq.s32.totalorder %v696, %v2594
          %vm2803 = vcmp.eq.s32.totalorder %v696, %v2595
          %vm2804 = vcmp.eq.s32.totalorder %v696, %v2596
          %vm2805 = vcmp.eq.s32.totalorder %v699, %v2593
          %vm2806 = vcmp.eq.s32.totalorder %v699, %v2594
          %vm2807 = vcmp.eq.s32.totalorder %v699, %v2595
          %vm2808 = vcmp.eq.s32.totalorder %v699, %v2596
          %vm2809 = vcmp.eq.s32.totalorder %v702, %v2593
          %vm2810 = vcmp.eq.s32.totalorder %v702, %v2594
          %vm2811 = vcmp.eq.s32.totalorder %v702, %v2595
          %vm2812 = vcmp.eq.s32.totalorder %v702, %v2596
          %vm2813 = vcmp.eq.s32.totalorder %v705, %v2593
          %vm2814 = vcmp.eq.s32.totalorder %v705, %v2594
          %vm2815 = vcmp.eq.s32.totalorder %v705, %v2595
          %vm2816 = vcmp.eq.s32.totalorder %v705, %v2596
          %vm2817 = vcmp.eq.s32.totalorder %v708, %v2593
          %vm2818 = vcmp.eq.s32.totalorder %v708, %v2594
          %vm2819 = vcmp.eq.s32.totalorder %v708, %v2595
          %vm2820 = vcmp.eq.s32.totalorder %v708, %v2596
          %vm2821 = vcmp.eq.s32.totalorder %v711, %v2593
          %vm2822 = vcmp.eq.s32.totalorder %v711, %v2594
          %vm2823 = vcmp.eq.s32.totalorder %v711, %v2595
          %vm2824 = vcmp.eq.s32.totalorder %v711, %v2596
          %vm2825 = vcmp.eq.s32.totalorder %v714, %v2593
          %vm2826 = vcmp.eq.s32.totalorder %v714, %v2594
          %vm2827 = vcmp.eq.s32.totalorder %v714, %v2595
          %vm2828 = vcmp.eq.s32.totalorder %v714, %v2596
          %vm2829 = vcmp.eq.s32.totalorder %v717, %v2593
          %vm2830 = vcmp.eq.s32.totalorder %v717, %v2594
          %vm2831 = vcmp.eq.s32.totalorder %v717, %v2595
          %vm2832 = vcmp.eq.s32.totalorder %v717, %v2596
          %vm2833 = vcmp.eq.s32.totalorder %v720, %v2593
          %vm2834 = vcmp.eq.s32.totalorder %v720, %v2594
          %vm2835 = vcmp.eq.s32.totalorder %v720, %v2595
          %vm2836 = vcmp.eq.s32.totalorder %v720, %v2596
          %vm2837 = vcmp.eq.s32.totalorder %v723, %v2593
          %vm2838 = vcmp.eq.s32.totalorder %v723, %v2594
          %vm2839 = vcmp.eq.s32.totalorder %v723, %v2595
          %vm2840 = vcmp.eq.s32.totalorder %v723, %v2596
          %vm2841 = vcmp.eq.s32.totalorder %v726, %v2593
          %vm2842 = vcmp.eq.s32.totalorder %v726, %v2594
          %vm2843 = vcmp.eq.s32.totalorder %v726, %v2595
          %vm2844 = vcmp.eq.s32.totalorder %v726, %v2596
          %vm2845 = vcmp.eq.s32.totalorder %v729, %v2593
          %vm2846 = vcmp.eq.s32.totalorder %v729, %v2594
          %vm2847 = vcmp.eq.s32.totalorder %v729, %v2595
          %vm2848 = vcmp.eq.s32.totalorder %v729, %v2596
          %vm2849 = vcmp.eq.s32.totalorder %v732, %v2593
          %vm2850 = vcmp.eq.s32.totalorder %v732, %v2594
          %vm2851 = vcmp.eq.s32.totalorder %v732, %v2595
          %vm2852 = vcmp.eq.s32.totalorder %v732, %v2596
          %2853 = vset.pattern.permute.xlu0 2
          %2854 = vperm.xlu0 %2853, %v403
          %v2855 = vpop.permute.xlu0 %2854
          %2857 = vset.pattern.permute.xlu0 2
          %2858 = vperm.xlu0 %2857, %v404
          %v2859 = vpop.permute.xlu0 %2858
          %2861 = vset.pattern.permute.xlu0 2
          %2862 = vperm.xlu0 %2861, %v405
          %v2863 = vpop.permute.xlu0 %2862
          %2865 = vset.pattern.permute.xlu0 2
          %2866 = vperm.xlu0 %2865, %v406
          %v2867 = vpop.permute.xlu0 %2866
          %2869 = vset.pattern.permute.xlu0 2
          %2870 = vperm.xlu0 %2869, %v407
          %v2871 = vpop.permute.xlu0 %2870
          %2873 = vset.pattern.permute.xlu0 2
          %2874 = vperm.xlu0 %2873, %v408
          %v2875 = vpop.permute.xlu0 %2874
          %2877 = vset.pattern.permute.xlu0 2
          %2878 = vperm.xlu0 %2877, %v409
          %v2879 = vpop.permute.xlu0 %2878
          %2881 = vset.pattern.permute.xlu0 2
          %2882 = vperm.xlu0 %2881, %v410
          %v2883 = vpop.permute.xlu0 %2882
          %2885 = vset.pattern.permute.xlu0 2
          %2886 = vperm.xlu0 %2885, %v411
          %v2887 = vpop.permute.xlu0 %2886
          %2889 = vset.pattern.permute.xlu0 2
          %2890 = vperm.xlu0 %2889, %v412
          %v2891 = vpop.permute.xlu0 %2890
          %2893 = vset.pattern.permute.xlu0 2
          %2894 = vperm.xlu0 %2893, %v413
          %v2895 = vpop.permute.xlu0 %2894
          %2897 = vset.pattern.permute.xlu0 2
          %2898 = vperm.xlu0 %2897, %v414
          %v2899 = vpop.permute.xlu0 %2898
          %2901 = vset.pattern.permute.xlu0 2
          %2902 = vperm.xlu0 %2901, %v415
          %v2903 = vpop.permute.xlu0 %2902
          %2905 = vset.pattern.permute.xlu0 2
          %2906 = vperm.xlu0 %2905, %v416
          %v2907 = vpop.permute.xlu0 %2906
          %2909 = vset.pattern.permute.xlu0 2
          %2910 = vperm.xlu0 %2909, %v417
          %v2911 = vpop.permute.xlu0 %2910
          %2913 = vset.pattern.permute.xlu0 2
          %2914 = vperm.xlu0 %2913, %v418
          %v2915 = vpop.permute.xlu0 %2914
          %2917 = vset.pattern.permute.xlu0 2
          %2918 = vperm.xlu0 %2917, %v419
          %v2919 = vpop.permute.xlu0 %2918
          %2921 = vset.pattern.permute.xlu0 2
          %2922 = vperm.xlu0 %2921, %v420
          %v2923 = vpop.permute.xlu0 %2922
          %2925 = vset.pattern.permute.xlu0 2
          %2926 = vperm.xlu0 %2925, %v421
          %v2927 = vpop.permute.xlu0 %2926
          %2929 = vset.pattern.permute.xlu0 2
          %2930 = vperm.xlu0 %2929, %v422
          %v2931 = vpop.permute.xlu0 %2930
          %2933 = vset.pattern.permute.xlu0 2
          %2934 = vperm.xlu0 %2933, %v423
          %v2935 = vpop.permute.xlu0 %2934
          %2937 = vset.pattern.permute.xlu0 2
          %2938 = vperm.xlu0 %2937, %v424
          %v2939 = vpop.permute.xlu0 %2938
          %2941 = vset.pattern.permute.xlu0 2
          %2942 = vperm.xlu0 %2941, %v425
          %v2943 = vpop.permute.xlu0 %2942
          %2945 = vset.pattern.permute.xlu0 2
          %2946 = vperm.xlu0 %2945, %v426
          %v2947 = vpop.permute.xlu0 %2946
          %2949 = vset.pattern.permute.xlu0 2
          %2950 = vperm.xlu0 %2949, %v427
          %v2951 = vpop.permute.xlu0 %2950
          %2953 = vset.pattern.permute.xlu0 2
          %2954 = vperm.xlu0 %2953, %v428
          %v2955 = vpop.permute.xlu0 %2954
          %2957 = vset.pattern.permute.xlu0 2
          %2958 = vperm.xlu0 %2957, %v429
          %v2959 = vpop.permute.xlu0 %2958
          %2961 = vset.pattern.permute.xlu0 2
          %2962 = vperm.xlu0 %2961, %v430
          %v2963 = vpop.permute.xlu0 %2962
          %2965 = vset.pattern.permute.xlu0 2
          %2966 = vperm.xlu0 %2965, %v431
          %v2967 = vpop.permute.xlu0 %2966
          %2969 = vset.pattern.permute.xlu0 2
          %2970 = vperm.xlu0 %2969, %v432
          %v2971 = vpop.permute.xlu0 %2970
          %2973 = vset.pattern.permute.xlu0 2
          %2974 = vperm.xlu0 %2973, %v433
          %v2975 = vpop.permute.xlu0 %2974
          %2977 = vset.pattern.permute.xlu0 2
          %2978 = vperm.xlu0 %2977, %v434
          %v2979 = vpop.permute.xlu0 %2978
          %2981 = vset.pattern.permute.xlu0 2
          %2982 = vperm.xlu0 %2981, %v435
          %v2983 = vpop.permute.xlu0 %2982
          %2985 = vset.pattern.permute.xlu0 2
          %2986 = vperm.xlu0 %2985, %v436
          %v2987 = vpop.permute.xlu0 %2986
          %2989 = vset.pattern.permute.xlu0 2
          %2990 = vperm.xlu0 %2989, %v437
          %v2991 = vpop.permute.xlu0 %2990
          %2993 = vset.pattern.permute.xlu0 2
          %2994 = vperm.xlu0 %2993, %v438
          %v2995 = vpop.permute.xlu0 %2994
          %2997 = vset.pattern.permute.xlu0 2
          %2998 = vperm.xlu0 %2997, %v439
          %v2999 = vpop.permute.xlu0 %2998
          %3001 = vset.pattern.permute.xlu0 2
          %3002 = vperm.xlu0 %3001, %v440
          %v3003 = vpop.permute.xlu0 %3002
          %3005 = vset.pattern.permute.xlu0 2
          %3006 = vperm.xlu0 %3005, %v441
          %v3007 = vpop.permute.xlu0 %3006
          %3009 = vset.pattern.permute.xlu0 2
          %3010 = vperm.xlu0 %3009, %v442
          %v3011 = vpop.permute.xlu0 %3010
          %3013 = vset.pattern.permute.xlu0 2
          %3014 = vperm.xlu0 %3013, %v443
          %v3015 = vpop.permute.xlu0 %3014
          %3017 = vset.pattern.permute.xlu0 2
          %3018 = vperm.xlu0 %3017, %v444
          %v3019 = vpop.permute.xlu0 %3018
          %3021 = vset.pattern.permute.xlu0 2
          %3022 = vperm.xlu0 %3021, %v445
          %v3023 = vpop.permute.xlu0 %3022
          %3025 = vset.pattern.permute.xlu0 2
          %3026 = vperm.xlu0 %3025, %v446
          %v3027 = vpop.permute.xlu0 %3026
          %3029 = vset.pattern.permute.xlu0 2
          %3030 = vperm.xlu0 %3029, %v447
          %v3031 = vpop.permute.xlu0 %3030
          %3033 = vset.pattern.permute.xlu0 2
          %3034 = vperm.xlu0 %3033, %v448
          %v3035 = vpop.permute.xlu0 %3034
          %3037 = vset.pattern.permute.xlu0 2
          %3038 = vperm.xlu0 %3037, %v449
          %v3039 = vpop.permute.xlu0 %3038
          %3041 = vset.pattern.permute.xlu0 2
          %3042 = vperm.xlu0 %3041, %v450
          %v3043 = vpop.permute.xlu0 %3042
          %3045 = vset.pattern.permute.xlu0 2
          %3046 = vperm.xlu0 %3045, %v451
          %v3047 = vpop.permute.xlu0 %3046
          %3049 = vset.pattern.permute.xlu0 2
          %3050 = vperm.xlu0 %3049, %v452
          %v3051 = vpop.permute.xlu0 %3050
          %3053 = vset.pattern.permute.xlu0 2
          %3054 = vperm.xlu0 %3053, %v453
          %v3055 = vpop.permute.xlu0 %3054
          %3057 = vset.pattern.permute.xlu0 2
          %3058 = vperm.xlu0 %3057, %v454
          %v3059 = vpop.permute.xlu0 %3058
          %3061 = vset.pattern.permute.xlu0 2
          %3062 = vperm.xlu0 %3061, %v455
          %v3063 = vpop.permute.xlu0 %3062
          %3065 = vset.pattern.permute.xlu0 2
          %3066 = vperm.xlu0 %3065, %v456
          %v3067 = vpop.permute.xlu0 %3066
          %3069 = vset.pattern.permute.xlu0 2
          %3070 = vperm.xlu0 %3069, %v457
          %v3071 = vpop.permute.xlu0 %3070
          %3073 = vset.pattern.permute.xlu0 2
          %3074 = vperm.xlu0 %3073, %v458
          %v3075 = vpop.permute.xlu0 %3074
          %3077 = vset.pattern.permute.xlu0 2
          %3078 = vperm.xlu0 %3077, %v459
          %v3079 = vpop.permute.xlu0 %3078
          %3081 = vset.pattern.permute.xlu0 2
          %3082 = vperm.xlu0 %3081, %v460
          %v3083 = vpop.permute.xlu0 %3082
          %3085 = vset.pattern.permute.xlu0 2
          %3086 = vperm.xlu0 %3085, %v461
          %v3087 = vpop.permute.xlu0 %3086
          %3089 = vset.pattern.permute.xlu0 2
          %3090 = vperm.xlu0 %3089, %v462
          %v3091 = vpop.permute.xlu0 %3090
          %3093 = vset.pattern.permute.xlu0 2
          %3094 = vperm.xlu0 %3093, %v463
          %v3095 = vpop.permute.xlu0 %3094
          %3097 = vset.pattern.permute.xlu0 2
          %3098 = vperm.xlu0 %3097, %v464
          %v3099 = vpop.permute.xlu0 %3098
          %3101 = vset.pattern.permute.xlu0 2
          %3102 = vperm.xlu0 %3101, %v465
          %v3103 = vpop.permute.xlu0 %3102
          %3105 = vset.pattern.permute.xlu0 2
          %3106 = vperm.xlu0 %3105, %v466
          %v3107 = vpop.permute.xlu0 %3106
          %v3109 = vsel %vm2597, %v2855, 0.0
          %v3110 = vsel %vm2598, %v2855, 0.0
          %v3111 = vsel %vm2599, %v2855, 0.0
          %v3112 = vsel %vm2600, %v2855, 0.0
          %v3113 = vsel %vm2601, %v2859, 0.0
          %v3114 = vsel %vm2602, %v2859, 0.0
          %v3115 = vsel %vm2603, %v2859, 0.0
          %v3116 = vsel %vm2604, %v2859, 0.0
          %v3117 = vsel %vm2605, %v2863, 0.0
          %v3118 = vsel %vm2606, %v2863, 0.0
          %v3119 = vsel %vm2607, %v2863, 0.0
          %v3120 = vsel %vm2608, %v2863, 0.0
          %v3121 = vsel %vm2609, %v2867, 0.0
          %v3122 = vsel %vm2610, %v2867, 0.0
          %v3123 = vsel %vm2611, %v2867, 0.0
          %v3124 = vsel %vm2612, %v2867, 0.0
          %v3125 = vsel %vm2613, %v2871, 0.0
          %v3126 = vsel %vm2614, %v2871, 0.0
          %v3127 = vsel %vm2615, %v2871, 0.0
          %v3128 = vsel %vm2616, %v2871, 0.0
          %v3129 = vsel %vm2617, %v2875, 0.0
          %v3130 = vsel %vm2618, %v2875, 0.0
          %v3131 = vsel %vm2619, %v2875, 0.0
          %v3132 = vsel %vm2620, %v2875, 0.0
          %v3133 = vsel %vm2621, %v2879, 0.0
          %v3134 = vsel %vm2622, %v2879, 0.0
          %v3135 = vsel %vm2623, %v2879, 0.0
          %v3136 = vsel %vm2624, %v2879, 0.0
          %v3137 = vsel %vm2625, %v2883, 0.0
          %v3138 = vsel %vm2626, %v2883, 0.0
          %v3139 = vsel %vm2627, %v2883, 0.0
          %v3140 = vsel %vm2628, %v2883, 0.0
          %v3141 = vsel %vm2629, %v2887, 0.0
          %v3142 = vsel %vm2630, %v2887, 0.0
          %v3143 = vsel %vm2631, %v2887, 0.0
          %v3144 = vsel %vm2632, %v2887, 0.0
          %v3145 = vsel %vm2633, %v2891, 0.0
          %v3146 = vsel %vm2634, %v2891, 0.0
          %v3147 = vsel %vm2635, %v2891, 0.0
          %v3148 = vsel %vm2636, %v2891, 0.0
          %v3149 = vsel %vm2637, %v2895, 0.0
          %v3150 = vsel %vm2638, %v2895, 0.0
          %v3151 = vsel %vm2639, %v2895, 0.0
          %v3152 = vsel %vm2640, %v2895, 0.0
          %v3153 = vsel %vm2641, %v2899, 0.0
          %v3154 = vsel %vm2642, %v2899, 0.0
          %v3155 = vsel %vm2643, %v2899, 0.0
          %v3156 = vsel %vm2644, %v2899, 0.0
          %v3157 = vsel %vm2645, %v2903, 0.0
          %v3158 = vsel %vm2646, %v2903, 0.0
          %v3159 = vsel %vm2647, %v2903, 0.0
          %v3160 = vsel %vm2648, %v2903, 0.0
          %v3161 = vsel %vm2649, %v2907, 0.0
          %v3162 = vsel %vm2650, %v2907, 0.0
          %v3163 = vsel %vm2651, %v2907, 0.0
          %v3164 = vsel %vm2652, %v2907, 0.0
          %v3165 = vsel %vm2653, %v2911, 0.0
          %v3166 = vsel %vm2654, %v2911, 0.0
          %v3167 = vsel %vm2655, %v2911, 0.0
          %v3168 = vsel %vm2656, %v2911, 0.0
          %v3169 = vsel %vm2657, %v2915, 0.0
          %v3170 = vsel %vm2658, %v2915, 0.0
          %v3171 = vsel %vm2659, %v2915, 0.0
          %v3172 = vsel %vm2660, %v2915, 0.0
          %v3173 = vsel %vm2661, %v2919, 0.0
          %v3174 = vsel %vm2662, %v2919, 0.0
          %v3175 = vsel %vm2663, %v2919, 0.0
          %v3176 = vsel %vm2664, %v2919, 0.0
          %v3177 = vsel %vm2665, %v2923, 0.0
          %v3178 = vsel %vm2666, %v2923, 0.0
          %v3179 = vsel %vm2667, %v2923, 0.0
          %v3180 = vsel %vm2668, %v2923, 0.0
          %v3181 = vsel %vm2669, %v2927, 0.0
          %v3182 = vsel %vm2670, %v2927, 0.0
          %v3183 = vsel %vm2671, %v2927, 0.0
          %v3184 = vsel %vm2672, %v2927, 0.0
          %v3185 = vsel %vm2673, %v2931, 0.0
          %v3186 = vsel %vm2674, %v2931, 0.0
          %v3187 = vsel %vm2675, %v2931, 0.0
          %v3188 = vsel %vm2676, %v2931, 0.0
          %v3189 = vsel %vm2677, %v2935, 0.0
          %v3190 = vsel %vm2678, %v2935, 0.0
          %v3191 = vsel %vm2679, %v2935, 0.0
          %v3192 = vsel %vm2680, %v2935, 0.0
          %v3193 = vsel %vm2681, %v2939, 0.0
          %v3194 = vsel %vm2682, %v2939, 0.0
          %v3195 = vsel %vm2683, %v2939, 0.0
          %v3196 = vsel %vm2684, %v2939, 0.0
          %v3197 = vsel %vm2685, %v2943, 0.0
          %v3198 = vsel %vm2686, %v2943, 0.0
          %v3199 = vsel %vm2687, %v2943, 0.0
          %v3200 = vsel %vm2688, %v2943, 0.0
          %v3201 = vsel %vm2689, %v2947, 0.0
          %v3202 = vsel %vm2690, %v2947, 0.0
          %v3203 = vsel %vm2691, %v2947, 0.0
          %v3204 = vsel %vm2692, %v2947, 0.0
          %v3205 = vsel %vm2693, %v2951, 0.0
          %v3206 = vsel %vm2694, %v2951, 0.0
          %v3207 = vsel %vm2695, %v2951, 0.0
          %v3208 = vsel %vm2696, %v2951, 0.0
          %v3209 = vsel %vm2697, %v2955, 0.0
          %v3210 = vsel %vm2698, %v2955, 0.0
          %v3211 = vsel %vm2699, %v2955, 0.0
          %v3212 = vsel %vm2700, %v2955, 0.0
          %v3213 = vsel %vm2701, %v2959, 0.0
          %v3214 = vsel %vm2702, %v2959, 0.0
          %v3215 = vsel %vm2703, %v2959, 0.0
          %v3216 = vsel %vm2704, %v2959, 0.0
          %v3217 = vsel %vm2705, %v2963, 0.0
          %v3218 = vsel %vm2706, %v2963, 0.0
          %v3219 = vsel %vm2707, %v2963, 0.0
          %v3220 = vsel %vm2708, %v2963, 0.0
          %v3221 = vsel %vm2709, %v2967, 0.0
          %v3222 = vsel %vm2710, %v2967, 0.0
          %v3223 = vsel %vm2711, %v2967, 0.0
          %v3224 = vsel %vm2712, %v2967, 0.0
          %v3225 = vsel %vm2713, %v2971, 0.0
          %v3226 = vsel %vm2714, %v2971, 0.0
          %v3227 = vsel %vm2715, %v2971, 0.0
          %v3228 = vsel %vm2716, %v2971, 0.0
          %v3229 = vsel %vm2717, %v2975, 0.0
          %v3230 = vsel %vm2718, %v2975, 0.0
          %v3231 = vsel %vm2719, %v2975, 0.0
          %v3232 = vsel %vm2720, %v2975, 0.0
          %v3233 = vsel %vm2721, %v2979, 0.0
          %v3234 = vsel %vm2722, %v2979, 0.0
          %v3235 = vsel %vm2723, %v2979, 0.0
          %v3236 = vsel %vm2724, %v2979, 0.0
          %v3237 = vsel %vm2725, %v2983, 0.0
          %v3238 = vsel %vm2726, %v2983, 0.0
          %v3239 = vsel %vm2727, %v2983, 0.0
          %v3240 = vsel %vm2728, %v2983, 0.0
          %v3241 = vsel %vm2729, %v2987, 0.0
          %v3242 = vsel %vm2730, %v2987, 0.0
          %v3243 = vsel %vm2731, %v2987, 0.0
          %v3244 = vsel %vm2732, %v2987, 0.0
          %v3245 = vsel %vm2733, %v2991, 0.0
          %v3246 = vsel %vm2734, %v2991, 0.0
          %v3247 = vsel %vm2735, %v2991, 0.0
          %v3248 = vsel %vm2736, %v2991, 0.0
          %v3249 = vsel %vm2737, %v2995, 0.0
          %v3250 = vsel %vm2738, %v2995, 0.0
          %v3251 = vsel %vm2739, %v2995, 0.0
          %v3252 = vsel %vm2740, %v2995, 0.0
          %v3253 = vsel %vm2741, %v2999, 0.0
          %v3254 = vsel %vm2742, %v2999, 0.0
          %v3255 = vsel %vm2743, %v2999, 0.0
          %v3256 = vsel %vm2744, %v2999, 0.0
          %v3257 = vsel %vm2745, %v3003, 0.0
          %v3258 = vsel %vm2746, %v3003, 0.0
          %v3259 = vsel %vm2747, %v3003, 0.0
          %v3260 = vsel %vm2748, %v3003, 0.0
          %v3261 = vsel %vm2749, %v3007, 0.0
          %v3262 = vsel %vm2750, %v3007, 0.0
          %v3263 = vsel %vm2751, %v3007, 0.0
          %v3264 = vsel %vm2752, %v3007, 0.0
          %v3265 = vsel %vm2753, %v3011, 0.0
          %v3266 = vsel %vm2754, %v3011, 0.0
          %v3267 = vsel %vm2755, %v3011, 0.0
          %v3268 = vsel %vm2756, %v3011, 0.0
          %v3269 = vsel %vm2757, %v3015, 0.0
          %v3270 = vsel %vm2758, %v3015, 0.0
          %v3271 = vsel %vm2759, %v3015, 0.0
          %v3272 = vsel %vm2760, %v3015, 0.0
          %v3273 = vsel %vm2761, %v3019, 0.0
          %v3274 = vsel %vm2762, %v3019, 0.0
          %v3275 = vsel %vm2763, %v3019, 0.0
          %v3276 = vsel %vm2764, %v3019, 0.0
          %v3277 = vsel %vm2765, %v3023, 0.0
          %v3278 = vsel %vm2766, %v3023, 0.0
          %v3279 = vsel %vm2767, %v3023, 0.0
          %v3280 = vsel %vm2768, %v3023, 0.0
          %v3281 = vsel %vm2769, %v3027, 0.0
          %v3282 = vsel %vm2770, %v3027, 0.0
          %v3283 = vsel %vm2771, %v3027, 0.0
          %v3284 = vsel %vm2772, %v3027, 0.0
          %v3285 = vsel %vm2773, %v3031, 0.0
          %v3286 = vsel %vm2774, %v3031, 0.0
          %v3287 = vsel %vm2775, %v3031, 0.0
          %v3288 = vsel %vm2776, %v3031, 0.0
          %v3289 = vsel %vm2777, %v3035, 0.0
          %v3290 = vsel %vm2778, %v3035, 0.0
          %v3291 = vsel %vm2779, %v3035, 0.0
          %v3292 = vsel %vm2780, %v3035, 0.0
          %v3293 = vsel %vm2781, %v3039, 0.0
          %v3294 = vsel %vm2782, %v3039, 0.0
          %v3295 = vsel %vm2783, %v3039, 0.0
          %v3296 = vsel %vm2784, %v3039, 0.0
          %v3297 = vsel %vm2785, %v3043, 0.0
          %v3298 = vsel %vm2786, %v3043, 0.0
          %v3299 = vsel %vm2787, %v3043, 0.0
          %v3300 = vsel %vm2788, %v3043, 0.0
          %v3301 = vsel %vm2789, %v3047, 0.0
          %v3302 = vsel %vm2790, %v3047, 0.0
          %v3303 = vsel %vm2791, %v3047, 0.0
          %v3304 = vsel %vm2792, %v3047, 0.0
          %v3305 = vsel %vm2793, %v3051, 0.0
          %v3306 = vsel %vm2794, %v3051, 0.0
          %v3307 = vsel %vm2795, %v3051, 0.0
          %v3308 = vsel %vm2796, %v3051, 0.0
          %v3309 = vsel %vm2797, %v3055, 0.0
          %v3310 = vsel %vm2798, %v3055, 0.0
          %v3311 = vsel %vm2799, %v3055, 0.0
          %v3312 = vsel %vm2800, %v3055, 0.0
          %v3313 = vsel %vm2801, %v3059, 0.0
          %v3314 = vsel %vm2802, %v3059, 0.0
          %v3315 = vsel %vm2803, %v3059, 0.0
          %v3316 = vsel %vm2804, %v3059, 0.0
          %v3317 = vsel %vm2805, %v3063, 0.0
          %v3318 = vsel %vm2806, %v3063, 0.0
          %v3319 = vsel %vm2807, %v3063, 0.0
          %v3320 = vsel %vm2808, %v3063, 0.0
          %v3321 = vsel %vm2809, %v3067, 0.0
          %v3322 = vsel %vm2810, %v3067, 0.0
          %v3323 = vsel %vm2811, %v3067, 0.0
          %v3324 = vsel %vm2812, %v3067, 0.0
          %v3325 = vsel %vm2813, %v3071, 0.0
          %v3326 = vsel %vm2814, %v3071, 0.0
          %v3327 = vsel %vm2815, %v3071, 0.0
          %v3328 = vsel %vm2816, %v3071, 0.0
          %v3329 = vsel %vm2817, %v3075, 0.0
          %v3330 = vsel %vm2818, %v3075, 0.0
          %v3331 = vsel %vm2819, %v3075, 0.0
          %v3332 = vsel %vm2820, %v3075, 0.0
          %v3333 = vsel %vm2821, %v3079, 0.0
          %v3334 = vsel %vm2822, %v3079, 0.0
          %v3335 = vsel %vm2823, %v3079, 0.0
          %v3336 = vsel %vm2824, %v3079, 0.0
          %v3337 = vsel %vm2825, %v3083, 0.0
          %v3338 = vsel %vm2826, %v3083, 0.0
          %v3339 = vsel %vm2827, %v3083, 0.0
          %v3340 = vsel %vm2828, %v3083, 0.0
          %v3341 = vsel %vm2829, %v3087, 0.0
          %v3342 = vsel %vm2830, %v3087, 0.0
          %v3343 = vsel %vm2831, %v3087, 0.0
          %v3344 = vsel %vm2832, %v3087, 0.0
          %v3345 = vsel %vm2833, %v3091, 0.0
          %v3346 = vsel %vm2834, %v3091, 0.0
          %v3347 = vsel %vm2835, %v3091, 0.0
          %v3348 = vsel %vm2836, %v3091, 0.0
          %v3349 = vsel %vm2837, %v3095, 0.0
          %v3350 = vsel %vm2838, %v3095, 0.0
          %v3351 = vsel %vm2839, %v3095, 0.0
          %v3352 = vsel %vm2840, %v3095, 0.0
          %v3353 = vsel %vm2841, %v3099, 0.0
          %v3354 = vsel %vm2842, %v3099, 0.0
          %v3355 = vsel %vm2843, %v3099, 0.0
          %v3356 = vsel %vm2844, %v3099, 0.0
          %v3357 = vsel %vm2845, %v3103, 0.0
          %v3358 = vsel %vm2846, %v3103, 0.0
          %v3359 = vsel %vm2847, %v3103, 0.0
          %v3360 = vsel %vm2848, %v3103, 0.0
          %v3361 = vsel %vm2849, %v3107, 0.0
          %v3362 = vsel %vm2850, %v3107, 0.0
          %v3363 = vsel %vm2851, %v3107, 0.0
          %v3364 = vsel %vm2852, %v3107, 0.0
          %v3365 = vadd.f32 %v2337, %v3109
          %v3366 = vadd.f32 %v2338, %v3110
          %v3367 = vadd.f32 %v2339, %v3111
          %v3368 = vadd.f32 %v2340, %v3112
          %v3369 = vadd.f32 %v2341, %v3113
          %v3370 = vadd.f32 %v2342, %v3114
          %v3371 = vadd.f32 %v2343, %v3115
          %v3372 = vadd.f32 %v2344, %v3116
          %v3373 = vadd.f32 %v2345, %v3117
          %v3374 = vadd.f32 %v2346, %v3118
          %v3375 = vadd.f32 %v2347, %v3119
          %v3376 = vadd.f32 %v2348, %v3120
          %v3377 = vadd.f32 %v2349, %v3121
          %v3378 = vadd.f32 %v2350, %v3122
          %v3379 = vadd.f32 %v2351, %v3123
          %v3380 = vadd.f32 %v2352, %v3124
          %v3381 = vadd.f32 %v2353, %v3125
          %v3382 = vadd.f32 %v2354, %v3126
          %v3383 = vadd.f32 %v2355, %v3127
          %v3384 = vadd.f32 %v2356, %v3128
          %v3385 = vadd.f32 %v2357, %v3129
          %v3386 = vadd.f32 %v2358, %v3130
          %v3387 = vadd.f32 %v2359, %v3131
          %v3388 = vadd.f32 %v2360, %v3132
          %v3389 = vadd.f32 %v2361, %v3133
          %v3390 = vadd.f32 %v2362, %v3134
          %v3391 = vadd.f32 %v2363, %v3135
          %v3392 = vadd.f32 %v2364, %v3136
          %v3393 = vadd.f32 %v2365, %v3137
          %v3394 = vadd.f32 %v2366, %v3138
          %v3395 = vadd.f32 %v2367, %v3139
          %v3396 = vadd.f32 %v2368, %v3140
          %v3397 = vadd.f32 %v2369, %v3141
          %v3398 = vadd.f32 %v2370, %v3142
          %v3399 = vadd.f32 %v2371, %v3143
          %v3400 = vadd.f32 %v2372, %v3144
          %v3401 = vadd.f32 %v2373, %v3145
          %v3402 = vadd.f32 %v2374, %v3146
          %v3403 = vadd.f32 %v2375, %v3147
          %v3404 = vadd.f32 %v2376, %v3148
          %v3405 = vadd.f32 %v2377, %v3149
          %v3406 = vadd.f32 %v2378, %v3150
          %v3407 = vadd.f32 %v2379, %v3151
          %v3408 = vadd.f32 %v2380, %v3152
          %v3409 = vadd.f32 %v2381, %v3153
          %v3410 = vadd.f32 %v2382, %v3154
          %v3411 = vadd.f32 %v2383, %v3155
          %v3412 = vadd.f32 %v2384, %v3156
          %v3413 = vadd.f32 %v2385, %v3157
          %v3414 = vadd.f32 %v2386, %v3158
          %v3415 = vadd.f32 %v2387, %v3159
          %v3416 = vadd.f32 %v2388, %v3160
          %v3417 = vadd.f32 %v2389, %v3161
          %v3418 = vadd.f32 %v2390, %v3162
          %v3419 = vadd.f32 %v2391, %v3163
          %v3420 = vadd.f32 %v2392, %v3164
          %v3421 = vadd.f32 %v2393, %v3165
          %v3422 = vadd.f32 %v2394, %v3166
          %v3423 = vadd.f32 %v2395, %v3167
          %v3424 = vadd.f32 %v2396, %v3168
          %v3425 = vadd.f32 %v2397, %v3169
          %v3426 = vadd.f32 %v2398, %v3170
          %v3427 = vadd.f32 %v2399, %v3171
          %v3428 = vadd.f32 %v2400, %v3172
          %v3429 = vadd.f32 %v2401, %v3173
          %v3430 = vadd.f32 %v2402, %v3174
          %v3431 = vadd.f32 %v2403, %v3175
          %v3432 = vadd.f32 %v2404, %v3176
          %v3433 = vadd.f32 %v2405, %v3177
          %v3434 = vadd.f32 %v2406, %v3178
          %v3435 = vadd.f32 %v2407, %v3179
          %v3436 = vadd.f32 %v2408, %v3180
          %v3437 = vadd.f32 %v2409, %v3181
          %v3438 = vadd.f32 %v2410, %v3182
          %v3439 = vadd.f32 %v2411, %v3183
          %v3440 = vadd.f32 %v2412, %v3184
          %v3441 = vadd.f32 %v2413, %v3185
          %v3442 = vadd.f32 %v2414, %v3186
          %v3443 = vadd.f32 %v2415, %v3187
          %v3444 = vadd.f32 %v2416, %v3188
          %v3445 = vadd.f32 %v2417, %v3189
          %v3446 = vadd.f32 %v2418, %v3190
          %v3447 = vadd.f32 %v2419, %v3191
          %v3448 = vadd.f32 %v2420, %v3192
          %v3449 = vadd.f32 %v2421, %v3193
          %v3450 = vadd.f32 %v2422, %v3194
          %v3451 = vadd.f32 %v2423, %v3195
          %v3452 = vadd.f32 %v2424, %v3196
          %v3453 = vadd.f32 %v2425, %v3197
          %v3454 = vadd.f32 %v2426, %v3198
          %v3455 = vadd.f32 %v2427, %v3199
          %v3456 = vadd.f32 %v2428, %v3200
          %v3457 = vadd.f32 %v2429, %v3201
          %v3458 = vadd.f32 %v2430, %v3202
          %v3459 = vadd.f32 %v2431, %v3203
          %v3460 = vadd.f32 %v2432, %v3204
          %v3461 = vadd.f32 %v2433, %v3205
          %v3462 = vadd.f32 %v2434, %v3206
          %v3463 = vadd.f32 %v2435, %v3207
          %v3464 = vadd.f32 %v2436, %v3208
          %v3465 = vadd.f32 %v2437, %v3209
          %v3466 = vadd.f32 %v2438, %v3210
          %v3467 = vadd.f32 %v2439, %v3211
          %v3468 = vadd.f32 %v2440, %v3212
          %v3469 = vadd.f32 %v2441, %v3213
          %v3470 = vadd.f32 %v2442, %v3214
          %v3471 = vadd.f32 %v2443, %v3215
          %v3472 = vadd.f32 %v2444, %v3216
          %v3473 = vadd.f32 %v2445, %v3217
          %v3474 = vadd.f32 %v2446, %v3218
          %v3475 = vadd.f32 %v2447, %v3219
          %v3476 = vadd.f32 %v2448, %v3220
          %v3477 = vadd.f32 %v2449, %v3221
          %v3478 = vadd.f32 %v2450, %v3222
          %v3479 = vadd.f32 %v2451, %v3223
          %v3480 = vadd.f32 %v2452, %v3224
          %v3481 = vadd.f32 %v2453, %v3225
          %v3482 = vadd.f32 %v2454, %v3226
          %v3483 = vadd.f32 %v2455, %v3227
          %v3484 = vadd.f32 %v2456, %v3228
          %v3485 = vadd.f32 %v2457, %v3229
          %v3486 = vadd.f32 %v2458, %v3230
          %v3487 = vadd.f32 %v2459, %v3231
          %v3488 = vadd.f32 %v2460, %v3232
          %v3489 = vadd.f32 %v2461, %v3233
          %v3490 = vadd.f32 %v2462, %v3234
          %v3491 = vadd.f32 %v2463, %v3235
          %v3492 = vadd.f32 %v2464, %v3236
          %v3493 = vadd.f32 %v2465, %v3237
          %v3494 = vadd.f32 %v2466, %v3238
          %v3495 = vadd.f32 %v2467, %v3239
          %v3496 = vadd.f32 %v2468, %v3240
          %v3497 = vadd.f32 %v2469, %v3241
          %v3498 = vadd.f32 %v2470, %v3242
          %v3499 = vadd.f32 %v2471, %v3243
          %v3500 = vadd.f32 %v2472, %v3244
          %v3501 = vadd.f32 %v2473, %v3245
          %v3502 = vadd.f32 %v2474, %v3246
          %v3503 = vadd.f32 %v2475, %v3247
          %v3504 = vadd.f32 %v2476, %v3248
          %v3505 = vadd.f32 %v2477, %v3249
          %v3506 = vadd.f32 %v2478, %v3250
          %v3507 = vadd.f32 %v2479, %v3251
          %v3508 = vadd.f32 %v2480, %v3252
          %v3509 = vadd.f32 %v2481, %v3253
          %v3510 = vadd.f32 %v2482, %v3254
          %v3511 = vadd.f32 %v2483, %v3255
          %v3512 = vadd.f32 %v2484, %v3256
          %v3513 = vadd.f32 %v2485, %v3257
          %v3514 = vadd.f32 %v2486, %v3258
          %v3515 = vadd.f32 %v2487, %v3259
          %v3516 = vadd.f32 %v2488, %v3260
          %v3517 = vadd.f32 %v2489, %v3261
          %v3518 = vadd.f32 %v2490, %v3262
          %v3519 = vadd.f32 %v2491, %v3263
          %v3520 = vadd.f32 %v2492, %v3264
          %v3521 = vadd.f32 %v2493, %v3265
          %v3522 = vadd.f32 %v2494, %v3266
          %v3523 = vadd.f32 %v2495, %v3267
          %v3524 = vadd.f32 %v2496, %v3268
          %v3525 = vadd.f32 %v2497, %v3269
          %v3526 = vadd.f32 %v2498, %v3270
          %v3527 = vadd.f32 %v2499, %v3271
          %v3528 = vadd.f32 %v2500, %v3272
          %v3529 = vadd.f32 %v2501, %v3273
          %v3530 = vadd.f32 %v2502, %v3274
          %v3531 = vadd.f32 %v2503, %v3275
          %v3532 = vadd.f32 %v2504, %v3276
          %v3533 = vadd.f32 %v2505, %v3277
          %v3534 = vadd.f32 %v2506, %v3278
          %v3535 = vadd.f32 %v2507, %v3279
          %v3536 = vadd.f32 %v2508, %v3280
          %v3537 = vadd.f32 %v2509, %v3281
          %v3538 = vadd.f32 %v2510, %v3282
          %v3539 = vadd.f32 %v2511, %v3283
          %v3540 = vadd.f32 %v2512, %v3284
          %v3541 = vadd.f32 %v2513, %v3285
          %v3542 = vadd.f32 %v2514, %v3286
          %v3543 = vadd.f32 %v2515, %v3287
          %v3544 = vadd.f32 %v2516, %v3288
          %v3545 = vadd.f32 %v2517, %v3289
          %v3546 = vadd.f32 %v2518, %v3290
          %v3547 = vadd.f32 %v2519, %v3291
          %v3548 = vadd.f32 %v2520, %v3292
          %v3549 = vadd.f32 %v2521, %v3293
          %v3550 = vadd.f32 %v2522, %v3294
          %v3551 = vadd.f32 %v2523, %v3295
          %v3552 = vadd.f32 %v2524, %v3296
          %v3553 = vadd.f32 %v2525, %v3297
          %v3554 = vadd.f32 %v2526, %v3298
          %v3555 = vadd.f32 %v2527, %v3299
          %v3556 = vadd.f32 %v2528, %v3300
          %v3557 = vadd.f32 %v2529, %v3301
          %v3558 = vadd.f32 %v2530, %v3302
          %v3559 = vadd.f32 %v2531, %v3303
          %v3560 = vadd.f32 %v2532, %v3304
          %v3561 = vadd.f32 %v2533, %v3305
          %v3562 = vadd.f32 %v2534, %v3306
          %v3563 = vadd.f32 %v2535, %v3307
          %v3564 = vadd.f32 %v2536, %v3308
          %v3565 = vadd.f32 %v2537, %v3309
          %v3566 = vadd.f32 %v2538, %v3310
          %v3567 = vadd.f32 %v2539, %v3311
          %v3568 = vadd.f32 %v2540, %v3312
          %v3569 = vadd.f32 %v2541, %v3313
          %v3570 = vadd.f32 %v2542, %v3314
          %v3571 = vadd.f32 %v2543, %v3315
          %v3572 = vadd.f32 %v2544, %v3316
          %v3573 = vadd.f32 %v2545, %v3317
          %v3574 = vadd.f32 %v2546, %v3318
          %v3575 = vadd.f32 %v2547, %v3319
          %v3576 = vadd.f32 %v2548, %v3320
          %v3577 = vadd.f32 %v2549, %v3321
          %v3578 = vadd.f32 %v2550, %v3322
          %v3579 = vadd.f32 %v2551, %v3323
          %v3580 = vadd.f32 %v2552, %v3324
          %v3581 = vadd.f32 %v2553, %v3325
          %v3582 = vadd.f32 %v2554, %v3326
          %v3583 = vadd.f32 %v2555, %v3327
          %v3584 = vadd.f32 %v2556, %v3328
          %v3585 = vadd.f32 %v2557, %v3329
          %v3586 = vadd.f32 %v2558, %v3330
          %v3587 = vadd.f32 %v2559, %v3331
          %v3588 = vadd.f32 %v2560, %v3332
          %v3589 = vadd.f32 %v2561, %v3333
          %v3590 = vadd.f32 %v2562, %v3334
          %v3591 = vadd.f32 %v2563, %v3335
          %v3592 = vadd.f32 %v2564, %v3336
          %v3593 = vadd.f32 %v2565, %v3337
          %v3594 = vadd.f32 %v2566, %v3338
          %v3595 = vadd.f32 %v2567, %v3339
          %v3596 = vadd.f32 %v2568, %v3340
          %v3597 = vadd.f32 %v2569, %v3341
          %v3598 = vadd.f32 %v2570, %v3342
          %v3599 = vadd.f32 %v2571, %v3343
          %v3600 = vadd.f32 %v2572, %v3344
          %v3601 = vadd.f32 %v2573, %v3345
          %v3602 = vadd.f32 %v2574, %v3346
          %v3603 = vadd.f32 %v2575, %v3347
          %v3604 = vadd.f32 %v2576, %v3348
          %v3605 = vadd.f32 %v2577, %v3349
          %v3606 = vadd.f32 %v2578, %v3350
          %v3607 = vadd.f32 %v2579, %v3351
          %v3608 = vadd.f32 %v2580, %v3352
          %v3609 = vadd.f32 %v2581, %v3353
          %v3610 = vadd.f32 %v2582, %v3354
          %v3611 = vadd.f32 %v2583, %v3355
          %v3612 = vadd.f32 %v2584, %v3356
          %v3613 = vadd.f32 %v2585, %v3357
          %v3614 = vadd.f32 %v2586, %v3358
          %v3615 = vadd.f32 %v2587, %v3359
          %v3616 = vadd.f32 %v2588, %v3360
          %v3617 = vadd.f32 %v2589, %v3361
          %v3618 = vadd.f32 %v2590, %v3362
          %v3619 = vadd.f32 %v2591, %v3363
          %v3620 = vadd.f32 %v2592, %v3364
          %v3621 = vsub.s32 %v537, 25
          %v3622 = vsub.s32 %v538, 25
          %v3623 = vsub.s32 %v539, 25
          %v3624 = vsub.s32 %v540, 25
          %vm3625 = vcmp.eq.s32.totalorder %v543, %v3621
          %vm3626 = vcmp.eq.s32.totalorder %v543, %v3622
          %vm3627 = vcmp.eq.s32.totalorder %v543, %v3623
          %vm3628 = vcmp.eq.s32.totalorder %v543, %v3624
          %vm3629 = vcmp.eq.s32.totalorder %v546, %v3621
          %vm3630 = vcmp.eq.s32.totalorder %v546, %v3622
          %vm3631 = vcmp.eq.s32.totalorder %v546, %v3623
          %vm3632 = vcmp.eq.s32.totalorder %v546, %v3624
          %vm3633 = vcmp.eq.s32.totalorder %v549, %v3621
          %vm3634 = vcmp.eq.s32.totalorder %v549, %v3622
          %vm3635 = vcmp.eq.s32.totalorder %v549, %v3623
          %vm3636 = vcmp.eq.s32.totalorder %v549, %v3624
          %vm3637 = vcmp.eq.s32.totalorder %v552, %v3621
          %vm3638 = vcmp.eq.s32.totalorder %v552, %v3622
          %vm3639 = vcmp.eq.s32.totalorder %v552, %v3623
          %vm3640 = vcmp.eq.s32.totalorder %v552, %v3624
          %vm3641 = vcmp.eq.s32.totalorder %v555, %v3621
          %vm3642 = vcmp.eq.s32.totalorder %v555, %v3622
          %vm3643 = vcmp.eq.s32.totalorder %v555, %v3623
          %vm3644 = vcmp.eq.s32.totalorder %v555, %v3624
          %vm3645 = vcmp.eq.s32.totalorder %v558, %v3621
          %vm3646 = vcmp.eq.s32.totalorder %v558, %v3622
          %vm3647 = vcmp.eq.s32.totalorder %v558, %v3623
          %vm3648 = vcmp.eq.s32.totalorder %v558, %v3624
          %vm3649 = vcmp.eq.s32.totalorder %v561, %v3621
          %vm3650 = vcmp.eq.s32.totalorder %v561, %v3622
          %vm3651 = vcmp.eq.s32.totalorder %v561, %v3623
          %vm3652 = vcmp.eq.s32.totalorder %v561, %v3624
          %vm3653 = vcmp.eq.s32.totalorder %v564, %v3621
          %vm3654 = vcmp.eq.s32.totalorder %v564, %v3622
          %vm3655 = vcmp.eq.s32.totalorder %v564, %v3623
          %vm3656 = vcmp.eq.s32.totalorder %v564, %v3624
          %vm3657 = vcmp.eq.s32.totalorder %v567, %v3621
          %vm3658 = vcmp.eq.s32.totalorder %v567, %v3622
          %vm3659 = vcmp.eq.s32.totalorder %v567, %v3623
          %vm3660 = vcmp.eq.s32.totalorder %v567, %v3624
          %vm3661 = vcmp.eq.s32.totalorder %v570, %v3621
          %vm3662 = vcmp.eq.s32.totalorder %v570, %v3622
          %vm3663 = vcmp.eq.s32.totalorder %v570, %v3623
          %vm3664 = vcmp.eq.s32.totalorder %v570, %v3624
          %vm3665 = vcmp.eq.s32.totalorder %v573, %v3621
          %vm3666 = vcmp.eq.s32.totalorder %v573, %v3622
          %vm3667 = vcmp.eq.s32.totalorder %v573, %v3623
          %vm3668 = vcmp.eq.s32.totalorder %v573, %v3624
          %vm3669 = vcmp.eq.s32.totalorder %v576, %v3621
          %vm3670 = vcmp.eq.s32.totalorder %v576, %v3622
          %vm3671 = vcmp.eq.s32.totalorder %v576, %v3623
          %vm3672 = vcmp.eq.s32.totalorder %v576, %v3624
          %vm3673 = vcmp.eq.s32.totalorder %v579, %v3621
          %vm3674 = vcmp.eq.s32.totalorder %v579, %v3622
          %vm3675 = vcmp.eq.s32.totalorder %v579, %v3623
          %vm3676 = vcmp.eq.s32.totalorder %v579, %v3624
          %vm3677 = vcmp.eq.s32.totalorder %v582, %v3621
          %vm3678 = vcmp.eq.s32.totalorder %v582, %v3622
          %vm3679 = vcmp.eq.s32.totalorder %v582, %v3623
          %vm3680 = vcmp.eq.s32.totalorder %v582, %v3624
          %vm3681 = vcmp.eq.s32.totalorder %v585, %v3621
          %vm3682 = vcmp.eq.s32.totalorder %v585, %v3622
          %vm3683 = vcmp.eq.s32.totalorder %v585, %v3623
          %vm3684 = vcmp.eq.s32.totalorder %v585, %v3624
          %vm3685 = vcmp.eq.s32.totalorder %v588, %v3621
          %vm3686 = vcmp.eq.s32.totalorder %v588, %v3622
          %vm3687 = vcmp.eq.s32.totalorder %v588, %v3623
          %vm3688 = vcmp.eq.s32.totalorder %v588, %v3624
          %vm3689 = vcmp.eq.s32.totalorder %v591, %v3621
          %vm3690 = vcmp.eq.s32.totalorder %v591, %v3622
          %vm3691 = vcmp.eq.s32.totalorder %v591, %v3623
          %vm3692 = vcmp.eq.s32.totalorder %v591, %v3624
          %vm3693 = vcmp.eq.s32.totalorder %v594, %v3621
          %vm3694 = vcmp.eq.s32.totalorder %v594, %v3622
          %vm3695 = vcmp.eq.s32.totalorder %v594, %v3623
          %vm3696 = vcmp.eq.s32.totalorder %v594, %v3624
          %vm3697 = vcmp.eq.s32.totalorder %v597, %v3621
          %vm3698 = vcmp.eq.s32.totalorder %v597, %v3622
          %vm3699 = vcmp.eq.s32.totalorder %v597, %v3623
          %vm3700 = vcmp.eq.s32.totalorder %v597, %v3624
          %vm3701 = vcmp.eq.s32.totalorder %v600, %v3621
          %vm3702 = vcmp.eq.s32.totalorder %v600, %v3622
          %vm3703 = vcmp.eq.s32.totalorder %v600, %v3623
          %vm3704 = vcmp.eq.s32.totalorder %v600, %v3624
          %vm3705 = vcmp.eq.s32.totalorder %v603, %v3621
          %vm3706 = vcmp.eq.s32.totalorder %v603, %v3622
          %vm3707 = vcmp.eq.s32.totalorder %v603, %v3623
          %vm3708 = vcmp.eq.s32.totalorder %v603, %v3624
          %vm3709 = vcmp.eq.s32.totalorder %v606, %v3621
          %vm3710 = vcmp.eq.s32.totalorder %v606, %v3622
          %vm3711 = vcmp.eq.s32.totalorder %v606, %v3623
          %vm3712 = vcmp.eq.s32.totalorder %v606, %v3624
          %vm3713 = vcmp.eq.s32.totalorder %v609, %v3621
          %vm3714 = vcmp.eq.s32.totalorder %v609, %v3622
          %vm3715 = vcmp.eq.s32.totalorder %v609, %v3623
          %vm3716 = vcmp.eq.s32.totalorder %v609, %v3624
          %vm3717 = vcmp.eq.s32.totalorder %v612, %v3621
          %vm3718 = vcmp.eq.s32.totalorder %v612, %v3622
          %vm3719 = vcmp.eq.s32.totalorder %v612, %v3623
          %vm3720 = vcmp.eq.s32.totalorder %v612, %v3624
          %vm3721 = vcmp.eq.s32.totalorder %v615, %v3621
          %vm3722 = vcmp.eq.s32.totalorder %v615, %v3622
          %vm3723 = vcmp.eq.s32.totalorder %v615, %v3623
          %vm3724 = vcmp.eq.s32.totalorder %v615, %v3624
          %vm3725 = vcmp.eq.s32.totalorder %v618, %v3621
          %vm3726 = vcmp.eq.s32.totalorder %v618, %v3622
          %vm3727 = vcmp.eq.s32.totalorder %v618, %v3623
          %vm3728 = vcmp.eq.s32.totalorder %v618, %v3624
          %vm3729 = vcmp.eq.s32.totalorder %v621, %v3621
          %vm3730 = vcmp.eq.s32.totalorder %v621, %v3622
          %vm3731 = vcmp.eq.s32.totalorder %v621, %v3623
          %vm3732 = vcmp.eq.s32.totalorder %v621, %v3624
          %vm3733 = vcmp.eq.s32.totalorder %v624, %v3621
          %vm3734 = vcmp.eq.s32.totalorder %v624, %v3622
          %vm3735 = vcmp.eq.s32.totalorder %v624, %v3623
          %vm3736 = vcmp.eq.s32.totalorder %v624, %v3624
          %vm3737 = vcmp.eq.s32.totalorder %v627, %v3621
          %vm3738 = vcmp.eq.s32.totalorder %v627, %v3622
          %vm3739 = vcmp.eq.s32.totalorder %v627, %v3623
          %vm3740 = vcmp.eq.s32.totalorder %v627, %v3624
          %vm3741 = vcmp.eq.s32.totalorder %v630, %v3621
          %vm3742 = vcmp.eq.s32.totalorder %v630, %v3622
          %vm3743 = vcmp.eq.s32.totalorder %v630, %v3623
          %vm3744 = vcmp.eq.s32.totalorder %v630, %v3624
          %vm3745 = vcmp.eq.s32.totalorder %v633, %v3621
          %vm3746 = vcmp.eq.s32.totalorder %v633, %v3622
          %vm3747 = vcmp.eq.s32.totalorder %v633, %v3623
          %vm3748 = vcmp.eq.s32.totalorder %v633, %v3624
          %vm3749 = vcmp.eq.s32.totalorder %v636, %v3621
          %vm3750 = vcmp.eq.s32.totalorder %v636, %v3622
          %vm3751 = vcmp.eq.s32.totalorder %v636, %v3623
          %vm3752 = vcmp.eq.s32.totalorder %v636, %v3624
          %vm3753 = vcmp.eq.s32.totalorder %v639, %v3621
          %vm3754 = vcmp.eq.s32.totalorder %v639, %v3622
          %vm3755 = vcmp.eq.s32.totalorder %v639, %v3623
          %vm3756 = vcmp.eq.s32.totalorder %v639, %v3624
          %vm3757 = vcmp.eq.s32.totalorder %v642, %v3621
          %vm3758 = vcmp.eq.s32.totalorder %v642, %v3622
          %vm3759 = vcmp.eq.s32.totalorder %v642, %v3623
          %vm3760 = vcmp.eq.s32.totalorder %v642, %v3624
          %vm3761 = vcmp.eq.s32.totalorder %v645, %v3621
          %vm3762 = vcmp.eq.s32.totalorder %v645, %v3622
          %vm3763 = vcmp.eq.s32.totalorder %v645, %v3623
          %vm3764 = vcmp.eq.s32.totalorder %v645, %v3624
          %vm3765 = vcmp.eq.s32.totalorder %v648, %v3621
          %vm3766 = vcmp.eq.s32.totalorder %v648, %v3622
          %vm3767 = vcmp.eq.s32.totalorder %v648, %v3623
          %vm3768 = vcmp.eq.s32.totalorder %v648, %v3624
          %vm3769 = vcmp.eq.s32.totalorder %v651, %v3621
          %vm3770 = vcmp.eq.s32.totalorder %v651, %v3622
          %vm3771 = vcmp.eq.s32.totalorder %v651, %v3623
          %vm3772 = vcmp.eq.s32.totalorder %v651, %v3624
          %vm3773 = vcmp.eq.s32.totalorder %v654, %v3621
          %vm3774 = vcmp.eq.s32.totalorder %v654, %v3622
          %vm3775 = vcmp.eq.s32.totalorder %v654, %v3623
          %vm3776 = vcmp.eq.s32.totalorder %v654, %v3624
          %vm3777 = vcmp.eq.s32.totalorder %v657, %v3621
          %vm3778 = vcmp.eq.s32.totalorder %v657, %v3622
          %vm3779 = vcmp.eq.s32.totalorder %v657, %v3623
          %vm3780 = vcmp.eq.s32.totalorder %v657, %v3624
          %vm3781 = vcmp.eq.s32.totalorder %v660, %v3621
          %vm3782 = vcmp.eq.s32.totalorder %v660, %v3622
          %vm3783 = vcmp.eq.s32.totalorder %v660, %v3623
          %vm3784 = vcmp.eq.s32.totalorder %v660, %v3624
          %vm3785 = vcmp.eq.s32.totalorder %v663, %v3621
          %vm3786 = vcmp.eq.s32.totalorder %v663, %v3622
          %vm3787 = vcmp.eq.s32.totalorder %v663, %v3623
          %vm3788 = vcmp.eq.s32.totalorder %v663, %v3624
          %vm3789 = vcmp.eq.s32.totalorder %v666, %v3621
          %vm3790 = vcmp.eq.s32.totalorder %v666, %v3622
          %vm3791 = vcmp.eq.s32.totalorder %v666, %v3623
          %vm3792 = vcmp.eq.s32.totalorder %v666, %v3624
          %vm3793 = vcmp.eq.s32.totalorder %v669, %v3621
          %vm3794 = vcmp.eq.s32.totalorder %v669, %v3622
          %vm3795 = vcmp.eq.s32.totalorder %v669, %v3623
          %vm3796 = vcmp.eq.s32.totalorder %v669, %v3624
          %vm3797 = vcmp.eq.s32.totalorder %v672, %v3621
          %vm3798 = vcmp.eq.s32.totalorder %v672, %v3622
          %vm3799 = vcmp.eq.s32.totalorder %v672, %v3623
          %vm3800 = vcmp.eq.s32.totalorder %v672, %v3624
          %vm3801 = vcmp.eq.s32.totalorder %v675, %v3621
          %vm3802 = vcmp.eq.s32.totalorder %v675, %v3622
          %vm3803 = vcmp.eq.s32.totalorder %v675, %v3623
          %vm3804 = vcmp.eq.s32.totalorder %v675, %v3624
          %vm3805 = vcmp.eq.s32.totalorder %v678, %v3621
          %vm3806 = vcmp.eq.s32.totalorder %v678, %v3622
          %vm3807 = vcmp.eq.s32.totalorder %v678, %v3623
          %vm3808 = vcmp.eq.s32.totalorder %v678, %v3624
          %vm3809 = vcmp.eq.s32.totalorder %v681, %v3621
          %vm3810 = vcmp.eq.s32.totalorder %v681, %v3622
          %vm3811 = vcmp.eq.s32.totalorder %v681, %v3623
          %vm3812 = vcmp.eq.s32.totalorder %v681, %v3624
          %vm3813 = vcmp.eq.s32.totalorder %v684, %v3621
          %vm3814 = vcmp.eq.s32.totalorder %v684, %v3622
          %vm3815 = vcmp.eq.s32.totalorder %v684, %v3623
          %vm3816 = vcmp.eq.s32.totalorder %v684, %v3624
          %vm3817 = vcmp.eq.s32.totalorder %v687, %v3621
          %vm3818 = vcmp.eq.s32.totalorder %v687, %v3622
          %vm3819 = vcmp.eq.s32.totalorder %v687, %v3623
          %vm3820 = vcmp.eq.s32.totalorder %v687, %v3624
          %vm3821 = vcmp.eq.s32.totalorder %v690, %v3621
          %vm3822 = vcmp.eq.s32.totalorder %v690, %v3622
          %vm3823 = vcmp.eq.s32.totalorder %v690, %v3623
          %vm3824 = vcmp.eq.s32.totalorder %v690, %v3624
          %vm3825 = vcmp.eq.s32.totalorder %v693, %v3621
          %vm3826 = vcmp.eq.s32.totalorder %v693, %v3622
          %vm3827 = vcmp.eq.s32.totalorder %v693, %v3623
          %vm3828 = vcmp.eq.s32.totalorder %v693, %v3624
          %vm3829 = vcmp.eq.s32.totalorder %v696, %v3621
          %vm3830 = vcmp.eq.s32.totalorder %v696, %v3622
          %vm3831 = vcmp.eq.s32.totalorder %v696, %v3623
          %vm3832 = vcmp.eq.s32.totalorder %v696, %v3624
          %vm3833 = vcmp.eq.s32.totalorder %v699, %v3621
          %vm3834 = vcmp.eq.s32.totalorder %v699, %v3622
          %vm3835 = vcmp.eq.s32.totalorder %v699, %v3623
          %vm3836 = vcmp.eq.s32.totalorder %v699, %v3624
          %vm3837 = vcmp.eq.s32.totalorder %v702, %v3621
          %vm3838 = vcmp.eq.s32.totalorder %v702, %v3622
          %vm3839 = vcmp.eq.s32.totalorder %v702, %v3623
          %vm3840 = vcmp.eq.s32.totalorder %v702, %v3624
          %vm3841 = vcmp.eq.s32.totalorder %v705, %v3621
          %vm3842 = vcmp.eq.s32.totalorder %v705, %v3622
          %vm3843 = vcmp.eq.s32.totalorder %v705, %v3623
          %vm3844 = vcmp.eq.s32.totalorder %v705, %v3624
          %vm3845 = vcmp.eq.s32.totalorder %v708, %v3621
          %vm3846 = vcmp.eq.s32.totalorder %v708, %v3622
          %vm3847 = vcmp.eq.s32.totalorder %v708, %v3623
          %vm3848 = vcmp.eq.s32.totalorder %v708, %v3624
          %vm3849 = vcmp.eq.s32.totalorder %v711, %v3621
          %vm3850 = vcmp.eq.s32.totalorder %v711, %v3622
          %vm3851 = vcmp.eq.s32.totalorder %v711, %v3623
          %vm3852 = vcmp.eq.s32.totalorder %v711, %v3624
          %vm3853 = vcmp.eq.s32.totalorder %v714, %v3621
          %vm3854 = vcmp.eq.s32.totalorder %v714, %v3622
          %vm3855 = vcmp.eq.s32.totalorder %v714, %v3623
          %vm3856 = vcmp.eq.s32.totalorder %v714, %v3624
          %vm3857 = vcmp.eq.s32.totalorder %v717, %v3621
          %vm3858 = vcmp.eq.s32.totalorder %v717, %v3622
          %vm3859 = vcmp.eq.s32.totalorder %v717, %v3623
          %vm3860 = vcmp.eq.s32.totalorder %v717, %v3624
          %vm3861 = vcmp.eq.s32.totalorder %v720, %v3621
          %vm3862 = vcmp.eq.s32.totalorder %v720, %v3622
          %vm3863 = vcmp.eq.s32.totalorder %v720, %v3623
          %vm3864 = vcmp.eq.s32.totalorder %v720, %v3624
          %vm3865 = vcmp.eq.s32.totalorder %v723, %v3621
          %vm3866 = vcmp.eq.s32.totalorder %v723, %v3622
          %vm3867 = vcmp.eq.s32.totalorder %v723, %v3623
          %vm3868 = vcmp.eq.s32.totalorder %v723, %v3624
          %vm3869 = vcmp.eq.s32.totalorder %v726, %v3621
          %vm3870 = vcmp.eq.s32.totalorder %v726, %v3622
          %vm3871 = vcmp.eq.s32.totalorder %v726, %v3623
          %vm3872 = vcmp.eq.s32.totalorder %v726, %v3624
          %vm3873 = vcmp.eq.s32.totalorder %v729, %v3621
          %vm3874 = vcmp.eq.s32.totalorder %v729, %v3622
          %vm3875 = vcmp.eq.s32.totalorder %v729, %v3623
          %vm3876 = vcmp.eq.s32.totalorder %v729, %v3624
          %vm3877 = vcmp.eq.s32.totalorder %v732, %v3621
          %vm3878 = vcmp.eq.s32.totalorder %v732, %v3622
          %vm3879 = vcmp.eq.s32.totalorder %v732, %v3623
          %vm3880 = vcmp.eq.s32.totalorder %v732, %v3624
          %3881 = vset.pattern.permute.xlu0 3
          %3882 = vperm.xlu0 %3881, %v403
          %v3883 = vpop.permute.xlu0 %3882
          %3885 = vset.pattern.permute.xlu0 3
          %3886 = vperm.xlu0 %3885, %v404
          %v3887 = vpop.permute.xlu0 %3886
          %3889 = vset.pattern.permute.xlu0 3
          %3890 = vperm.xlu0 %3889, %v405
          %v3891 = vpop.permute.xlu0 %3890
          %3893 = vset.pattern.permute.xlu0 3
          %3894 = vperm.xlu0 %3893, %v406
          %v3895 = vpop.permute.xlu0 %3894
          %3897 = vset.pattern.permute.xlu0 3
          %3898 = vperm.xlu0 %3897, %v407
          %v3899 = vpop.permute.xlu0 %3898
          %3901 = vset.pattern.permute.xlu0 3
          %3902 = vperm.xlu0 %3901, %v408
          %v3903 = vpop.permute.xlu0 %3902
          %3905 = vset.pattern.permute.xlu0 3
          %3906 = vperm.xlu0 %3905, %v409
          %v3907 = vpop.permute.xlu0 %3906
          %3909 = vset.pattern.permute.xlu0 3
          %3910 = vperm.xlu0 %3909, %v410
          %v3911 = vpop.permute.xlu0 %3910
          %3913 = vset.pattern.permute.xlu0 3
          %3914 = vperm.xlu0 %3913, %v411
          %v3915 = vpop.permute.xlu0 %3914
          %3917 = vset.pattern.permute.xlu0 3
          %3918 = vperm.xlu0 %3917, %v412
          %v3919 = vpop.permute.xlu0 %3918
          %3921 = vset.pattern.permute.xlu0 3
          %3922 = vperm.xlu0 %3921, %v413
          %v3923 = vpop.permute.xlu0 %3922
          %3925 = vset.pattern.permute.xlu0 3
          %3926 = vperm.xlu0 %3925, %v414
          %v3927 = vpop.permute.xlu0 %3926
          %3929 = vset.pattern.permute.xlu0 3
          %3930 = vperm.xlu0 %3929, %v415
          %v3931 = vpop.permute.xlu0 %3930
          %3933 = vset.pattern.permute.xlu0 3
          %3934 = vperm.xlu0 %3933, %v416
          %v3935 = vpop.permute.xlu0 %3934
          %3937 = vset.pattern.permute.xlu0 3
          %3938 = vperm.xlu0 %3937, %v417
          %v3939 = vpop.permute.xlu0 %3938
          %3941 = vset.pattern.permute.xlu0 3
          %3942 = vperm.xlu0 %3941, %v418
          %v3943 = vpop.permute.xlu0 %3942
          %3945 = vset.pattern.permute.xlu0 3
          %3946 = vperm.xlu0 %3945, %v419
          %v3947 = vpop.permute.xlu0 %3946
          %3949 = vset.pattern.permute.xlu0 3
          %3950 = vperm.xlu0 %3949, %v420
          %v3951 = vpop.permute.xlu0 %3950
          %3953 = vset.pattern.permute.xlu0 3
          %3954 = vperm.xlu0 %3953, %v421
          %v3955 = vpop.permute.xlu0 %3954
          %3957 = vset.pattern.permute.xlu0 3
          %3958 = vperm.xlu0 %3957, %v422
          %v3959 = vpop.permute.xlu0 %3958
          %3961 = vset.pattern.permute.xlu0 3
          %3962 = vperm.xlu0 %3961, %v423
          %v3963 = vpop.permute.xlu0 %3962
          %3965 = vset.pattern.permute.xlu0 3
          %3966 = vperm.xlu0 %3965, %v424
          %v3967 = vpop.permute.xlu0 %3966
          %3969 = vset.pattern.permute.xlu0 3
          %3970 = vperm.xlu0 %3969, %v425
          %v3971 = vpop.permute.xlu0 %3970
          %3973 = vset.pattern.permute.xlu0 3
          %3974 = vperm.xlu0 %3973, %v426
          %v3975 = vpop.permute.xlu0 %3974
          %3977 = vset.pattern.permute.xlu0 3
          %3978 = vperm.xlu0 %3977, %v427
          %v3979 = vpop.permute.xlu0 %3978
          %3981 = vset.pattern.permute.xlu0 3
          %3982 = vperm.xlu0 %3981, %v428
          %v3983 = vpop.permute.xlu0 %3982
          %3985 = vset.pattern.permute.xlu0 3
          %3986 = vperm.xlu0 %3985, %v429
          %v3987 = vpop.permute.xlu0 %3986
          %3989 = vset.pattern.permute.xlu0 3
          %3990 = vperm.xlu0 %3989, %v430
          %v3991 = vpop.permute.xlu0 %3990
          %3993 = vset.pattern.permute.xlu0 3
          %3994 = vperm.xlu0 %3993, %v431
          %v3995 = vpop.permute.xlu0 %3994
          %3997 = vset.pattern.permute.xlu0 3
          %3998 = vperm.xlu0 %3997, %v432
          %v3999 = vpop.permute.xlu0 %3998
          %4001 = vset.pattern.permute.xlu0 3
          %4002 = vperm.xlu0 %4001, %v433
          %v4003 = vpop.permute.xlu0 %4002
          %4005 = vset.pattern.permute.xlu0 3
          %4006 = vperm.xlu0 %4005, %v434
          %v4007 = vpop.permute.xlu0 %4006
          %4009 = vset.pattern.permute.xlu0 3
          %4010 = vperm.xlu0 %4009, %v435
          %v4011 = vpop.permute.xlu0 %4010
          %4013 = vset.pattern.permute.xlu0 3
          %4014 = vperm.xlu0 %4013, %v436
          %v4015 = vpop.permute.xlu0 %4014
          %4017 = vset.pattern.permute.xlu0 3
          %4018 = vperm.xlu0 %4017, %v437
          %v4019 = vpop.permute.xlu0 %4018
          %4021 = vset.pattern.permute.xlu0 3
          %4022 = vperm.xlu0 %4021, %v438
          %v4023 = vpop.permute.xlu0 %4022
          %4025 = vset.pattern.permute.xlu0 3
          %4026 = vperm.xlu0 %4025, %v439
          %v4027 = vpop.permute.xlu0 %4026
          %4029 = vset.pattern.permute.xlu0 3
          %4030 = vperm.xlu0 %4029, %v440
          %v4031 = vpop.permute.xlu0 %4030
          %4033 = vset.pattern.permute.xlu0 3
          %4034 = vperm.xlu0 %4033, %v441
          %v4035 = vpop.permute.xlu0 %4034
          %4037 = vset.pattern.permute.xlu0 3
          %4038 = vperm.xlu0 %4037, %v442
          %v4039 = vpop.permute.xlu0 %4038
          %4041 = vset.pattern.permute.xlu0 3
          %4042 = vperm.xlu0 %4041, %v443
          %v4043 = vpop.permute.xlu0 %4042
          %4045 = vset.pattern.permute.xlu0 3
          %4046 = vperm.xlu0 %4045, %v444
          %v4047 = vpop.permute.xlu0 %4046
          %4049 = vset.pattern.permute.xlu0 3
          %4050 = vperm.xlu0 %4049, %v445
          %v4051 = vpop.permute.xlu0 %4050
          %4053 = vset.pattern.permute.xlu0 3
          %4054 = vperm.xlu0 %4053, %v446
          %v4055 = vpop.permute.xlu0 %4054
          %4057 = vset.pattern.permute.xlu0 3
          %4058 = vperm.xlu0 %4057, %v447
          %v4059 = vpop.permute.xlu0 %4058
          %4061 = vset.pattern.permute.xlu0 3
          %4062 = vperm.xlu0 %4061, %v448
          %v4063 = vpop.permute.xlu0 %4062
          %4065 = vset.pattern.permute.xlu0 3
          %4066 = vperm.xlu0 %4065, %v449
          %v4067 = vpop.permute.xlu0 %4066
          %4069 = vset.pattern.permute.xlu0 3
          %4070 = vperm.xlu0 %4069, %v450
          %v4071 = vpop.permute.xlu0 %4070
          %4073 = vset.pattern.permute.xlu0 3
          %4074 = vperm.xlu0 %4073, %v451
          %v4075 = vpop.permute.xlu0 %4074
          %4077 = vset.pattern.permute.xlu0 3
          %4078 = vperm.xlu0 %4077, %v452
          %v4079 = vpop.permute.xlu0 %4078
          %4081 = vset.pattern.permute.xlu0 3
          %4082 = vperm.xlu0 %4081, %v453
          %v4083 = vpop.permute.xlu0 %4082
          %4085 = vset.pattern.permute.xlu0 3
          %4086 = vperm.xlu0 %4085, %v454
          %v4087 = vpop.permute.xlu0 %4086
          %4089 = vset.pattern.permute.xlu0 3
          %4090 = vperm.xlu0 %4089, %v455
          %v4091 = vpop.permute.xlu0 %4090
          %4093 = vset.pattern.permute.xlu0 3
          %4094 = vperm.xlu0 %4093, %v456
          %v4095 = vpop.permute.xlu0 %4094
          %4097 = vset.pattern.permute.xlu0 3
          %4098 = vperm.xlu0 %4097, %v457
          %v4099 = vpop.permute.xlu0 %4098
          %4101 = vset.pattern.permute.xlu0 3
          %4102 = vperm.xlu0 %4101, %v458
          %v4103 = vpop.permute.xlu0 %4102
          %4105 = vset.pattern.permute.xlu0 3
          %4106 = vperm.xlu0 %4105, %v459
          %v4107 = vpop.permute.xlu0 %4106
          %4109 = vset.pattern.permute.xlu0 3
          %4110 = vperm.xlu0 %4109, %v460
          %v4111 = vpop.permute.xlu0 %4110
          %4113 = vset.pattern.permute.xlu0 3
          %4114 = vperm.xlu0 %4113, %v461
          %v4115 = vpop.permute.xlu0 %4114
          %4117 = vset.pattern.permute.xlu0 3
          %4118 = vperm.xlu0 %4117, %v462
          %v4119 = vpop.permute.xlu0 %4118
          %4121 = vset.pattern.permute.xlu0 3
          %4122 = vperm.xlu0 %4121, %v463
          %v4123 = vpop.permute.xlu0 %4122
          %4125 = vset.pattern.permute.xlu0 3
          %4126 = vperm.xlu0 %4125, %v464
          %v4127 = vpop.permute.xlu0 %4126
          %4129 = vset.pattern.permute.xlu0 3
          %4130 = vperm.xlu0 %4129, %v465
          %v4131 = vpop.permute.xlu0 %4130
          %4133 = vset.pattern.permute.xlu0 3
          %4134 = vperm.xlu0 %4133, %v466
          %v4135 = vpop.permute.xlu0 %4134
          %v4137 = vsel %vm3625, %v3883, 0.0
          %v4138 = vsel %vm3626, %v3883, 0.0
          %v4139 = vsel %vm3627, %v3883, 0.0
          %v4140 = vsel %vm3628, %v3883, 0.0
          %v4141 = vsel %vm3629, %v3887, 0.0
          %v4142 = vsel %vm3630, %v3887, 0.0
          %v4143 = vsel %vm3631, %v3887, 0.0
          %v4144 = vsel %vm3632, %v3887, 0.0
          %v4145 = vsel %vm3633, %v3891, 0.0
          %v4146 = vsel %vm3634, %v3891, 0.0
          %v4147 = vsel %vm3635, %v3891, 0.0
          %v4148 = vsel %vm3636, %v3891, 0.0
          %v4149 = vsel %vm3637, %v3895, 0.0
          %v4150 = vsel %vm3638, %v3895, 0.0
          %v4151 = vsel %vm3639, %v3895, 0.0
          %v4152 = vsel %vm3640, %v3895, 0.0
          %v4153 = vsel %vm3641, %v3899, 0.0
          %v4154 = vsel %vm3642, %v3899, 0.0
          %v4155 = vsel %vm3643, %v3899, 0.0
          %v4156 = vsel %vm3644, %v3899, 0.0
          %v4157 = vsel %vm3645, %v3903, 0.0
          %v4158 = vsel %vm3646, %v3903, 0.0
          %v4159 = vsel %vm3647, %v3903, 0.0
          %v4160 = vsel %vm3648, %v3903, 0.0
          %v4161 = vsel %vm3649, %v3907, 0.0
          %v4162 = vsel %vm3650, %v3907, 0.0
          %v4163 = vsel %vm3651, %v3907, 0.0
          %v4164 = vsel %vm3652, %v3907, 0.0
          %v4165 = vsel %vm3653, %v3911, 0.0
          %v4166 = vsel %vm3654, %v3911, 0.0
          %v4167 = vsel %vm3655, %v3911, 0.0
          %v4168 = vsel %vm3656, %v3911, 0.0
          %v4169 = vsel %vm3657, %v3915, 0.0
          %v4170 = vsel %vm3658, %v3915, 0.0
          %v4171 = vsel %vm3659, %v3915, 0.0
          %v4172 = vsel %vm3660, %v3915, 0.0
          %v4173 = vsel %vm3661, %v3919, 0.0
          %v4174 = vsel %vm3662, %v3919, 0.0
          %v4175 = vsel %vm3663, %v3919, 0.0
          %v4176 = vsel %vm3664, %v3919, 0.0
          %v4177 = vsel %vm3665, %v3923, 0.0
          %v4178 = vsel %vm3666, %v3923, 0.0
          %v4179 = vsel %vm3667, %v3923, 0.0
          %v4180 = vsel %vm3668, %v3923, 0.0
          %v4181 = vsel %vm3669, %v3927, 0.0
          %v4182 = vsel %vm3670, %v3927, 0.0
          %v4183 = vsel %vm3671, %v3927, 0.0
          %v4184 = vsel %vm3672, %v3927, 0.0
          %v4185 = vsel %vm3673, %v3931, 0.0
          %v4186 = vsel %vm3674, %v3931, 0.0
          %v4187 = vsel %vm3675, %v3931, 0.0
          %v4188 = vsel %vm3676, %v3931, 0.0
          %v4189 = vsel %vm3677, %v3935, 0.0
          %v4190 = vsel %vm3678, %v3935, 0.0
          %v4191 = vsel %vm3679, %v3935, 0.0
          %v4192 = vsel %vm3680, %v3935, 0.0
          %v4193 = vsel %vm3681, %v3939, 0.0
          %v4194 = vsel %vm3682, %v3939, 0.0
          %v4195 = vsel %vm3683, %v3939, 0.0
          %v4196 = vsel %vm3684, %v3939, 0.0
          %v4197 = vsel %vm3685, %v3943, 0.0
          %v4198 = vsel %vm3686, %v3943, 0.0
          %v4199 = vsel %vm3687, %v3943, 0.0
          %v4200 = vsel %vm3688, %v3943, 0.0
          %v4201 = vsel %vm3689, %v3947, 0.0
          %v4202 = vsel %vm3690, %v3947, 0.0
          %v4203 = vsel %vm3691, %v3947, 0.0
          %v4204 = vsel %vm3692, %v3947, 0.0
          %v4205 = vsel %vm3693, %v3951, 0.0
          %v4206 = vsel %vm3694, %v3951, 0.0
          %v4207 = vsel %vm3695, %v3951, 0.0
          %v4208 = vsel %vm3696, %v3951, 0.0
          %v4209 = vsel %vm3697, %v3955, 0.0
          %v4210 = vsel %vm3698, %v3955, 0.0
          %v4211 = vsel %vm3699, %v3955, 0.0
          %v4212 = vsel %vm3700, %v3955, 0.0
          %v4213 = vsel %vm3701, %v3959, 0.0
          %v4214 = vsel %vm3702, %v3959, 0.0
          %v4215 = vsel %vm3703, %v3959, 0.0
          %v4216 = vsel %vm3704, %v3959, 0.0
          %v4217 = vsel %vm3705, %v3963, 0.0
          %v4218 = vsel %vm3706, %v3963, 0.0
          %v4219 = vsel %vm3707, %v3963, 0.0
          %v4220 = vsel %vm3708, %v3963, 0.0
          %v4221 = vsel %vm3709, %v3967, 0.0
          %v4222 = vsel %vm3710, %v3967, 0.0
          %v4223 = vsel %vm3711, %v3967, 0.0
          %v4224 = vsel %vm3712, %v3967, 0.0
          %v4225 = vsel %vm3713, %v3971, 0.0
          %v4226 = vsel %vm3714, %v3971, 0.0
          %v4227 = vsel %vm3715, %v3971, 0.0
          %v4228 = vsel %vm3716, %v3971, 0.0
          %v4229 = vsel %vm3717, %v3975, 0.0
          %v4230 = vsel %vm3718, %v3975, 0.0
          %v4231 = vsel %vm3719, %v3975, 0.0
          %v4232 = vsel %vm3720, %v3975, 0.0
          %v4233 = vsel %vm3721, %v3979, 0.0
          %v4234 = vsel %vm3722, %v3979, 0.0
          %v4235 = vsel %vm3723, %v3979, 0.0
          %v4236 = vsel %vm3724, %v3979, 0.0
          %v4237 = vsel %vm3725, %v3983, 0.0
          %v4238 = vsel %vm3726, %v3983, 0.0
          %v4239 = vsel %vm3727, %v3983, 0.0
          %v4240 = vsel %vm3728, %v3983, 0.0
          %v4241 = vsel %vm3729, %v3987, 0.0
          %v4242 = vsel %vm3730, %v3987, 0.0
          %v4243 = vsel %vm3731, %v3987, 0.0
          %v4244 = vsel %vm3732, %v3987, 0.0
          %v4245 = vsel %vm3733, %v3991, 0.0
          %v4246 = vsel %vm3734, %v3991, 0.0
          %v4247 = vsel %vm3735, %v3991, 0.0
          %v4248 = vsel %vm3736, %v3991, 0.0
          %v4249 = vsel %vm3737, %v3995, 0.0
          %v4250 = vsel %vm3738, %v3995, 0.0
          %v4251 = vsel %vm3739, %v3995, 0.0
          %v4252 = vsel %vm3740, %v3995, 0.0
          %v4253 = vsel %vm3741, %v3999, 0.0
          %v4254 = vsel %vm3742, %v3999, 0.0
          %v4255 = vsel %vm3743, %v3999, 0.0
          %v4256 = vsel %vm3744, %v3999, 0.0
          %v4257 = vsel %vm3745, %v4003, 0.0
          %v4258 = vsel %vm3746, %v4003, 0.0
          %v4259 = vsel %vm3747, %v4003, 0.0
          %v4260 = vsel %vm3748, %v4003, 0.0
          %v4261 = vsel %vm3749, %v4007, 0.0
          %v4262 = vsel %vm3750, %v4007, 0.0
          %v4263 = vsel %vm3751, %v4007, 0.0
          %v4264 = vsel %vm3752, %v4007, 0.0
          %v4265 = vsel %vm3753, %v4011, 0.0
          %v4266 = vsel %vm3754, %v4011, 0.0
          %v4267 = vsel %vm3755, %v4011, 0.0
          %v4268 = vsel %vm3756, %v4011, 0.0
          %v4269 = vsel %vm3757, %v4015, 0.0
          %v4270 = vsel %vm3758, %v4015, 0.0
          %v4271 = vsel %vm3759, %v4015, 0.0
          %v4272 = vsel %vm3760, %v4015, 0.0
          %v4273 = vsel %vm3761, %v4019, 0.0
          %v4274 = vsel %vm3762, %v4019, 0.0
          %v4275 = vsel %vm3763, %v4019, 0.0
          %v4276 = vsel %vm3764, %v4019, 0.0
          %v4277 = vsel %vm3765, %v4023, 0.0
          %v4278 = vsel %vm3766, %v4023, 0.0
          %v4279 = vsel %vm3767, %v4023, 0.0
          %v4280 = vsel %vm3768, %v4023, 0.0
          %v4281 = vsel %vm3769, %v4027, 0.0
          %v4282 = vsel %vm3770, %v4027, 0.0
          %v4283 = vsel %vm3771, %v4027, 0.0
          %v4284 = vsel %vm3772, %v4027, 0.0
          %v4285 = vsel %vm3773, %v4031, 0.0
          %v4286 = vsel %vm3774, %v4031, 0.0
          %v4287 = vsel %vm3775, %v4031, 0.0
          %v4288 = vsel %vm3776, %v4031, 0.0
          %v4289 = vsel %vm3777, %v4035, 0.0
          %v4290 = vsel %vm3778, %v4035, 0.0
          %v4291 = vsel %vm3779, %v4035, 0.0
          %v4292 = vsel %vm3780, %v4035, 0.0
          %v4293 = vsel %vm3781, %v4039, 0.0
          %v4294 = vsel %vm3782, %v4039, 0.0
          %v4295 = vsel %vm3783, %v4039, 0.0
          %v4296 = vsel %vm3784, %v4039, 0.0
          %v4297 = vsel %vm3785, %v4043, 0.0
          %v4298 = vsel %vm3786, %v4043, 0.0
          %v4299 = vsel %vm3787, %v4043, 0.0
          %v4300 = vsel %vm3788, %v4043, 0.0
          %v4301 = vsel %vm3789, %v4047, 0.0
          %v4302 = vsel %vm3790, %v4047, 0.0
          %v4303 = vsel %vm3791, %v4047, 0.0
          %v4304 = vsel %vm3792, %v4047, 0.0
          %v4305 = vsel %vm3793, %v4051, 0.0
          %v4306 = vsel %vm3794, %v4051, 0.0
          %v4307 = vsel %vm3795, %v4051, 0.0
          %v4308 = vsel %vm3796, %v4051, 0.0
          %v4309 = vsel %vm3797, %v4055, 0.0
          %v4310 = vsel %vm3798, %v4055, 0.0
          %v4311 = vsel %vm3799, %v4055, 0.0
          %v4312 = vsel %vm3800, %v4055, 0.0
          %v4313 = vsel %vm3801, %v4059, 0.0
          %v4314 = vsel %vm3802, %v4059, 0.0
          %v4315 = vsel %vm3803, %v4059, 0.0
          %v4316 = vsel %vm3804, %v4059, 0.0
          %v4317 = vsel %vm3805, %v4063, 0.0
          %v4318 = vsel %vm3806, %v4063, 0.0
          %v4319 = vsel %vm3807, %v4063, 0.0
          %v4320 = vsel %vm3808, %v4063, 0.0
          %v4321 = vsel %vm3809, %v4067, 0.0
          %v4322 = vsel %vm3810, %v4067, 0.0
          %v4323 = vsel %vm3811, %v4067, 0.0
          %v4324 = vsel %vm3812, %v4067, 0.0
          %v4325 = vsel %vm3813, %v4071, 0.0
          %v4326 = vsel %vm3814, %v4071, 0.0
          %v4327 = vsel %vm3815, %v4071, 0.0
          %v4328 = vsel %vm3816, %v4071, 0.0
          %v4329 = vsel %vm3817, %v4075, 0.0
          %v4330 = vsel %vm3818, %v4075, 0.0
          %v4331 = vsel %vm3819, %v4075, 0.0
          %v4332 = vsel %vm3820, %v4075, 0.0
          %v4333 = vsel %vm3821, %v4079, 0.0
          %v4334 = vsel %vm3822, %v4079, 0.0
          %v4335 = vsel %vm3823, %v4079, 0.0
          %v4336 = vsel %vm3824, %v4079, 0.0
          %v4337 = vsel %vm3825, %v4083, 0.0
          %v4338 = vsel %vm3826, %v4083, 0.0
          %v4339 = vsel %vm3827, %v4083, 0.0
          %v4340 = vsel %vm3828, %v4083, 0.0
          %v4341 = vsel %vm3829, %v4087, 0.0
          %v4342 = vsel %vm3830, %v4087, 0.0
          %v4343 = vsel %vm3831, %v4087, 0.0
          %v4344 = vsel %vm3832, %v4087, 0.0
          %v4345 = vsel %vm3833, %v4091, 0.0
          %v4346 = vsel %vm3834, %v4091, 0.0
          %v4347 = vsel %vm3835, %v4091, 0.0
          %v4348 = vsel %vm3836, %v4091, 0.0
          %v4349 = vsel %vm3837, %v4095, 0.0
          %v4350 = vsel %vm3838, %v4095, 0.0
          %v4351 = vsel %vm3839, %v4095, 0.0
          %v4352 = vsel %vm3840, %v4095, 0.0
          %v4353 = vsel %vm3841, %v4099, 0.0
          %v4354 = vsel %vm3842, %v4099, 0.0
          %v4355 = vsel %vm3843, %v4099, 0.0
          %v4356 = vsel %vm3844, %v4099, 0.0
          %v4357 = vsel %vm3845, %v4103, 0.0
          %v4358 = vsel %vm3846, %v4103, 0.0
          %v4359 = vsel %vm3847, %v4103, 0.0
          %v4360 = vsel %vm3848, %v4103, 0.0
          %v4361 = vsel %vm3849, %v4107, 0.0
          %v4362 = vsel %vm3850, %v4107, 0.0
          %v4363 = vsel %vm3851, %v4107, 0.0
          %v4364 = vsel %vm3852, %v4107, 0.0
          %v4365 = vsel %vm3853, %v4111, 0.0
          %v4366 = vsel %vm3854, %v4111, 0.0
          %v4367 = vsel %vm3855, %v4111, 0.0
          %v4368 = vsel %vm3856, %v4111, 0.0
          %v4369 = vsel %vm3857, %v4115, 0.0
          %v4370 = vsel %vm3858, %v4115, 0.0
          %v4371 = vsel %vm3859, %v4115, 0.0
          %v4372 = vsel %vm3860, %v4115, 0.0
          %v4373 = vsel %vm3861, %v4119, 0.0
          %v4374 = vsel %vm3862, %v4119, 0.0
          %v4375 = vsel %vm3863, %v4119, 0.0
          %v4376 = vsel %vm3864, %v4119, 0.0
          %v4377 = vsel %vm3865, %v4123, 0.0
          %v4378 = vsel %vm3866, %v4123, 0.0
          %v4379 = vsel %vm3867, %v4123, 0.0
          %v4380 = vsel %vm3868, %v4123, 0.0
          %v4381 = vsel %vm3869, %v4127, 0.0
          %v4382 = vsel %vm3870, %v4127, 0.0
          %v4383 = vsel %vm3871, %v4127, 0.0
          %v4384 = vsel %vm3872, %v4127, 0.0
          %v4385 = vsel %vm3873, %v4131, 0.0
          %v4386 = vsel %vm3874, %v4131, 0.0
          %v4387 = vsel %vm3875, %v4131, 0.0
          %v4388 = vsel %vm3876, %v4131, 0.0
          %v4389 = vsel %vm3877, %v4135, 0.0
          %v4390 = vsel %vm3878, %v4135, 0.0
          %v4391 = vsel %vm3879, %v4135, 0.0
          %v4392 = vsel %vm3880, %v4135, 0.0
          %v4393 = vadd.f32 %v3365, %v4137
          %v4394 = vadd.f32 %v3366, %v4138
          %v4395 = vadd.f32 %v3367, %v4139
          %v4396 = vadd.f32 %v3368, %v4140
          %v4397 = vadd.f32 %v3369, %v4141
          %v4398 = vadd.f32 %v3370, %v4142
          %v4399 = vadd.f32 %v3371, %v4143
          %v4400 = vadd.f32 %v3372, %v4144
          %v4401 = vadd.f32 %v3373, %v4145
          %v4402 = vadd.f32 %v3374, %v4146
          %v4403 = vadd.f32 %v3375, %v4147
          %v4404 = vadd.f32 %v3376, %v4148
          %v4405 = vadd.f32 %v3377, %v4149
          %v4406 = vadd.f32 %v3378, %v4150
          %v4407 = vadd.f32 %v3379, %v4151
          %v4408 = vadd.f32 %v3380, %v4152
          %v4409 = vadd.f32 %v3381, %v4153
          %v4410 = vadd.f32 %v3382, %v4154
          %v4411 = vadd.f32 %v3383, %v4155
          %v4412 = vadd.f32 %v3384, %v4156
          %v4413 = vadd.f32 %v3385, %v4157
          %v4414 = vadd.f32 %v3386, %v4158
          %v4415 = vadd.f32 %v3387, %v4159
          %v4416 = vadd.f32 %v3388, %v4160
          %v4417 = vadd.f32 %v3389, %v4161
          %v4418 = vadd.f32 %v3390, %v4162
          %v4419 = vadd.f32 %v3391, %v4163
          %v4420 = vadd.f32 %v3392, %v4164
          %v4421 = vadd.f32 %v3393, %v4165
          %v4422 = vadd.f32 %v3394, %v4166
          %v4423 = vadd.f32 %v3395, %v4167
          %v4424 = vadd.f32 %v3396, %v4168
          %v4425 = vadd.f32 %v3397, %v4169
          %v4426 = vadd.f32 %v3398, %v4170
          %v4427 = vadd.f32 %v3399, %v4171
          %v4428 = vadd.f32 %v3400, %v4172
          %v4429 = vadd.f32 %v3401, %v4173
          %v4430 = vadd.f32 %v3402, %v4174
          %v4431 = vadd.f32 %v3403, %v4175
          %v4432 = vadd.f32 %v3404, %v4176
          %v4433 = vadd.f32 %v3405, %v4177
          %v4434 = vadd.f32 %v3406, %v4178
          %v4435 = vadd.f32 %v3407, %v4179
          %v4436 = vadd.f32 %v3408, %v4180
          %v4437 = vadd.f32 %v3409, %v4181
          %v4438 = vadd.f32 %v3410, %v4182
          %v4439 = vadd.f32 %v3411, %v4183
          %v4440 = vadd.f32 %v3412, %v4184
          %v4441 = vadd.f32 %v3413, %v4185
          %v4442 = vadd.f32 %v3414, %v4186
          %v4443 = vadd.f32 %v3415, %v4187
          %v4444 = vadd.f32 %v3416, %v4188
          %v4445 = vadd.f32 %v3417, %v4189
          %v4446 = vadd.f32 %v3418, %v4190
          %v4447 = vadd.f32 %v3419, %v4191
          %v4448 = vadd.f32 %v3420, %v4192
          %v4449 = vadd.f32 %v3421, %v4193
          %v4450 = vadd.f32 %v3422, %v4194
          %v4451 = vadd.f32 %v3423, %v4195
          %v4452 = vadd.f32 %v3424, %v4196
          %v4453 = vadd.f32 %v3425, %v4197
          %v4454 = vadd.f32 %v3426, %v4198
          %v4455 = vadd.f32 %v3427, %v4199
          %v4456 = vadd.f32 %v3428, %v4200
          %v4457 = vadd.f32 %v3429, %v4201
          %v4458 = vadd.f32 %v3430, %v4202
          %v4459 = vadd.f32 %v3431, %v4203
          %v4460 = vadd.f32 %v3432, %v4204
          %v4461 = vadd.f32 %v3433, %v4205
          %v4462 = vadd.f32 %v3434, %v4206
          %v4463 = vadd.f32 %v3435, %v4207
          %v4464 = vadd.f32 %v3436, %v4208
          %v4465 = vadd.f32 %v3437, %v4209
          %v4466 = vadd.f32 %v3438, %v4210
          %v4467 = vadd.f32 %v3439, %v4211
          %v4468 = vadd.f32 %v3440, %v4212
          %v4469 = vadd.f32 %v3441, %v4213
          %v4470 = vadd.f32 %v3442, %v4214
          %v4471 = vadd.f32 %v3443, %v4215
          %v4472 = vadd.f32 %v3444, %v4216
          %v4473 = vadd.f32 %v3445, %v4217
          %v4474 = vadd.f32 %v3446, %v4218
          %v4475 = vadd.f32 %v3447, %v4219
          %v4476 = vadd.f32 %v3448, %v4220
          %v4477 = vadd.f32 %v3449, %v4221
          %v4478 = vadd.f32 %v3450, %v4222
          %v4479 = vadd.f32 %v3451, %v4223
          %v4480 = vadd.f32 %v3452, %v4224
          %v4481 = vadd.f32 %v3453, %v4225
          %v4482 = vadd.f32 %v3454, %v4226
          %v4483 = vadd.f32 %v3455, %v4227
          %v4484 = vadd.f32 %v3456, %v4228
          %v4485 = vadd.f32 %v3457, %v4229
          %v4486 = vadd.f32 %v3458, %v4230
          %v4487 = vadd.f32 %v3459, %v4231
          %v4488 = vadd.f32 %v3460, %v4232
          %v4489 = vadd.f32 %v3461, %v4233
          %v4490 = vadd.f32 %v3462, %v4234
          %v4491 = vadd.f32 %v3463, %v4235
          %v4492 = vadd.f32 %v3464, %v4236
          %v4493 = vadd.f32 %v3465, %v4237
          %v4494 = vadd.f32 %v3466, %v4238
          %v4495 = vadd.f32 %v3467, %v4239
          %v4496 = vadd.f32 %v3468, %v4240
          %v4497 = vadd.f32 %v3469, %v4241
          %v4498 = vadd.f32 %v3470, %v4242
          %v4499 = vadd.f32 %v3471, %v4243
          %v4500 = vadd.f32 %v3472, %v4244
          %v4501 = vadd.f32 %v3473, %v4245
          %v4502 = vadd.f32 %v3474, %v4246
          %v4503 = vadd.f32 %v3475, %v4247
          %v4504 = vadd.f32 %v3476, %v4248
          %v4505 = vadd.f32 %v3477, %v4249
          %v4506 = vadd.f32 %v3478, %v4250
          %v4507 = vadd.f32 %v3479, %v4251
          %v4508 = vadd.f32 %v3480, %v4252
          %v4509 = vadd.f32 %v3481, %v4253
          %v4510 = vadd.f32 %v3482, %v4254
          %v4511 = vadd.f32 %v3483, %v4255
          %v4512 = vadd.f32 %v3484, %v4256
          %v4513 = vadd.f32 %v3485, %v4257
          %v4514 = vadd.f32 %v3486, %v4258
          %v4515 = vadd.f32 %v3487, %v4259
          %v4516 = vadd.f32 %v3488, %v4260
          %v4517 = vadd.f32 %v3489, %v4261
          %v4518 = vadd.f32 %v3490, %v4262
          %v4519 = vadd.f32 %v3491, %v4263
          %v4520 = vadd.f32 %v3492, %v4264
          %v4521 = vadd.f32 %v3493, %v4265
          %v4522 = vadd.f32 %v3494, %v4266
          %v4523 = vadd.f32 %v3495, %v4267
          %v4524 = vadd.f32 %v3496, %v4268
          %v4525 = vadd.f32 %v3497, %v4269
          %v4526 = vadd.f32 %v3498, %v4270
          %v4527 = vadd.f32 %v3499, %v4271
          %v4528 = vadd.f32 %v3500, %v4272
          %v4529 = vadd.f32 %v3501, %v4273
          %v4530 = vadd.f32 %v3502, %v4274
          %v4531 = vadd.f32 %v3503, %v4275
          %v4532 = vadd.f32 %v3504, %v4276
          %v4533 = vadd.f32 %v3505, %v4277
          %v4534 = vadd.f32 %v3506, %v4278
          %v4535 = vadd.f32 %v3507, %v4279
          %v4536 = vadd.f32 %v3508, %v4280
          %v4537 = vadd.f32 %v3509, %v4281
          %v4538 = vadd.f32 %v3510, %v4282
          %v4539 = vadd.f32 %v3511, %v4283
          %v4540 = vadd.f32 %v3512, %v4284
          %v4541 = vadd.f32 %v3513, %v4285
          %v4542 = vadd.f32 %v3514, %v4286
          %v4543 = vadd.f32 %v3515, %v4287
          %v4544 = vadd.f32 %v3516, %v4288
          %v4545 = vadd.f32 %v3517, %v4289
          %v4546 = vadd.f32 %v3518, %v4290
          %v4547 = vadd.f32 %v3519, %v4291
          %v4548 = vadd.f32 %v3520, %v4292
          %v4549 = vadd.f32 %v3521, %v4293
          %v4550 = vadd.f32 %v3522, %v4294
          %v4551 = vadd.f32 %v3523, %v4295
          %v4552 = vadd.f32 %v3524, %v4296
          %v4553 = vadd.f32 %v3525, %v4297
          %v4554 = vadd.f32 %v3526, %v4298
          %v4555 = vadd.f32 %v3527, %v4299
          %v4556 = vadd.f32 %v3528, %v4300
          %v4557 = vadd.f32 %v3529, %v4301
          %v4558 = vadd.f32 %v3530, %v4302
          %v4559 = vadd.f32 %v3531, %v4303
          %v4560 = vadd.f32 %v3532, %v4304
          %v4561 = vadd.f32 %v3533, %v4305
          %v4562 = vadd.f32 %v3534, %v4306
          %v4563 = vadd.f32 %v3535, %v4307
          %v4564 = vadd.f32 %v3536, %v4308
          %v4565 = vadd.f32 %v3537, %v4309
          %v4566 = vadd.f32 %v3538, %v4310
          %v4567 = vadd.f32 %v3539, %v4311
          %v4568 = vadd.f32 %v3540, %v4312
          %v4569 = vadd.f32 %v3541, %v4313
          %v4570 = vadd.f32 %v3542, %v4314
          %v4571 = vadd.f32 %v3543, %v4315
          %v4572 = vadd.f32 %v3544, %v4316
          %v4573 = vadd.f32 %v3545, %v4317
          %v4574 = vadd.f32 %v3546, %v4318
          %v4575 = vadd.f32 %v3547, %v4319
          %v4576 = vadd.f32 %v3548, %v4320
          %v4577 = vadd.f32 %v3549, %v4321
          %v4578 = vadd.f32 %v3550, %v4322
          %v4579 = vadd.f32 %v3551, %v4323
          %v4580 = vadd.f32 %v3552, %v4324
          %v4581 = vadd.f32 %v3553, %v4325
          %v4582 = vadd.f32 %v3554, %v4326
          %v4583 = vadd.f32 %v3555, %v4327
          %v4584 = vadd.f32 %v3556, %v4328
          %v4585 = vadd.f32 %v3557, %v4329
          %v4586 = vadd.f32 %v3558, %v4330
          %v4587 = vadd.f32 %v3559, %v4331
          %v4588 = vadd.f32 %v3560, %v4332
          %v4589 = vadd.f32 %v3561, %v4333
          %v4590 = vadd.f32 %v3562, %v4334
          %v4591 = vadd.f32 %v3563, %v4335
          %v4592 = vadd.f32 %v3564, %v4336
          %v4593 = vadd.f32 %v3565, %v4337
          %v4594 = vadd.f32 %v3566, %v4338
          %v4595 = vadd.f32 %v3567, %v4339
          %v4596 = vadd.f32 %v3568, %v4340
          %v4597 = vadd.f32 %v3569, %v4341
          %v4598 = vadd.f32 %v3570, %v4342
          %v4599 = vadd.f32 %v3571, %v4343
          %v4600 = vadd.f32 %v3572, %v4344
          %v4601 = vadd.f32 %v3573, %v4345
          %v4602 = vadd.f32 %v3574, %v4346
          %v4603 = vadd.f32 %v3575, %v4347
          %v4604 = vadd.f32 %v3576, %v4348
          %v4605 = vadd.f32 %v3577, %v4349
          %v4606 = vadd.f32 %v3578, %v4350
          %v4607 = vadd.f32 %v3579, %v4351
          %v4608 = vadd.f32 %v3580, %v4352
          %v4609 = vadd.f32 %v3581, %v4353
          %v4610 = vadd.f32 %v3582, %v4354
          %v4611 = vadd.f32 %v3583, %v4355
          %v4612 = vadd.f32 %v3584, %v4356
          %v4613 = vadd.f32 %v3585, %v4357
          %v4614 = vadd.f32 %v3586, %v4358
          %v4615 = vadd.f32 %v3587, %v4359
          %v4616 = vadd.f32 %v3588, %v4360
          %v4617 = vadd.f32 %v3589, %v4361
          %v4618 = vadd.f32 %v3590, %v4362
          %v4619 = vadd.f32 %v3591, %v4363
          %v4620 = vadd.f32 %v3592, %v4364
          %v4621 = vadd.f32 %v3593, %v4365
          %v4622 = vadd.f32 %v3594, %v4366
          %v4623 = vadd.f32 %v3595, %v4367
          %v4624 = vadd.f32 %v3596, %v4368
          %v4625 = vadd.f32 %v3597, %v4369
          %v4626 = vadd.f32 %v3598, %v4370
          %v4627 = vadd.f32 %v3599, %v4371
          %v4628 = vadd.f32 %v3600, %v4372
          %v4629 = vadd.f32 %v3601, %v4373
          %v4630 = vadd.f32 %v3602, %v4374
          %v4631 = vadd.f32 %v3603, %v4375
          %v4632 = vadd.f32 %v3604, %v4376
          %v4633 = vadd.f32 %v3605, %v4377
          %v4634 = vadd.f32 %v3606, %v4378
          %v4635 = vadd.f32 %v3607, %v4379
          %v4636 = vadd.f32 %v3608, %v4380
          %v4637 = vadd.f32 %v3609, %v4381
          %v4638 = vadd.f32 %v3610, %v4382
          %v4639 = vadd.f32 %v3611, %v4383
          %v4640 = vadd.f32 %v3612, %v4384
          %v4641 = vadd.f32 %v3613, %v4385
          %v4642 = vadd.f32 %v3614, %v4386
          %v4643 = vadd.f32 %v3615, %v4387
          %v4644 = vadd.f32 %v3616, %v4388
          %v4645 = vadd.f32 %v3617, %v4389
          %v4646 = vadd.f32 %v3618, %v4390
          %v4647 = vadd.f32 %v3619, %v4391
          %v4648 = vadd.f32 %v3620, %v4392
          %v4649 = vld [vmem:[%s324] sm:$0xff]
          %v4650 = vld [vmem:[%s324 + $0x8] sm:$0xff]
          %v4653 = vcombine.high %v401, %v401
          %v4654 = vcombine.high %v402, %v402
          %4657 = vmatprep.subr.mxu0 %v4394
          %4658 = vmatpush1.msra.mxu0 %v4393
          %4659 = vmatprep.subr.mxu0 %v4398
          %4660 = vmatpush1.msra.mxu0 %v4397
          %4661 = vmatprep.subr.mxu0 %v4402
          %4662 = vmatpush1.msra.mxu0 %v4401
          %4663 = vmatprep.subr.mxu0 %v4406
          %4664 = vmatpush1.msra.mxu0 %v4405
          %4665 = vmatprep.subr.mxu0 %v4410
          %4666 = vmatpush1.msra.mxu0 %v4409
          %4667 = vmatprep.subr.mxu0 %v4414
          %4668 = vmatpush1.msra.mxu0 %v4413
          %4669 = vmatprep.subr.mxu0 %v4418
          %4670 = vmatpush1.msra.mxu0 %v4417
          %4671 = vmatprep.subr.mxu0 %v4422
          %4672 = vmatpush1.msra.mxu0 %v4421
          %4673 = vmatprep.subr.mxu0 %v4426
          %4674 = vmatpush1.msra.mxu0 %v4425
          %4675 = vmatprep.subr.mxu0 %v4430
          %4676 = vmatpush1.msra.mxu0 %v4429
          %4677 = vmatprep.subr.mxu0 %v4434
          %4678 = vmatpush1.msra.mxu0 %v4433
          %4679 = vmatprep.subr.mxu0 %v4438
          %4680 = vmatpush1.msra.mxu0 %v4437
          %4681 = vmatprep.subr.mxu0 %v4442
          %4682 = vmatpush1.msra.mxu0 %v4441
          %4683 = vmatprep.subr.mxu0 %v4446
          %4684 = vmatpush1.msra.mxu0 %v4445
          %4685 = vmatprep.subr.mxu0 %v4450
          %4686 = vmatpush1.msra.mxu0 %v4449
          %4687 = vmatprep.subr.mxu0 %v4454
          %4688 = vmatpush1.msra.mxu0 %v4453
          %4689 = vmatprep.subr.mxu0 %v4458
          %4690 = vmatpush1.msra.mxu0 %v4457
          %4691 = vmatprep.subr.mxu0 %v4462
          %4692 = vmatpush1.msra.mxu0 %v4461
          %4693 = vmatprep.subr.mxu0 %v4466
          %4694 = vmatpush1.msra.mxu0 %v4465
          %4695 = vmatprep.subr.mxu0 %v4470
          %4696 = vmatpush1.msra.mxu0 %v4469
          %4697 = vmatprep.subr.mxu0 %v4474
          %4698 = vmatpush1.msra.mxu0 %v4473
          %4699 = vmatprep.subr.mxu0 %v4478
          %4700 = vmatpush1.msra.mxu0 %v4477
          %4701 = vmatprep.subr.mxu0 %v4482
          %4702 = vmatpush1.msra.mxu0 %v4481
          %4703 = vmatprep.subr.mxu0 %v4486
          %4704 = vmatpush1.msra.mxu0 %v4485
          %4705 = vmatprep.subr.mxu0 %v4490
          %4706 = vmatpush1.msra.mxu0 %v4489
          %4707 = vmatprep.subr.mxu0 %v4494
          %4708 = vmatpush1.msra.mxu0 %v4493
          %4709 = vmatprep.subr.mxu0 %v4498
          %4710 = vmatpush1.msra.mxu0 %v4497
          %4711 = vmatprep.subr.mxu0 %v4502
          %4712 = vmatpush1.msra.mxu0 %v4501
          %4713 = vmatprep.subr.mxu0 %v4506
          %4714 = vmatpush1.msra.mxu0 %v4505
          %4715 = vmatprep.subr.mxu0 %v4510
          %4716 = vmatpush1.msra.mxu0 %v4509
          %4717 = vmatprep.subr.mxu0 %v4514
          %4718 = vmatpush1.msra.mxu0 %v4513
          %4719 = vmatprep.subr.mxu0 %v4518
          %4720 = vmatpush1.msra.mxu0 %v4517
          %4721 = vmatprep.mubr.f32.mxu0 %v4653
          %4722 = vmatmul.mubr.f32.gmra.mrb[0].mxu0 %v401
          %v4723 = vpop.f32.mrb[0].mxu0
          %v4724 = vadd.f32 0.0, %v4723
          %v4725 = vpop.f32.mrb[0].mxu0
          %v4726 = vadd.f32 0.0, %v4725
          %4727 = vdwg.mxu0
          %4728 = vmatprep.subr.mxu0 %v4522
          %4729 = vmatpush1.msra.mxu0 %v4521
          %4730 = vmatprep.subr.mxu0 %v4526
          %4731 = vmatpush1.msra.mxu0 %v4525
          %4732 = vmatprep.subr.mxu0 %v4530
          %4733 = vmatpush1.msra.mxu0 %v4529
          %4734 = vmatprep.subr.mxu0 %v4534
          %4735 = vmatpush1.msra.mxu0 %v4533
          %4736 = vmatprep.subr.mxu0 %v4538
          %4737 = vmatpush1.msra.mxu0 %v4537
          %4738 = vmatprep.subr.mxu0 %v4542
          %4739 = vmatpush1.msra.mxu0 %v4541
          %4740 = vmatprep.subr.mxu0 %v4546
          %4741 = vmatpush1.msra.mxu0 %v4545
          %4742 = vmatprep.subr.mxu0 %v4550
          %4743 = vmatpush1.msra.mxu0 %v4549
          %4744 = vmatprep.subr.mxu0 %v4554
          %4745 = vmatpush1.msra.mxu0 %v4553
          %4746 = vmatprep.subr.mxu0 %v4558
          %4747 = vmatpush1.msra.mxu0 %v4557
          %4748 = vmatprep.subr.mxu0 %v4562
          %4749 = vmatpush1.msra.mxu0 %v4561
          %4750 = vmatprep.subr.mxu0 %v4566
          %4751 = vmatpush1.msra.mxu0 %v4565
          %4752 = vmatprep.subr.mxu0 %v4570
          %4753 = vmatpush1.msra.mxu0 %v4569
          %4754 = vmatprep.subr.mxu0 %v4574
          %4755 = vmatpush1.msra.mxu0 %v4573
          %4756 = vmatprep.subr.mxu0 %v4578
          %4757 = vmatpush1.msra.mxu0 %v4577
          %4758 = vmatprep.subr.mxu0 %v4582
          %4759 = vmatpush1.msra.mxu0 %v4581
          %4760 = vmatprep.subr.mxu0 %v4586
          %4761 = vmatpush1.msra.mxu0 %v4585
          %4762 = vmatprep.subr.mxu0 %v4590
          %4763 = vmatpush1.msra.mxu0 %v4589
          %4764 = vmatprep.subr.mxu0 %v4594
          %4765 = vmatpush1.msra.mxu0 %v4593
          %4766 = vmatprep.subr.mxu0 %v4598
          %4767 = vmatpush1.msra.mxu0 %v4597
          %4768 = vmatprep.subr.mxu0 %v4602
          %4769 = vmatpush1.msra.mxu0 %v4601
          %4770 = vmatprep.subr.mxu0 %v4606
          %4771 = vmatpush1.msra.mxu0 %v4605
          %4772 = vmatprep.subr.mxu0 %v4610
          %4773 = vmatpush1.msra.mxu0 %v4609
          %4774 = vmatprep.subr.mxu0 %v4614
          %4775 = vmatpush1.msra.mxu0 %v4613
          %4776 = vmatprep.subr.mxu0 %v4618
          %4777 = vmatpush1.msra.mxu0 %v4617
          %4778 = vmatprep.subr.mxu0 %v4622
          %4779 = vmatpush1.msra.mxu0 %v4621
          %4780 = vmatprep.subr.mxu0 %v4626
          %4781 = vmatpush1.msra.mxu0 %v4625
          %4782 = vmatprep.subr.mxu0 %v4630
          %4783 = vmatpush1.msra.mxu0 %v4629
          %4784 = vmatprep.subr.mxu0 %v4634
          %4785 = vmatpush1.msra.mxu0 %v4633
          %4786 = vmatprep.subr.mxu0 %v4638
          %4787 = vmatpush1.msra.mxu0 %v4637
          %4788 = vmatprep.subr.mxu0 %v4642
          %4789 = vmatpush1.msra.mxu0 %v4641
          %4790 = vmatprep.subr.mxu0 %v4646
          %4791 = vmatpush1.msra.mxu0 %v4645
          %4792 = vmatprep.mubr.f32.mxu0 %v4654
          %4793 = vmatmul.mubr.f32.gmra.mrb[0].mxu0 %v402
          %v4794 = vpop.f32.mrb[0].mxu0
          %v4795 = vadd.f32 %v4724, %v4794
          %v4796 = vpop.f32.mrb[0].mxu0
          %v4797 = vadd.f32 %v4726, %v4796
          %4798 = vdwg.mxu0
          %4799 = vmatprep.subr.mxu0 %v4396
          %4800 = vmatpush1.msra.mxu0 %v4395
          %4801 = vmatprep.subr.mxu0 %v4400
          %4802 = vmatpush1.msra.mxu0 %v4399
          %4803 = vmatprep.subr.mxu0 %v4404
          %4804 = vmatpush1.msra.mxu0 %v4403
          %4805 = vmatprep.subr.mxu0 %v4408
          %4806 = vmatpush1.msra.mxu0 %v4407
          %4807 = vmatprep.subr.mxu0 %v4412
          %4808 = vmatpush1.msra.mxu0 %v4411
          %4809 = vmatprep.subr.mxu0 %v4416
          %4810 = vmatpush1.msra.mxu0 %v4415
          %4811 = vmatprep.subr.mxu0 %v4420
          %4812 = vmatpush1.msra.mxu0 %v4419
          %4813 = vmatprep.subr.mxu0 %v4424
          %4814 = vmatpush1.msra.mxu0 %v4423
          %4815 = vmatprep.subr.mxu0 %v4428
          %4816 = vmatpush1.msra.mxu0 %v4427
          %4817 = vmatprep.subr.mxu0 %v4432
          %4818 = vmatpush1.msra.mxu0 %v4431
          %4819 = vmatprep.subr.mxu0 %v4436
          %4820 = vmatpush1.msra.mxu0 %v4435
          %4821 = vmatprep.subr.mxu0 %v4440
          %4822 = vmatpush1.msra.mxu0 %v4439
          %4823 = vmatprep.subr.mxu0 %v4444
          %4824 = vmatpush1.msra.mxu0 %v4443
          %4825 = vmatprep.subr.mxu0 %v4448
          %4826 = vmatpush1.msra.mxu0 %v4447
          %4827 = vmatprep.subr.mxu0 %v4452
          %4828 = vmatpush1.msra.mxu0 %v4451
          %4829 = vmatprep.subr.mxu0 %v4456
          %4830 = vmatpush1.msra.mxu0 %v4455
          %4831 = vmatprep.subr.mxu0 %v4460
          %4832 = vmatpush1.msra.mxu0 %v4459
          %4833 = vmatprep.subr.mxu0 %v4464
          %4834 = vmatpush1.msra.mxu0 %v4463
          %4835 = vmatprep.subr.mxu0 %v4468
          %4836 = vmatpush1.msra.mxu0 %v4467
          %4837 = vmatprep.subr.mxu0 %v4472
          %4838 = vmatpush1.msra.mxu0 %v4471
          %4839 = vmatprep.subr.mxu0 %v4476
          %4840 = vmatpush1.msra.mxu0 %v4475
          %4841 = vmatprep.subr.mxu0 %v4480
          %4842 = vmatpush1.msra.mxu0 %v4479
          %4843 = vmatprep.subr.mxu0 %v4484
          %4844 = vmatpush1.msra.mxu0 %v4483
          %4845 = vmatprep.subr.mxu0 %v4488
          %4846 = vmatpush1.msra.mxu0 %v4487
          %4847 = vmatprep.subr.mxu0 %v4492
          %4848 = vmatpush1.msra.mxu0 %v4491
          %4849 = vmatprep.subr.mxu0 %v4496
          %4850 = vmatpush1.msra.mxu0 %v4495
          %4851 = vmatprep.subr.mxu0 %v4500
          %4852 = vmatpush1.msra.mxu0 %v4499
          %4853 = vmatprep.subr.mxu0 %v4504
          %4854 = vmatpush1.msra.mxu0 %v4503
          %4855 = vmatprep.subr.mxu0 %v4508
          %4856 = vmatpush1.msra.mxu0 %v4507
          %4857 = vmatprep.subr.mxu0 %v4512
          %4858 = vmatpush1.msra.mxu0 %v4511
          %4859 = vmatprep.subr.mxu0 %v4516
          %4860 = vmatpush1.msra.mxu0 %v4515
          %4861 = vmatprep.subr.mxu0 %v4520
          %4862 = vmatpush1.msra.mxu0 %v4519
          %4863 = vmatprep.mubr.f32.mxu0 %v4653
          %4864 = vmatmul.mubr.f32.gmra.mrb[0].mxu0 %v401
          %v4865 = vpop.f32.mrb[0].mxu0
          %v4866 = vadd.f32 0.0, %v4865
          %v4867 = vpop.f32.mrb[0].mxu0
          %v4868 = vadd.f32 0.0, %v4867
          %4869 = vdwg.mxu0
          %4870 = vmatprep.subr.mxu0 %v4524
          %4871 = vmatpush1.msra.mxu0 %v4523
          %4872 = vmatprep.subr.mxu0 %v4528
          %4873 = vmatpush1.msra.mxu0 %v4527
          %4874 = vmatprep.subr.mxu0 %v4532
          %4875 = vmatpush1.msra.mxu0 %v4531
          %4876 = vmatprep.subr.mxu0 %v4536
          %4877 = vmatpush1.msra.mxu0 %v4535
          %4878 = vmatprep.subr.mxu0 %v4540
          %4879 = vmatpush1.msra.mxu0 %v4539
          %4880 = vmatprep.subr.mxu0 %v4544
          %4881 = vmatpush1.msra.mxu0 %v4543
          %4882 = vmatprep.subr.mxu0 %v4548
          %4883 = vmatpush1.msra.mxu0 %v4547
          %4884 = vmatprep.subr.mxu0 %v4552
          %4885 = vmatpush1.msra.mxu0 %v4551
          %4886 = vmatprep.subr.mxu0 %v4556
          %4887 = vmatpush1.msra.mxu0 %v4555
          %4888 = vmatprep.subr.mxu0 %v4560
          %4889 = vmatpush1.msra.mxu0 %v4559
          %4890 = vmatprep.subr.mxu0 %v4564
          %4891 = vmatpush1.msra.mxu0 %v4563
          %4892 = vmatprep.subr.mxu0 %v4568
          %4893 = vmatpush1.msra.mxu0 %v4567
          %4894 = vmatprep.subr.mxu0 %v4572
          %4895 = vmatpush1.msra.mxu0 %v4571
          %4896 = vmatprep.subr.mxu0 %v4576
          %4897 = vmatpush1.msra.mxu0 %v4575
          %4898 = vmatprep.subr.mxu0 %v4580
          %4899 = vmatpush1.msra.mxu0 %v4579
          %4900 = vmatprep.subr.mxu0 %v4584
          %4901 = vmatpush1.msra.mxu0 %v4583
          %4902 = vmatprep.subr.mxu0 %v4588
          %4903 = vmatpush1.msra.mxu0 %v4587
          %4904 = vmatprep.subr.mxu0 %v4592
          %4905 = vmatpush1.msra.mxu0 %v4591
          %4906 = vmatprep.subr.mxu0 %v4596
          %4907 = vmatpush1.msra.mxu0 %v4595
          %4908 = vmatprep.subr.mxu0 %v4600
          %4909 = vmatpush1.msra.mxu0 %v4599
          %4910 = vmatprep.subr.mxu0 %v4604
          %4911 = vmatpush1.msra.mxu0 %v4603
          %4912 = vmatprep.subr.mxu0 %v4608
          %4913 = vmatpush1.msra.mxu0 %v4607
          %4914 = vmatprep.subr.mxu0 %v4612
          %4915 = vmatpush1.msra.mxu0 %v4611
          %4916 = vmatprep.subr.mxu0 %v4616
          %4917 = vmatpush1.msra.mxu0 %v4615
          %4918 = vmatprep.subr.mxu0 %v4620
          %4919 = vmatpush1.msra.mxu0 %v4619
          %4920 = vmatprep.subr.mxu0 %v4624
          %4921 = vmatpush1.msra.mxu0 %v4623
          %4922 = vmatprep.subr.mxu0 %v4628
          %4923 = vmatpush1.msra.mxu0 %v4627
          %4924 = vmatprep.subr.mxu0 %v4632
          %4925 = vmatpush1.msra.mxu0 %v4631
          %4926 = vmatprep.subr.mxu0 %v4636
          %4927 = vmatpush1.msra.mxu0 %v4635
          %4928 = vmatprep.subr.mxu0 %v4640
          %4929 = vmatpush1.msra.mxu0 %v4639
          %4930 = vmatprep.subr.mxu0 %v4644
          %4931 = vmatpush1.msra.mxu0 %v4643
          %4932 = vmatprep.subr.mxu0 %v4648
          %4933 = vmatpush1.msra.mxu0 %v4647
          %4934 = vmatprep.mubr.f32.mxu0 %v4654
          %4935 = vmatmul.mubr.f32.gmra.mrb[0].mxu0 %v402
          %v4936 = vpop.f32.mrb[0].mxu0
          %v4937 = vadd.f32 %v4866, %v4936
          %v4938 = vpop.f32.mrb[0].mxu0
          %v4939 = vadd.f32 %v4868, %v4938
          %4940 = vdwg.mxu0
          %v4945 = vcombine.low %v4795, %v4797
          %v4946 = vcombine.low %v4937, %v4939
          %v4949 = vadd.f32 %v4649, %v4945
          %v4950 = vadd.f32 %v4650, %v4946
          %4951 = vst [vmem:[%s324] sm:$0xff] %v4949
          %4952 = vst [vmem:[%s324 + $0x8] sm:$0xff] %v4950
        $region40: #{tpu_custom_call.1} parent=31 // pred_fallthru
          _
        %s4953 = sand.u32 %s171, 1
        %s4954 = scalar_lea.sflag [#allocation7], %s4953
        %s4955 = sand.u32 %s171, 1
        %s4956 = smul.addr %s4955, 16
        %s4957 = scalar_lea.vmem [#allocation6], %s4956
        // Predicated region
        $region41: #{tpu_custom_call.1} parent=31 // pred_check
          %p4958 = pneg %p181
        $region42: #{tpu_custom_call.1} parent=31 // pred_check_branch
          %4960 = sbr.rel (%p4958) target = $region44
        $region43: #{tpu_custom_call.1} parent=31 // pred_region
          %s4961 = smul.u32 4, %s40
          %s4963 = ssub.s32 256, 256
          %4964 = vsyncadd %s4954, %s4963
          %s4965 = smul.addr %s39, 8
          %s4966 = sadd.s32 %s4961, %s4965
          %s4967 = smul.addr %s4966, 64
          %s4968 = scalar_lea.hbm %s6, %s4967
          %s4970 = sshll.u32 %s4957, 4
          %s4971 = int_to_ptr.vmem [resolvable:$true] %s4970
          %4973 = dma.vmem_to_hbm [thread:$0]  %s4971, 256, %s4968, %s4954
        $region44: #{tpu_custom_call.1} parent=31 // pred_fallthru
          _
      $region32: #{tpu_custom_call.1} parent=5 // pred_fallthru
        _
      %p4974 = scmp.le.s32.totalorder 2, %s29
      // Predicated region
      $region45: #{tpu_custom_call.1} parent=5 // pred_check
        %p4975 = pneg %p4974
      $region46: #{tpu_custom_call.1} parent=5 // pred_check_branch
        %4977 = sbr.rel (%p4975) target = $region48
      $region47: #{tpu_custom_call.1} parent=5 // pred_region
        %s4978 = ssub.s32 %s29, 2
        // Predicated region
        $region49: #{tpu_custom_call.1} parent=47 // pred_check
          %p4979 = pneg %p187
        $region50: #{tpu_custom_call.1} parent=47 // pred_check_branch
          %4981 = sbr.rel (%p4979) target = $region52
        $region51: #{tpu_custom_call.1} parent=47 // pred_region
          %s4982 = sand.u32 %s172, 1
          %s4983 = scalar_lea.sflag [#allocation7], %s4982
          %s4984 = sand.u32 %s172, 1
          %s4985 = smul.addr %s4984, 16
          %s4986 = scalar_lea.vmem [#allocation6], %s4985
          %4987 = dma.done %s4983, 256
        $region52: #{tpu_custom_call.1} parent=47 // pred_fallthru
          _
      $region48: #{tpu_custom_call.1} parent=5 // pred_fallthru
        _
    $region6: #{tpu_custom_call.1} parent=1 // loop_footer
      %s33 = sadd.s32 1, %s29
    $region7: #{tpu_custom_call.1} parent=1 // loop_footer_branch
      %28 = sbr.rel target = $region3
    $region8: #{tpu_custom_call.1} parent=1 // loop_exit
      _
    %4988 = vsyncpa [#allocation7], 1
    %s4989 = scalar_lea.sflag [#allocation7], 1
    %4990 = vsyncpa %s4989, 1

</llo_original>
